<compile_context>
chip_gen: v7x
topology: tpu7x:2x2x1
jax: 0.10.0
libtpu: 0.0.40
codegen_flags: <defaults>
</compile_context>

<pallas_src>
import functools

import jax
import jax.numpy as jnp
from jax import lax
from jax.experimental import pallas as pl
from jax.experimental.pallas import tpu as pltpu

# float32 => exact parity with the PyTorch reference; jnp.bfloat16 => bf16 MXU operands.
MXU_PARAM_DTYPE = jnp.float32


# ----------------------------------------------------------------------------
# Fused whole-network kernel: all bidirectional LSTM layers + FC head.
# ----------------------------------------------------------------------------
def _birnn_kernel(*refs, num_layers: int):
    """Ref layout (in order):
      inputs : x                (T*B, D_in)        flattened input sequence
               per layer l:
                 wih streams    (D_s, 8H) each     1 stream for layer 0, 2 for deeper
                 whh            (2H, 8H)           block-diagonal recurrent weight
                 b              (1, 8H)            combined bias (b_ih + b_hh), fw|bw
               fcw_fw, fcw_bw   (H, C)             FC weight rows for fw / bw halves
               fcb              (1, C)
      outputs: logits           (T*B, C)
      scratch: pre              (T, B, 8H)         pre-gates, both directions (reused)
               seq_fw, seq_bw   (T, B, H)          hidden streams (reused across layers)
    Gate column order inside each 4H block: [i, f, o, g_cand].
    """
    idx = 0
    x_ref = refs[idx]; idx += 1
    layer_refs = []
    for li in range(num_layers):
        ns = 1 if li == 0 else 2
        wih = refs[idx:idx + ns]; idx += ns
        whh = refs[idx]; idx += 1
        b = refs[idx]; idx += 1
        layer_refs.append((wih, whh, b))
    fcw_fw_ref, fcw_bw_ref, fcb_ref = refs[idx:idx + 3]; idx += 3
    out_ref = refs[idx]; idx += 1
    pre_ref, seq_fw, seq_bw = refs[idx:idx + 3]

    T, B, H8 = pre_ref.shape
    H = H8 // 8
    H4 = 4 * H

    def cell(g, c_prev):
        # One wide sigmoid over [i | f | o], one tanh over g_cand.
        sig = jax.nn.sigmoid(g[:, :3 * H])
        i_g = sig[:, :H]
        f_g = sig[:, H:2 * H]
        o_g = sig[:, 2 * H:]
        g_g = jnp.tanh(g[:, 3 * H:])
        c_new = f_g * c_prev + i_g * g_g
        h_new = o_g * jnp.tanh(c_new)
        return h_new, c_new

    def run_layer(in_vals, wih_refs, whh_ref, b_ref):
        # ---- (1) Hoisted input projection for BOTH directions, one wide MXU pass
        #      per input stream; bias folded in here.  Stored in ONE (T, B, 8H) scratch.
        pre = b_ref[...].astype(jnp.float32)                    # (1, 8H), broadcasts
        for xv, w_r in zip(in_vals, wih_refs):
            pre = pre + jnp.dot(xv.astype(w_r.dtype), w_r[...],
                                preferred_element_type=jnp.float32)
        pre_ref[...] = pre.reshape(T, B, H8)

        whh = whh_ref[...]                                      # (2H, 8H) block-diag
        mxu_dt = whh.dtype

        # ---- (2) Both directions fused into one time loop; h/c carried in vregs.
        #      Single block-diagonal recurrent dot per step is the only serial MXU op.
        def step(t, carry):
            h_cat, c_fw, c_bw = carry
            tb = T - 1 - t
            rec = jnp.dot(h_cat.astype(mxu_dt), whh,
                          preferred_element_type=jnp.float32)   # (B, 8H), ONE MXU push
            g_fw = rec[:, :H4] + pre_ref[t][:, :H4]
            g_bw = rec[:, H4:] + pre_ref[tb][:, H4:]
            hf, cf = cell(g_fw, c_fw)
            hb, cb = cell(g_bw, c_bw)
            seq_fw[t] = hf
            seq_bw[tb] = hb
            return (jnp.concatenate([hf, hb], axis=1), cf, cb)

        h0 = jnp.zeros((B, 2 * H), jnp.float32)                 # PyTorch h0 = c0 = 0
        c0 = jnp.zeros((B, H), jnp.float32)
        # Fully unrolled: T is small/static, gives the scheduler cross-step visibility.
        lax.fori_loop(0, T, step, (h0, c0, c0), unroll=True)

    in_vals = [x_ref[...]]
    for li in range(num_layers):
        if li > 0:
            # Previous layer's streams (already consumed fully here, so the scratch can
            # be safely overwritten by this layer's time loop).
            in_vals = [seq_fw[...].reshape(T * B, H), seq_bw[...].reshape(T * B, H)]
        wih, whh, b = layer_refs[li]
        run_layer(in_vals, wih, whh, b)

    # ---- (3) Fused FC head: row-split dots, no lane concat ever materialized.
    hf2 = seq_fw[...].reshape(T * B, H).astype(fcw_fw_ref.dtype)
    hb2 = seq_bw[...].reshape(T * B, H).astype(fcw_bw_ref.dtype)
    out_ref[...] = (jnp.dot(hf2, fcw_fw_ref[...], preferred_element_type=jnp.float32)
                    + jnp.dot(hb2, fcw_bw_ref[...], preferred_element_type=jnp.float32)
                    + fcb_ref[...])


# ----------------------------------------------------------------------------
# pallas_call wrapper (single launch for the whole network)
# ----------------------------------------------------------------------------
def birnn_pallas(packed, x):
    """x: (seq_len, batch, input_size) -> logits (seq_len, batch, num_classes)."""
    T, B, D = x.shape
    H = packed["layers"][0]["whh"].shape[0] // 2
    C = packed["fc_b"].shape[1]
    num_layers = len(packed["layers"])

    # Flatten at the pallas_call boundary (free layout plumbing, no in-kernel reshape).
    x2d = x.reshape(T * B, D)

    def spec(shape):
        return pl.BlockSpec(shape, lambda i: (0,) * len(shape))

    args = [x2d]
    in_specs = [spec(x2d.shape)]
    for lp in packed["layers"]:
        for w in lp["wih"]:
            args.append(w); in_specs.append(spec(w.shape))
        args.append(lp["whh"]); in_specs.append(spec(lp["whh"].shape))
        args.append(lp["b"]); in_specs.append(spec(lp["b"].shape))
    for w in (packed["fc_w_fw"], packed["fc_w_bw"], packed["fc_b"]):
        args.append(w); in_specs.append(spec(w.shape))

    kernel = functools.partial(_birnn_kernel, num_layers=num_layers)

    out2d = pl.pallas_call(
        kernel,
        out_shape=jax.ShapeDtypeStruct((T * B, C), jnp.float32),
        grid=(1,),
        in_specs=in_specs,
        out_specs=spec((T * B, C)),
        scratch_shapes=[
            pltpu.VMEM((T, B, 8 * H), jnp.float32),   # pre-gates, both directions
            pltpu.VMEM((T, B, H), jnp.float32),       # fw hidden stream
            pltpu.VMEM((T, B, H), jnp.float32),       # bw hidden stream
        ],
        compiler_params=pltpu.CompilerParams(
            dimension_semantics=("arbitrary",)),
    )(*args)
    return out2d.reshape(T, B, C)


# ----------------------------------------------------------------------------
# Parameters: raw PyTorch layout + packing into the kernel layout
# ----------------------------------------------------------------------------
def init_raw_params(key, input_size, hidden_size, num_layers, num_classes):
    """Raw PyTorch-layout params: per layer/direction (w_ih, w_hh, b_ih, b_hh),
    gate order [i, f, g, o]."""
    H = hidden_size
    bound = 1.0 / (H ** 0.5)
    raw = {"layers": []}
    for layer in range(num_layers):
        in_dim = input_size if layer == 0 else 2 * H
        dirs = []
        for _ in range(2):  # forward, backward
            key, k1, k2, k3, k4 = jax.random.split(key, 5)
            w_ih = jax.random.uniform(k1, (4 * H, in_dim), jnp.float32, -bound, bound)
            w_hh = jax.random.uniform(k2, (4 * H, H), jnp.float32, -bound, bound)
            b_ih = jax.random.uniform(k3, (4 * H,), jnp.float32, -bound, bound)
            b_hh = jax.random.uniform(k4, (4 * H,), jnp.float32, -bound, bound)
            dirs.append((w_ih, w_hh, b_ih, b_hh))
        raw["layers"].append(dirs)
    key, k1, k2 = jax.random.split(key, 3)
    fc_bound = 1.0 / ((2 * H) ** 0.5)
    raw["fc_w"] = jax.random.uniform(k1, (num_classes, 2 * H), jnp.float32,
                                     -fc_bound, fc_bound)
    raw["fc_b"] = jax.random.uniform(k2, (num_classes,), jnp.float32,
                                     -fc_bound, fc_bound)
    return raw


def _reorder_gates(w):
    """Rows grouped [i, f, g, o] (PyTorch) -> [i, f, o, g] (kernel layout)."""
    H = w.shape[0] // 4
    return jnp.concatenate([w[:2 * H], w[3 * H:], w[2 * H:3 * H]], axis=0)


def pack_params(raw, mxu_dtype=MXU_PARAM_DTYPE):
    layers_packed = []
    for li, dirs in enumerate(raw["layers"]):
        (wif, whf, bif, bhf), (wib, whb, bib, bhb) = dirs
        H = whf.shape[1]
        # Combined input-projection weight: (in_dim, 8H) = [fw gates | bw gates].
        wih_cat = jnp.concatenate([_reorder_gates(wif).T, _reorder_gates(wib).T], axis=1)
        if li == 0:
            wih_streams = (wih_cat.astype(mxu_dtype),)
        else:
            # Deeper layers consume two streams (prev fw rows 0:H, prev bw rows H:2H).
            wih_streams = (wih_cat[:H].astype(mxu_dtype),
                           wih_cat[H:].astype(mxu_dtype))
        # Block-diagonal recurrent weight (exact-zero off blocks => no fw/bw mixing).
        whh_bd = jnp.zeros((2 * H, 8 * H), jnp.float32)
        whh_bd = whh_bd.at[:H, :4 * H].set(_reorder_gates(whf).T)
        whh_bd = whh_bd.at[H:, 4 * H:].set(_reorder_gates(whb).T)
        b = jnp.concatenate([_reorder_gates(bif + bhf),
                             _reorder_gates(bib + bhb)]).reshape(1, 8 * H)
        layers_packed.append({"wih": wih_streams,
                              "whh": whh_bd.astype(mxu_dtype),
                              "b": b})
    H = raw["layers"][0][0][1].shape[1]
    w_fc_t = raw["fc_w"].T                                      # (2H, C)
    return {"layers": layers_packed,
            "fc_w_fw": w_fc_t[:H].astype(mxu_dtype),            # (H, C)
            "fc_w_bw": w_fc_t[H:].astype(mxu_dtype),            # (H, C)
            "fc_b": raw["fc_b"].reshape(1, -1)}                 # (1, C), f32


# ----------------------------------------------------------------------------
# Pure-JAX reference (PyTorch nn.LSTM semantics) for correctness checking
# ----------------------------------------------------------------------------
def _lstm_direction_ref(x_seq, w_ih, w_hh, b_ih, b_hh, reverse):
    T, B, _ = x_seq.shape
    H = w_hh.shape[1]
    xs = x_seq[::-1] if reverse else x_seq

    def step(carry, x_t):
        h, c = carry
        gates = x_t @ w_ih.T + h @ w_hh.T + b_ih + b_hh
        i = jax.nn.sigmoid(gates[:, 0 * H:1 * H])
        f = jax.nn.sigmoid(gates[:, 1 * H:2 * H])
        g = jnp.tanh(gates[:, 2 * H:3 * H])
        o = jax.nn.sigmoid(gates[:, 3 * H:4 * H])
        c = f * c + i * g
        h = o * jnp.tanh(c)
        return (h, c), h

    init = (jnp.zeros((B, H), jnp.float32), jnp.zeros((B, H), jnp.float32))
    _, hs = lax.scan(step, init, xs)
    return hs[::-1] if reverse else hs


@jax.jit
def birnn_reference(raw, x):
    out = x
    for dirs in raw["layers"]:
        h_fw = _lstm_direction_ref(out, *dirs[0], reverse=False)
        h_bw = _lstm_direction_ref(out, *dirs[1], reverse=True)
        out = jnp.concatenate([h_fw, h_bw], axis=-1)
    T, B, HH = out.shape
    logits = out.reshape(T * B, HH) @ raw["fc_w"].T + raw["fc_b"]
    return logits.reshape(T, B, -1)


# ----------------------------------------------------------------------------
# Main
# ----------------------------------------------------------------------------
if __name__ == "__main__":
    seq_len = 8
    batch = 2
    input_size = 16
    hidden_size = 32
    num_layers = 2
    num_classes = 10

    key = jax.random.PRNGKey(0)
    key_p, key_x = jax.random.split(key)
    raw = init_raw_params(key_p, input_size, hidden_size, num_layers, num_classes)
    packed = pack_params(raw)
    x = jax.random.normal(key_x, (seq_len, batch, input_size), jnp.float32)

    birnn_forward = jax.jit(birnn_pallas)
    out = jax.block_until_ready(birnn_forward(packed, x))

    assert out.shape == (seq_len, batch, num_classes), out.shape
    assert bool(jnp.all(jnp.isfinite(out)))

    # Numerical check against the pure-JAX reference (PyTorch semantics).
    ref = jax.block_until_ready(birnn_reference(raw, x))
    tol = 2e-2 if MXU_PARAM_DTYPE == jnp.float32 else 2e-1
    max_err = float(jnp.max(jnp.abs(out - ref)))
    assert max_err < tol, f"max abs error vs reference: {max_err}"

    print("KERNEL_OK")
</pallas_src>

<mosaic_0001>
module attributes {stable_mosaic.version = 11 : i64} {
  func.func @_birnn_kernel(%arg0: i32, %arg1: memref<16x16xf32, #tpu.memory_space<vmem>>, %arg2: memref<16x256xf32, #tpu.memory_space<vmem>>, %arg3: memref<64x256xf32, #tpu.memory_space<vmem>>, %arg4: memref<1x256xf32, #tpu.memory_space<vmem>>, %arg5: memref<32x256xf32, #tpu.memory_space<vmem>>, %arg6: memref<32x256xf32, #tpu.memory_space<vmem>>, %arg7: memref<64x256xf32, #tpu.memory_space<vmem>>, %arg8: memref<1x256xf32, #tpu.memory_space<vmem>>, %arg9: memref<32x10xf32, #tpu.memory_space<vmem>>, %arg10: memref<32x10xf32, #tpu.memory_space<vmem>>, %arg11: memref<1x10xf32, #tpu.memory_space<vmem>>, %arg12: memref<16x10xf32, #tpu.memory_space<vmem>>, %arg13: memref<8x2x256xf32, #tpu.memory_space<vmem>>, %arg14: memref<8x2x32xf32, #tpu.memory_space<vmem>>, %arg15: memref<8x2x32xf32, #tpu.memory_space<vmem>>) attributes {dimension_semantics = [#tpu.dimension_semantics<arbitrary>], iteration_bounds = array<i64: 1>, scalar_prefetch = 0 : i64, scratch_operands = 3 : i64, tpu.core_type = #tpu.core_type<tc>, window_params = [{pipeline_mode = #tpu.pipeline_mode<synchronous>, transform_indices = @transform_0, window_bounds = array<i64: 16, 16>}, {pipeline_mode = #tpu.pipeline_mode<synchronous>, transform_indices = @transform_1, window_bounds = array<i64: 16, 256>}, {pipeline_mode = #tpu.pipeline_mode<synchronous>, transform_indices = @transform_2, window_bounds = array<i64: 64, 256>}, {pipeline_mode = #tpu.pipeline_mode<synchronous>, transform_indices = @transform_3, window_bounds = array<i64: 1, 256>}, {pipeline_mode = #tpu.pipeline_mode<synchronous>, transform_indices = @transform_4, window_bounds = array<i64: 32, 256>}, {pipeline_mode = #tpu.pipeline_mode<synchronous>, transform_indices = @transform_5, window_bounds = array<i64: 32, 256>}, {pipeline_mode = #tpu.pipeline_mode<synchronous>, transform_indices = @transform_6, window_bounds = array<i64: 64, 256>}, {pipeline_mode = #tpu.pipeline_mode<synchronous>, transform_indices = @transform_7, window_bounds = array<i64: 1, 256>}, {pipeline_mode = #tpu.pipeline_mode<synchronous>, transform_indices = @transform_8, window_bounds = array<i64: 32, 10>}, {pipeline_mode = #tpu.pipeline_mode<synchronous>, transform_indices = @transform_9, window_bounds = array<i64: 32, 10>}, {pipeline_mode = #tpu.pipeline_mode<synchronous>, transform_indices = @transform_10, window_bounds = array<i64: 1, 10>}, {pipeline_mode = #tpu.pipeline_mode<synchronous>, transform_indices = @transform_11, window_bounds = array<i64: 16, 10>}]} {
    %c0 = arith.constant 0 : index
    %c0_0 = arith.constant 0 : index
    %0 = vector.load %arg1[%c0, %c0_0] : memref<16x16xf32, #tpu.memory_space<vmem>>, vector<16x16xf32>
    %c0_1 = arith.constant 0 : index
    %c0_2 = arith.constant 0 : index
    %1 = vector.load %arg4[%c0_1, %c0_2] : memref<1x256xf32, #tpu.memory_space<vmem>>, vector<1x256xf32>
    %c0_3 = arith.constant 0 : index
    %c0_4 = arith.constant 0 : index
    %2 = vector.load %arg2[%c0_3, %c0_4] : memref<16x256xf32, #tpu.memory_space<vmem>>, vector<16x256xf32>
    %cst = arith.constant dense<0.000000e+00> : vector<16x256xf32>
    %3 = tpu.matmul %0, %2, %cst {dimension_numbers = #tpu.dot_dimension_numbers<[1], [0], [0], [1], [0, 0, 1, 1], [], []>} : vector<16x16xf32>, vector<16x256xf32>, vector<16x256xf32> -> vector<16x256xf32>
    %4 = vector.broadcast %1 : vector<1x256xf32> to vector<16x256xf32>
    %5 = arith.addf %4, %3 : vector<16x256xf32>
    %6 = vector.shape_cast %5 : vector<16x256xf32> to vector<8x2x256xf32>
    %c0_5 = arith.constant 0 : index
    %c0_6 = arith.constant 0 : index
    %c0_7 = arith.constant 0 : index
    %7 = vector.load %arg13[%c0_5, %c0_6, %c0_7] : memref<8x2x256xf32, #tpu.memory_space<vmem>>, vector<8x2x256xf32>
    tpu.vector_store %arg13[%c0_5, %c0_6, %c0_7], %6 {strides = array<i32>} : memref<8x2x256xf32, #tpu.memory_space<vmem>>, vector<8x2x256xf32>,
    %c0_8 = arith.constant 0 : index
    %c0_9 = arith.constant 0 : index
    %8 = vector.load %arg3[%c0_8, %c0_9] : memref<64x256xf32, #tpu.memory_space<vmem>>, vector<64x256xf32>
    %cst_10 = arith.constant 0.000000e+00 : f32
    %9 = vector.broadcast %cst_10 : f32 to vector<2x64xf32>
    %cst_11 = arith.constant 0.000000e+00 : f32
    %10 = vector.broadcast %cst_11 : f32 to vector<2x32xf32>
    %c0_i32 = arith.constant 0 : i32
    %c7_i32 = arith.constant 7 : i32
    %11 = arith.subi %c7_i32, %c0_i32 : i32
    %cst_12 = arith.constant dense<0.000000e+00> : vector<2x256xf32>
    %12 = tpu.matmul %9, %8, %cst_12 {dimension_numbers = #tpu.dot_dimension_numbers<[1], [0], [0], [1], [0, 0, 1, 1], [], []>} : vector<2x64xf32>, vector<64x256xf32>, vector<2x256xf32> -> vector<2x256xf32>
    %13 = vector.extract_strided_slice %12 {offsets = [0, 0], sizes = [2, 128], strides = [1, 1]} : vector<2x256xf32> to vector<2x128xf32>
    %14 = arith.index_cast %c0_i32 : i32 to index
    %c0_13 = arith.constant 0 : index
    %c0_14 = arith.constant 0 : index
    %15 = vector.load %arg13[%14, %c0_13, %c0_14] : memref<8x2x256xf32, #tpu.memory_space<vmem>>, vector<1x2x256xf32>
    %16 = vector.shape_cast %15 : vector<1x2x256xf32> to vector<2x256xf32>
    %17 = vector.extract_strided_slice %16 {offsets = [0, 0], sizes = [2, 128], strides = [1, 1]} : vector<2x256xf32> to vector<2x128xf32>
    %18 = arith.addf %13, %17 : vector<2x128xf32>
    %19 = vector.extract_strided_slice %12 {offsets = [0, 128], sizes = [2, 128], strides = [1, 1]} : vector<2x256xf32> to vector<2x128xf32>
    %20 = arith.index_cast %11 : i32 to index
    %c0_15 = arith.constant 0 : index
    %c0_16 = arith.constant 0 : index
    %21 = vector.load %arg13[%20, %c0_15, %c0_16] : memref<8x2x256xf32, #tpu.memory_space<vmem>>, vector<1x2x256xf32>
    %22 = vector.shape_cast %21 : vector<1x2x256xf32> to vector<2x256xf32>
    %23 = vector.extract_strided_slice %22 {offsets = [0, 128], sizes = [2, 128], strides = [1, 1]} : vector<2x256xf32> to vector<2x128xf32>
    %24 = arith.addf %19, %23 : vector<2x128xf32>
    %25 = vector.extract_strided_slice %18 {offsets = [0, 0], sizes = [2, 96], strides = [1, 1]} : vector<2x128xf32> to vector<2x96xf32>
    %26 = arith.negf %25 : vector<2x96xf32>
    %27 = math.exp %26 : vector<2x96xf32>
    %cst_17 = arith.constant 1.000000e+00 : f32
    %28 = vector.broadcast %cst_17 : f32 to vector<2x96xf32>
    %29 = arith.addf %28, %27 : vector<2x96xf32>
    %30 = arith.divf %28, %29 : vector<2x96xf32>
    %31 = vector.extract_strided_slice %30 {offsets = [0, 0], sizes = [2, 32], strides = [1, 1]} : vector<2x96xf32> to vector<2x32xf32>
    %32 = vector.extract_strided_slice %30 {offsets = [0, 32], sizes = [2, 32], strides = [1, 1]} : vector<2x96xf32> to vector<2x32xf32>
    %33 = vector.extract_strided_slice %30 {offsets = [0, 64], sizes = [2, 32], strides = [1, 1]} : vector<2x96xf32> to vector<2x32xf32>
    %34 = vector.extract_strided_slice %18 {offsets = [0, 96], sizes = [2, 32], strides = [1, 1]} : vector<2x128xf32> to vector<2x32xf32>
    %35 = math.tanh %34 : vector<2x32xf32>
    %36 = arith.mulf %32, %10 : vector<2x32xf32>
    %37 = arith.mulf %31, %35 : vector<2x32xf32>
    %38 = arith.addf %36, %37 : vector<2x32xf32>
    %39 = math.tanh %38 : vector<2x32xf32>
    %40 = arith.mulf %33, %39 : vector<2x32xf32>
    %41 = vector.extract_strided_slice %24 {offsets = [0, 0], sizes = [2, 96], strides = [1, 1]} : vector<2x128xf32> to vector<2x96xf32>
    %42 = arith.negf %41 : vector<2x96xf32>
    %43 = math.exp %42 : vector<2x96xf32>
    %cst_18 = arith.constant 1.000000e+00 : f32
    %44 = vector.broadcast %cst_18 : f32 to vector<2x96xf32>
    %45 = arith.addf %44, %43 : vector<2x96xf32>
    %46 = arith.divf %44, %45 : vector<2x96xf32>
    %47 = vector.extract_strided_slice %46 {offsets = [0, 0], sizes = [2, 32], strides = [1, 1]} : vector<2x96xf32> to vector<2x32xf32>
    %48 = vector.extract_strided_slice %46 {offsets = [0, 32], sizes = [2, 32], strides = [1, 1]} : vector<2x96xf32> to vector<2x32xf32>
    %49 = vector.extract_strided_slice %46 {offsets = [0, 64], sizes = [2, 32], strides = [1, 1]} : vector<2x96xf32> to vector<2x32xf32>
    %50 = vector.extract_strided_slice %24 {offsets = [0, 96], sizes = [2, 32], strides = [1, 1]} : vector<2x128xf32> to vector<2x32xf32>
    %51 = math.tanh %50 : vector<2x32xf32>
    %52 = arith.mulf %48, %10 : vector<2x32xf32>
    %53 = arith.mulf %47, %51 : vector<2x32xf32>
    %54 = arith.addf %52, %53 : vector<2x32xf32>
    %55 = math.tanh %54 : vector<2x32xf32>
    %56 = arith.mulf %49, %55 : vector<2x32xf32>
    %57 = arith.index_cast %c0_i32 : i32 to index
    %c0_19 = arith.constant 0 : index
    %c0_20 = arith.constant 0 : index
    %58 = vector.load %arg14[%57, %c0_19, %c0_20] : memref<8x2x32xf32, #tpu.memory_space<vmem>>, vector<1x2x32xf32>
    %59 = vector.shape_cast %58 : vector<1x2x32xf32> to vector<2x32xf32>
    %60 = vector.shape_cast %40 : vector<2x32xf32> to vector<1x2x32xf32>
    tpu.vector_store %arg14[%57, %c0_19, %c0_20], %60 {strides = array<i32>} : memref<8x2x32xf32, #tpu.memory_space<vmem>>, vector<1x2x32xf32>,
    %61 = arith.index_cast %11 : i32 to index
    %c0_21 = arith.constant 0 : index
    %c0_22 = arith.constant 0 : index
    %62 = vector.load %arg15[%61, %c0_21, %c0_22] : memref<8x2x32xf32, #tpu.memory_space<vmem>>, vector<1x2x32xf32>
    %63 = vector.shape_cast %62 : vector<1x2x32xf32> to vector<2x32xf32>
    %64 = vector.shape_cast %56 : vector<2x32xf32> to vector<1x2x32xf32>
    tpu.vector_store %arg15[%61, %c0_21, %c0_22], %64 {strides = array<i32>} : memref<8x2x32xf32, #tpu.memory_space<vmem>>, vector<1x2x32xf32>,
    %65 = tpu.concatenate %40, %56 in 1 : vector<2x32xf32>, vector<2x32xf32> -> vector<2x64xf32>
    %c1_i32 = arith.constant 1 : i32
    %c7_i32_23 = arith.constant 7 : i32
    %66 = arith.subi %c7_i32_23, %c1_i32 : i32
    %cst_24 = arith.constant dense<0.000000e+00> : vector<2x256xf32>
    %67 = tpu.matmul %65, %8, %cst_24 {dimension_numbers = #tpu.dot_dimension_numbers<[1], [0], [0], [1], [0, 0, 1, 1], [], []>} : vector<2x64xf32>, vector<64x256xf32>, vector<2x256xf32> -> vector<2x256xf32>
    %68 = vector.extract_strided_slice %67 {offsets = [0, 0], sizes = [2, 128], strides = [1, 1]} : vector<2x256xf32> to vector<2x128xf32>
    %69 = arith.index_cast %c1_i32 : i32 to index
    %c0_25 = arith.constant 0 : index
    %c0_26 = arith.constant 0 : index
    %70 = vector.load %arg13[%69, %c0_25, %c0_26] : memref<8x2x256xf32, #tpu.memory_space<vmem>>, vector<1x2x256xf32>
    %71 = vector.shape_cast %70 : vector<1x2x256xf32> to vector<2x256xf32>
    %72 = vector.extract_strided_slice %71 {offsets = [0, 0], sizes = [2, 128], strides = [1, 1]} : vector<2x256xf32> to vector<2x128xf32>
    %73 = arith.addf %68, %72 : vector<2x128xf32>
    %74 = vector.extract_strided_slice %67 {offsets = [0, 128], sizes = [2, 128], strides = [1, 1]} : vector<2x256xf32> to vector<2x128xf32>
    %75 = arith.index_cast %66 : i32 to index
    %c0_27 = arith.constant 0 : index
    %c0_28 = arith.constant 0 : index
    %76 = vector.load %arg13[%75, %c0_27, %c0_28] : memref<8x2x256xf32, #tpu.memory_space<vmem>>, vector<1x2x256xf32>
    %77 = vector.shape_cast %76 : vector<1x2x256xf32> to vector<2x256xf32>
    %78 = vector.extract_strided_slice %77 {offsets = [0, 128], sizes = [2, 128], strides = [1, 1]} : vector<2x256xf32> to vector<2x128xf32>
    %79 = arith.addf %74, %78 : vector<2x128xf32>
    %80 = vector.extract_strided_slice %73 {offsets = [0, 0], sizes = [2, 96], strides = [1, 1]} : vector<2x128xf32> to vector<2x96xf32>
    %81 = arith.negf %80 : vector<2x96xf32>
    %82 = math.exp %81 : vector<2x96xf32>
    %cst_29 = arith.constant 1.000000e+00 : f32
    %83 = vector.broadcast %cst_29 : f32 to vector<2x96xf32>
    %84 = arith.addf %83, %82 : vector<2x96xf32>
    %85 = arith.divf %83, %84 : vector<2x96xf32>
    %86 = vector.extract_strided_slice %85 {offsets = [0, 0], sizes = [2, 32], strides = [1, 1]} : vector<2x96xf32> to vector<2x32xf32>
    %87 = vector.extract_strided_slice %85 {offsets = [0, 32], sizes = [2, 32], strides = [1, 1]} : vector<2x96xf32> to vector<2x32xf32>
    %88 = vector.extract_strided_slice %85 {offsets = [0, 64], sizes = [2, 32], strides = [1, 1]} : vector<2x96xf32> to vector<2x32xf32>
    %89 = vector.extract_strided_slice %73 {offsets = [0, 96], sizes = [2, 32], strides = [1, 1]} : vector<2x128xf32> to vector<2x32xf32>
    %90 = math.tanh %89 : vector<2x32xf32>
    %91 = arith.mulf %87, %38 : vector<2x32xf32>
    %92 = arith.mulf %86, %90 : vector<2x32xf32>
    %93 = arith.addf %91, %92 : vector<2x32xf32>
    %94 = math.tanh %93 : vector<2x32xf32>
    %95 = arith.mulf %88, %94 : vector<2x32xf32>
    %96 = vector.extract_strided_slice %79 {offsets = [0, 0], sizes = [2, 96], strides = [1, 1]} : vector<2x128xf32> to vector<2x96xf32>
    %97 = arith.negf %96 : vector<2x96xf32>
    %98 = math.exp %97 : vector<2x96xf32>
    %cst_30 = arith.constant 1.000000e+00 : f32
    %99 = vector.broadcast %cst_30 : f32 to vector<2x96xf32>
    %100 = arith.addf %99, %98 : vector<2x96xf32>
    %101 = arith.divf %99, %100 : vector<2x96xf32>
    %102 = vector.extract_strided_slice %101 {offsets = [0, 0], sizes = [2, 32], strides = [1, 1]} : vector<2x96xf32> to vector<2x32xf32>
    %103 = vector.extract_strided_slice %101 {offsets = [0, 32], sizes = [2, 32], strides = [1, 1]} : vector<2x96xf32> to vector<2x32xf32>
    %104 = vector.extract_strided_slice %101 {offsets = [0, 64], sizes = [2, 32], strides = [1, 1]} : vector<2x96xf32> to vector<2x32xf32>
    %105 = vector.extract_strided_slice %79 {offsets = [0, 96], sizes = [2, 32], strides = [1, 1]} : vector<2x128xf32> to vector<2x32xf32>
    %106 = math.tanh %105 : vector<2x32xf32>
    %107 = arith.mulf %103, %54 : vector<2x32xf32>
    %108 = arith.mulf %102, %106 : vector<2x32xf32>
    %109 = arith.addf %107, %108 : vector<2x32xf32>
    %110 = math.tanh %109 : vector<2x32xf32>
    %111 = arith.mulf %104, %110 : vector<2x32xf32>
    %112 = arith.index_cast %c1_i32 : i32 to index
    %c0_31 = arith.constant 0 : index
    %c0_32 = arith.constant 0 : index
    %113 = vector.load %arg14[%112, %c0_31, %c0_32] : memref<8x2x32xf32, #tpu.memory_space<vmem>>, vector<1x2x32xf32>
    %114 = vector.shape_cast %113 : vector<1x2x32xf32> to vector<2x32xf32>
    %115 = vector.shape_cast %95 : vector<2x32xf32> to vector<1x2x32xf32>
    tpu.vector_store %arg14[%112, %c0_31, %c0_32], %115 {strides = array<i32>} : memref<8x2x32xf32, #tpu.memory_space<vmem>>, vector<1x2x32xf32>,
    %116 = arith.index_cast %66 : i32 to index
    %c0_33 = arith.constant 0 : index
    %c0_34 = arith.constant 0 : index
    %117 = vector.load %arg15[%116, %c0_33, %c0_34] : memref<8x2x32xf32, #tpu.memory_space<vmem>>, vector<1x2x32xf32>
    %118 = vector.shape_cast %117 : vector<1x2x32xf32> to vector<2x32xf32>
    %119 = vector.shape_cast %111 : vector<2x32xf32> to vector<1x2x32xf32>
    tpu.vector_store %arg15[%116, %c0_33, %c0_34], %119 {strides = array<i32>} : memref<8x2x32xf32, #tpu.memory_space<vmem>>, vector<1x2x32xf32>,
    %120 = tpu.concatenate %95, %111 in 1 : vector<2x32xf32>, vector<2x32xf32> -> vector<2x64xf32>
    %c2_i32 = arith.constant 2 : i32
    %c7_i32_35 = arith.constant 7 : i32
    %121 = arith.subi %c7_i32_35, %c2_i32 : i32
    %cst_36 = arith.constant dense<0.000000e+00> : vector<2x256xf32>
    %122 = tpu.matmul %120, %8, %cst_36 {dimension_numbers = #tpu.dot_dimension_numbers<[1], [0], [0], [1], [0, 0, 1, 1], [], []>} : vector<2x64xf32>, vector<64x256xf32>, vector<2x256xf32> -> vector<2x256xf32>
    %123 = vector.extract_strided_slice %122 {offsets = [0, 0], sizes = [2, 128], strides = [1, 1]} : vector<2x256xf32> to vector<2x128xf32>
    %124 = arith.index_cast %c2_i32 : i32 to index
    %c0_37 = arith.constant 0 : index
    %c0_38 = arith.constant 0 : index
    %125 = vector.load %arg13[%124, %c0_37, %c0_38] : memref<8x2x256xf32, #tpu.memory_space<vmem>>, vector<1x2x256xf32>
    %126 = vector.shape_cast %125 : vector<1x2x256xf32> to vector<2x256xf32>
    %127 = vector.extract_strided_slice %126 {offsets = [0, 0], sizes = [2, 128], strides = [1, 1]} : vector<2x256xf32> to vector<2x128xf32>
    %128 = arith.addf %123, %127 : vector<2x128xf32>
    %129 = vector.extract_strided_slice %122 {offsets = [0, 128], sizes = [2, 128], strides = [1, 1]} : vector<2x256xf32> to vector<2x128xf32>
    %130 = arith.index_cast %121 : i32 to index
    %c0_39 = arith.constant 0 : index
    %c0_40 = arith.constant 0 : index
    %131 = vector.load %arg13[%130, %c0_39, %c0_40] : memref<8x2x256xf32, #tpu.memory_space<vmem>>, vector<1x2x256xf32>
    %132 = vector.shape_cast %131 : vector<1x2x256xf32> to vector<2x256xf32>
    %133 = vector.extract_strided_slice %132 {offsets = [0, 128], sizes = [2, 128], strides = [1, 1]} : vector<2x256xf32> to vector<2x128xf32>
    %134 = arith.addf %129, %133 : vector<2x128xf32>
    %135 = vector.extract_strided_slice %128 {offsets = [0, 0], sizes = [2, 96], strides = [1, 1]} : vector<2x128xf32> to vector<2x96xf32>
    %136 = arith.negf %135 : vector<2x96xf32>
    %137 = math.exp %136 : vector<2x96xf32>
    %cst_41 = arith.constant 1.000000e+00 : f32
    %138 = vector.broadcast %cst_41 : f32 to vector<2x96xf32>
    %139 = arith.addf %138, %137 : vector<2x96xf32>
    %140 = arith.divf %138, %139 : vector<2x96xf32>
    %141 = vector.extract_strided_slice %140 {offsets = [0, 0], sizes = [2, 32], strides = [1, 1]} : vector<2x96xf32> to vector<2x32xf32>
    %142 = vector.extract_strided_slice %140 {offsets = [0, 32], sizes = [2, 32], strides = [1, 1]} : vector<2x96xf32> to vector<2x32xf32>
    %143 = vector.extract_strided_slice %140 {offsets = [0, 64], sizes = [2, 32], strides = [1, 1]} : vector<2x96xf32> to vector<2x32xf32>
    %144 = vector.extract_strided_slice %128 {offsets = [0, 96], sizes = [2, 32], strides = [1, 1]} : vector<2x128xf32> to vector<2x32xf32>
    %145 = math.tanh %144 : vector<2x32xf32>
    %146 = arith.mulf %142, %93 : vector<2x32xf32>
    %147 = arith.mulf %141, %145 : vector<2x32xf32>
    %148 = arith.addf %146, %147 : vector<2x32xf32>
    %149 = math.tanh %148 : vector<2x32xf32>
    %150 = arith.mulf %143, %149 : vector<2x32xf32>
    %151 = vector.extract_strided_slice %134 {offsets = [0, 0], sizes = [2, 96], strides = [1, 1]} : vector<2x128xf32> to vector<2x96xf32>
    %152 = arith.negf %151 : vector<2x96xf32>
    %153 = math.exp %152 : vector<2x96xf32>
    %cst_42 = arith.constant 1.000000e+00 : f32
    %154 = vector.broadcast %cst_42 : f32 to vector<2x96xf32>
    %155 = arith.addf %154, %153 : vector<2x96xf32>
    %156 = arith.divf %154, %155 : vector<2x96xf32>
    %157 = vector.extract_strided_slice %156 {offsets = [0, 0], sizes = [2, 32], strides = [1, 1]} : vector<2x96xf32> to vector<2x32xf32>
    %158 = vector.extract_strided_slice %156 {offsets = [0, 32], sizes = [2, 32], strides = [1, 1]} : vector<2x96xf32> to vector<2x32xf32>
    %159 = vector.extract_strided_slice %156 {offsets = [0, 64], sizes = [2, 32], strides = [1, 1]} : vector<2x96xf32> to vector<2x32xf32>
    %160 = vector.extract_strided_slice %134 {offsets = [0, 96], sizes = [2, 32], strides = [1, 1]} : vector<2x128xf32> to vector<2x32xf32>
    %161 = math.tanh %160 : vector<2x32xf32>
    %162 = arith.mulf %158, %109 : vector<2x32xf32>
    %163 = arith.mulf %157, %161 : vector<2x32xf32>
    %164 = arith.addf %162, %163 : vector<2x32xf32>
    %165 = math.tanh %164 : vector<2x32xf32>
    %166 = arith.mulf %159, %165 : vector<2x32xf32>
    %167 = arith.index_cast %c2_i32 : i32 to index
    %c0_43 = arith.constant 0 : index
    %c0_44 = arith.constant 0 : index
    %168 = vector.load %arg14[%167, %c0_43, %c0_44] : memref<8x2x32xf32, #tpu.memory_space<vmem>>, vector<1x2x32xf32>
    %169 = vector.shape_cast %168 : vector<1x2x32xf32> to vector<2x32xf32>
    %170 = vector.shape_cast %150 : vector<2x32xf32> to vector<1x2x32xf32>
    tpu.vector_store %arg14[%167, %c0_43, %c0_44], %170 {strides = array<i32>} : memref<8x2x32xf32, #tpu.memory_space<vmem>>, vector<1x2x32xf32>,
    %171 = arith.index_cast %121 : i32 to index
    %c0_45 = arith.constant 0 : index
    %c0_46 = arith.constant 0 : index
    %172 = vector.load %arg15[%171, %c0_45, %c0_46] : memref<8x2x32xf32, #tpu.memory_space<vmem>>, vector<1x2x32xf32>
    %173 = vector.shape_cast %172 : vector<1x2x32xf32> to vector<2x32xf32>
    %174 = vector.shape_cast %166 : vector<2x32xf32> to vector<1x2x32xf32>
    tpu.vector_store %arg15[%171, %c0_45, %c0_46], %174 {strides = array<i32>} : memref<8x2x32xf32, #tpu.memory_space<vmem>>, vector<1x2x32xf32>,
    %175 = tpu.concatenate %150, %166 in 1 : vector<2x32xf32>, vector<2x32xf32> -> vector<2x64xf32>
    %c3_i32 = arith.constant 3 : i32
    %c7_i32_47 = arith.constant 7 : i32
    %176 = arith.subi %c7_i32_47, %c3_i32 : i32
    %cst_48 = arith.constant dense<0.000000e+00> : vector<2x256xf32>
    %177 = tpu.matmul %175, %8, %cst_48 {dimension_numbers = #tpu.dot_dimension_numbers<[1], [0], [0], [1], [0, 0, 1, 1], [], []>} : vector<2x64xf32>, vector<64x256xf32>, vector<2x256xf32> -> vector<2x256xf32>
    %178 = vector.extract_strided_slice %177 {offsets = [0, 0], sizes = [2, 128], strides = [1, 1]} : vector<2x256xf32> to vector<2x128xf32>
    %179 = arith.index_cast %c3_i32 : i32 to index
    %c0_49 = arith.constant 0 : index
    %c0_50 = arith.constant 0 : index
    %180 = vector.load %arg13[%179, %c0_49, %c0_50] : memref<8x2x256xf32, #tpu.memory_space<vmem>>, vector<1x2x256xf32>
    %181 = vector.shape_cast %180 : vector<1x2x256xf32> to vector<2x256xf32>
    %182 = vector.extract_strided_slice %181 {offsets = [0, 0], sizes = [2, 128], strides = [1, 1]} : vector<2x256xf32> to vector<2x128xf32>
    %183 = arith.addf %178, %182 : vector<2x128xf32>
    %184 = vector.extract_strided_slice %177 {offsets = [0, 128], sizes = [2, 128], strides = [1, 1]} : vector<2x256xf32> to vector<2x128xf32>
    %185 = arith.index_cast %176 : i32 to index
    %c0_51 = arith.constant 0 : index
    %c0_52 = arith.constant 0 : index
    %186 = vector.load %arg13[%185, %c0_51, %c0_52] : memref<8x2x256xf32, #tpu.memory_space<vmem>>, vector<1x2x256xf32>
    %187 = vector.shape_cast %186 : vector<1x2x256xf32> to vector<2x256xf32>
    %188 = vector.extract_strided_slice %187 {offsets = [0, 128], sizes = [2, 128], strides = [1, 1]} : vector<2x256xf32> to vector<2x128xf32>
    %189 = arith.addf %184, %188 : vector<2x128xf32>
    %190 = vector.extract_strided_slice %183 {offsets = [0, 0], sizes = [2, 96], strides = [1, 1]} : vector<2x128xf32> to vector<2x96xf32>
    %191 = arith.negf %190 : vector<2x96xf32>
    %192 = math.exp %191 : vector<2x96xf32>
    %cst_53 = arith.constant 1.000000e+00 : f32
    %193 = vector.broadcast %cst_53 : f32 to vector<2x96xf32>
    %194 = arith.addf %193, %192 : vector<2x96xf32>
    %195 = arith.divf %193, %194 : vector<2x96xf32>
    %196 = vector.extract_strided_slice %195 {offsets = [0, 0], sizes = [2, 32], strides = [1, 1]} : vector<2x96xf32> to vector<2x32xf32>
    %197 = vector.extract_strided_slice %195 {offsets = [0, 32], sizes = [2, 32], strides = [1, 1]} : vector<2x96xf32> to vector<2x32xf32>
    %198 = vector.extract_strided_slice %195 {offsets = [0, 64], sizes = [2, 32], strides = [1, 1]} : vector<2x96xf32> to vector<2x32xf32>
    %199 = vector.extract_strided_slice %183 {offsets = [0, 96], sizes = [2, 32], strides = [1, 1]} : vector<2x128xf32> to vector<2x32xf32>
    %200 = math.tanh %199 : vector<2x32xf32>
    %201 = arith.mulf %197, %148 : vector<2x32xf32>
    %202 = arith.mulf %196, %200 : vector<2x32xf32>
    %203 = arith.addf %201, %202 : vector<2x32xf32>
    %204 = math.tanh %203 : vector<2x32xf32>
    %205 = arith.mulf %198, %204 : vector<2x32xf32>
    %206 = vector.extract_strided_slice %189 {offsets = [0, 0], sizes = [2, 96], strides = [1, 1]} : vector<2x128xf32> to vector<2x96xf32>
    %207 = arith.negf %206 : vector<2x96xf32>
    %208 = math.exp %207 : vector<2x96xf32>
    %cst_54 = arith.constant 1.000000e+00 : f32
    %209 = vector.broadcast %cst_54 : f32 to vector<2x96xf32>
    %210 = arith.addf %209, %208 : vector<2x96xf32>
    %211 = arith.divf %209, %210 : vector<2x96xf32>
    %212 = vector.extract_strided_slice %211 {offsets = [0, 0], sizes = [2, 32], strides = [1, 1]} : vector<2x96xf32> to vector<2x32xf32>
    %213 = vector.extract_strided_slice %211 {offsets = [0, 32], sizes = [2, 32], strides = [1, 1]} : vector<2x96xf32> to vector<2x32xf32>
    %214 = vector.extract_strided_slice %211 {offsets = [0, 64], sizes = [2, 32], strides = [1, 1]} : vector<2x96xf32> to vector<2x32xf32>
    %215 = vector.extract_strided_slice %189 {offsets = [0, 96], sizes = [2, 32], strides = [1, 1]} : vector<2x128xf32> to vector<2x32xf32>
    %216 = math.tanh %215 : vector<2x32xf32>
    %217 = arith.mulf %213, %164 : vector<2x32xf32>
    %218 = arith.mulf %212, %216 : vector<2x32xf32>
    %219 = arith.addf %217, %218 : vector<2x32xf32>
    %220 = math.tanh %219 : vector<2x32xf32>
    %221 = arith.mulf %214, %220 : vector<2x32xf32>
    %222 = arith.index_cast %c3_i32 : i32 to index
    %c0_55 = arith.constant 0 : index
    %c0_56 = arith.constant 0 : index
    %223 = vector.load %arg14[%222, %c0_55, %c0_56] : memref<8x2x32xf32, #tpu.memory_space<vmem>>, vector<1x2x32xf32>
    %224 = vector.shape_cast %223 : vector<1x2x32xf32> to vector<2x32xf32>
    %225 = vector.shape_cast %205 : vector<2x32xf32> to vector<1x2x32xf32>
    tpu.vector_store %arg14[%222, %c0_55, %c0_56], %225 {strides = array<i32>} : memref<8x2x32xf32, #tpu.memory_space<vmem>>, vector<1x2x32xf32>,
    %226 = arith.index_cast %176 : i32 to index
    %c0_57 = arith.constant 0 : index
    %c0_58 = arith.constant 0 : index
    %227 = vector.load %arg15[%226, %c0_57, %c0_58] : memref<8x2x32xf32, #tpu.memory_space<vmem>>, vector<1x2x32xf32>
    %228 = vector.shape_cast %227 : vector<1x2x32xf32> to vector<2x32xf32>
    %229 = vector.shape_cast %221 : vector<2x32xf32> to vector<1x2x32xf32>
    tpu.vector_store %arg15[%226, %c0_57, %c0_58], %229 {strides = array<i32>} : memref<8x2x32xf32, #tpu.memory_space<vmem>>, vector<1x2x32xf32>,
    %230 = tpu.concatenate %205, %221 in 1 : vector<2x32xf32>, vector<2x32xf32> -> vector<2x64xf32>
    %c4_i32 = arith.constant 4 : i32
    %c7_i32_59 = arith.constant 7 : i32
    %231 = arith.subi %c7_i32_59, %c4_i32 : i32
    %cst_60 = arith.constant dense<0.000000e+00> : vector<2x256xf32>
    %232 = tpu.matmul %230, %8, %cst_60 {dimension_numbers = #tpu.dot_dimension_numbers<[1], [0], [0], [1], [0, 0, 1, 1], [], []>} : vector<2x64xf32>, vector<64x256xf32>, vector<2x256xf32> -> vector<2x256xf32>
    %233 = vector.extract_strided_slice %232 {offsets = [0, 0], sizes = [2, 128], strides = [1, 1]} : vector<2x256xf32> to vector<2x128xf32>
    %234 = arith.index_cast %c4_i32 : i32 to index
    %c0_61 = arith.constant 0 : index
    %c0_62 = arith.constant 0 : index
    %235 = vector.load %arg13[%234, %c0_61, %c0_62] : memref<8x2x256xf32, #tpu.memory_space<vmem>>, vector<1x2x256xf32>
    %236 = vector.shape_cast %235 : vector<1x2x256xf32> to vector<2x256xf32>
    %237 = vector.extract_strided_slice %236 {offsets = [0, 0], sizes = [2, 128], strides = [1, 1]} : vector<2x256xf32> to vector<2x128xf32>
    %238 = arith.addf %233, %237 : vector<2x128xf32>
    %239 = vector.extract_strided_slice %232 {offsets = [0, 128], sizes = [2, 128], strides = [1, 1]} : vector<2x256xf32> to vector<2x128xf32>
    %240 = arith.index_cast %231 : i32 to index
    %c0_63 = arith.constant 0 : index
    %c0_64 = arith.constant 0 : index
    %241 = vector.load %arg13[%240, %c0_63, %c0_64] : memref<8x2x256xf32, #tpu.memory_space<vmem>>, vector<1x2x256xf32>
    %242 = vector.shape_cast %241 : vector<1x2x256xf32> to vector<2x256xf32>
    %243 = vector.extract_strided_slice %242 {offsets = [0, 128], sizes = [2, 128], strides = [1, 1]} : vector<2x256xf32> to vector<2x128xf32>
    %244 = arith.addf %239, %243 : vector<2x128xf32>
    %245 = vector.extract_strided_slice %238 {offsets = [0, 0], sizes = [2, 96], strides = [1, 1]} : vector<2x128xf32> to vector<2x96xf32>
    %246 = arith.negf %245 : vector<2x96xf32>
    %247 = math.exp %246 : vector<2x96xf32>
    %cst_65 = arith.constant 1.000000e+00 : f32
    %248 = vector.broadcast %cst_65 : f32 to vector<2x96xf32>
    %249 = arith.addf %248, %247 : vector<2x96xf32>
    %250 = arith.divf %248, %249 : vector<2x96xf32>
    %251 = vector.extract_strided_slice %250 {offsets = [0, 0], sizes = [2, 32], strides = [1, 1]} : vector<2x96xf32> to vector<2x32xf32>
    %252 = vector.extract_strided_slice %250 {offsets = [0, 32], sizes = [2, 32], strides = [1, 1]} : vector<2x96xf32> to vector<2x32xf32>
    %253 = vector.extract_strided_slice %250 {offsets = [0, 64], sizes = [2, 32], strides = [1, 1]} : vector<2x96xf32> to vector<2x32xf32>
    %254 = vector.extract_strided_slice %238 {offsets = [0, 96], sizes = [2, 32], strides = [1, 1]} : vector<2x128xf32> to vector<2x32xf32>
    %255 = math.tanh %254 : vector<2x32xf32>
    %256 = arith.mulf %252, %203 : vector<2x32xf32>
    %257 = arith.mulf %251, %255 : vector<2x32xf32>
    %258 = arith.addf %256, %257 : vector<2x32xf32>
    %259 = math.tanh %258 : vector<2x32xf32>
    %260 = arith.mulf %253, %259 : vector<2x32xf32>
    %261 = vector.extract_strided_slice %244 {offsets = [0, 0], sizes = [2, 96], strides = [1, 1]} : vector<2x128xf32> to vector<2x96xf32>
    %262 = arith.negf %261 : vector<2x96xf32>
    %263 = math.exp %262 : vector<2x96xf32>
    %cst_66 = arith.constant 1.000000e+00 : f32
    %264 = vector.broadcast %cst_66 : f32 to vector<2x96xf32>
    %265 = arith.addf %264, %263 : vector<2x96xf32>
    %266 = arith.divf %264, %265 : vector<2x96xf32>
    %267 = vector.extract_strided_slice %266 {offsets = [0, 0], sizes = [2, 32], strides = [1, 1]} : vector<2x96xf32> to vector<2x32xf32>
    %268 = vector.extract_strided_slice %266 {offsets = [0, 32], sizes = [2, 32], strides = [1, 1]} : vector<2x96xf32> to vector<2x32xf32>
    %269 = vector.extract_strided_slice %266 {offsets = [0, 64], sizes = [2, 32], strides = [1, 1]} : vector<2x96xf32> to vector<2x32xf32>
    %270 = vector.extract_strided_slice %244 {offsets = [0, 96], sizes = [2, 32], strides = [1, 1]} : vector<2x128xf32> to vector<2x32xf32>
    %271 = math.tanh %270 : vector<2x32xf32>
    %272 = arith.mulf %268, %219 : vector<2x32xf32>
    %273 = arith.mulf %267, %271 : vector<2x32xf32>
    %274 = arith.addf %272, %273 : vector<2x32xf32>
    %275 = math.tanh %274 : vector<2x32xf32>
    %276 = arith.mulf %269, %275 : vector<2x32xf32>
    %277 = arith.index_cast %c4_i32 : i32 to index
    %c0_67 = arith.constant 0 : index
    %c0_68 = arith.constant 0 : index
    %278 = vector.load %arg14[%277, %c0_67, %c0_68] : memref<8x2x32xf32, #tpu.memory_space<vmem>>, vector<1x2x32xf32>
    %279 = vector.shape_cast %278 : vector<1x2x32xf32> to vector<2x32xf32>
    %280 = vector.shape_cast %260 : vector<2x32xf32> to vector<1x2x32xf32>
    tpu.vector_store %arg14[%277, %c0_67, %c0_68], %280 {strides = array<i32>} : memref<8x2x32xf32, #tpu.memory_space<vmem>>, vector<1x2x32xf32>,
    %281 = arith.index_cast %231 : i32 to index
    %c0_69 = arith.constant 0 : index
    %c0_70 = arith.constant 0 : index
    %282 = vector.load %arg15[%281, %c0_69, %c0_70] : memref<8x2x32xf32, #tpu.memory_space<vmem>>, vector<1x2x32xf32>
    %283 = vector.shape_cast %282 : vector<1x2x32xf32> to vector<2x32xf32>
    %284 = vector.shape_cast %276 : vector<2x32xf32> to vector<1x2x32xf32>
    tpu.vector_store %arg15[%281, %c0_69, %c0_70], %284 {strides = array<i32>} : memref<8x2x32xf32, #tpu.memory_space<vmem>>, vector<1x2x32xf32>,
    %285 = tpu.concatenate %260, %276 in 1 : vector<2x32xf32>, vector<2x32xf32> -> vector<2x64xf32>
    %c5_i32 = arith.constant 5 : i32
    %c7_i32_71 = arith.constant 7 : i32
    %286 = arith.subi %c7_i32_71, %c5_i32 : i32
    %cst_72 = arith.constant dense<0.000000e+00> : vector<2x256xf32>
    %287 = tpu.matmul %285, %8, %cst_72 {dimension_numbers = #tpu.dot_dimension_numbers<[1], [0], [0], [1], [0, 0, 1, 1], [], []>} : vector<2x64xf32>, vector<64x256xf32>, vector<2x256xf32> -> vector<2x256xf32>
    %288 = vector.extract_strided_slice %287 {offsets = [0, 0], sizes = [2, 128], strides = [1, 1]} : vector<2x256xf32> to vector<2x128xf32>
    %289 = arith.index_cast %c5_i32 : i32 to index
    %c0_73 = arith.constant 0 : index
    %c0_74 = arith.constant 0 : index
    %290 = vector.load %arg13[%289, %c0_73, %c0_74] : memref<8x2x256xf32, #tpu.memory_space<vmem>>, vector<1x2x256xf32>
    %291 = vector.shape_cast %290 : vector<1x2x256xf32> to vector<2x256xf32>
    %292 = vector.extract_strided_slice %291 {offsets = [0, 0], sizes = [2, 128], strides = [1, 1]} : vector<2x256xf32> to vector<2x128xf32>
    %293 = arith.addf %288, %292 : vector<2x128xf32>
    %294 = vector.extract_strided_slice %287 {offsets = [0, 128], sizes = [2, 128], strides = [1, 1]} : vector<2x256xf32> to vector<2x128xf32>
    %295 = arith.index_cast %286 : i32 to index
    %c0_75 = arith.constant 0 : index
    %c0_76 = arith.constant 0 : index
    %296 = vector.load %arg13[%295, %c0_75, %c0_76] : memref<8x2x256xf32, #tpu.memory_space<vmem>>, vector<1x2x256xf32>
    %297 = vector.shape_cast %296 : vector<1x2x256xf32> to vector<2x256xf32>
    %298 = vector.extract_strided_slice %297 {offsets = [0, 128], sizes = [2, 128], strides = [1, 1]} : vector<2x256xf32> to vector<2x128xf32>
    %299 = arith.addf %294, %298 : vector<2x128xf32>
    %300 = vector.extract_strided_slice %293 {offsets = [0, 0], sizes = [2, 96], strides = [1, 1]} : vector<2x128xf32> to vector<2x96xf32>
    %301 = arith.negf %300 : vector<2x96xf32>
    %302 = math.exp %301 : vector<2x96xf32>
    %cst_77 = arith.constant 1.000000e+00 : f32
    %303 = vector.broadcast %cst_77 : f32 to vector<2x96xf32>
    %304 = arith.addf %303, %302 : vector<2x96xf32>
    %305 = arith.divf %303, %304 : vector<2x96xf32>
    %306 = vector.extract_strided_slice %305 {offsets = [0, 0], sizes = [2, 32], strides = [1, 1]} : vector<2x96xf32> to vector<2x32xf32>
    %307 = vector.extract_strided_slice %305 {offsets = [0, 32], sizes = [2, 32], strides = [1, 1]} : vector<2x96xf32> to vector<2x32xf32>
    %308 = vector.extract_strided_slice %305 {offsets = [0, 64], sizes = [2, 32], strides = [1, 1]} : vector<2x96xf32> to vector<2x32xf32>
    %309 = vector.extract_strided_slice %293 {offsets = [0, 96], sizes = [2, 32], strides = [1, 1]} : vector<2x128xf32> to vector<2x32xf32>
    %310 = math.tanh %309 : vector<2x32xf32>
    %311 = arith.mulf %307, %258 : vector<2x32xf32>
    %312 = arith.mulf %306, %310 : vector<2x32xf32>
    %313 = arith.addf %311, %312 : vector<2x32xf32>
    %314 = math.tanh %313 : vector<2x32xf32>
    %315 = arith.mulf %308, %314 : vector<2x32xf32>
    %316 = vector.extract_strided_slice %299 {offsets = [0, 0], sizes = [2, 96], strides = [1, 1]} : vector<2x128xf32> to vector<2x96xf32>
    %317 = arith.negf %316 : vector<2x96xf32>
    %318 = math.exp %317 : vector<2x96xf32>
    %cst_78 = arith.constant 1.000000e+00 : f32
    %319 = vector.broadcast %cst_78 : f32 to vector<2x96xf32>
    %320 = arith.addf %319, %318 : vector<2x96xf32>
    %321 = arith.divf %319, %320 : vector<2x96xf32>
    %322 = vector.extract_strided_slice %321 {offsets = [0, 0], sizes = [2, 32], strides = [1, 1]} : vector<2x96xf32> to vector<2x32xf32>
    %323 = vector.extract_strided_slice %321 {offsets = [0, 32], sizes = [2, 32], strides = [1, 1]} : vector<2x96xf32> to vector<2x32xf32>
    %324 = vector.extract_strided_slice %321 {offsets = [0, 64], sizes = [2, 32], strides = [1, 1]} : vector<2x96xf32> to vector<2x32xf32>
    %325 = vector.extract_strided_slice %299 {offsets = [0, 96], sizes = [2, 32], strides = [1, 1]} : vector<2x128xf32> to vector<2x32xf32>
    %326 = math.tanh %325 : vector<2x32xf32>
    %327 = arith.mulf %323, %274 : vector<2x32xf32>
    %328 = arith.mulf %322, %326 : vector<2x32xf32>
    %329 = arith.addf %327, %328 : vector<2x32xf32>
    %330 = math.tanh %329 : vector<2x32xf32>
    %331 = arith.mulf %324, %330 : vector<2x32xf32>
    %332 = arith.index_cast %c5_i32 : i32 to index
    %c0_79 = arith.constant 0 : index
    %c0_80 = arith.constant 0 : index
    %333 = vector.load %arg14[%332, %c0_79, %c0_80] : memref<8x2x32xf32, #tpu.memory_space<vmem>>, vector<1x2x32xf32>
    %334 = vector.shape_cast %333 : vector<1x2x32xf32> to vector<2x32xf32>
    %335 = vector.shape_cast %315 : vector<2x32xf32> to vector<1x2x32xf32>
    tpu.vector_store %arg14[%332, %c0_79, %c0_80], %335 {strides = array<i32>} : memref<8x2x32xf32, #tpu.memory_space<vmem>>, vector<1x2x32xf32>,
    %336 = arith.index_cast %286 : i32 to index
    %c0_81 = arith.constant 0 : index
    %c0_82 = arith.constant 0 : index
    %337 = vector.load %arg15[%336, %c0_81, %c0_82] : memref<8x2x32xf32, #tpu.memory_space<vmem>>, vector<1x2x32xf32>
    %338 = vector.shape_cast %337 : vector<1x2x32xf32> to vector<2x32xf32>
    %339 = vector.shape_cast %331 : vector<2x32xf32> to vector<1x2x32xf32>
    tpu.vector_store %arg15[%336, %c0_81, %c0_82], %339 {strides = array<i32>} : memref<8x2x32xf32, #tpu.memory_space<vmem>>, vector<1x2x32xf32>,
    %340 = tpu.concatenate %315, %331 in 1 : vector<2x32xf32>, vector<2x32xf32> -> vector<2x64xf32>
    %c6_i32 = arith.constant 6 : i32
    %c7_i32_83 = arith.constant 7 : i32
    %341 = arith.subi %c7_i32_83, %c6_i32 : i32
    %cst_84 = arith.constant dense<0.000000e+00> : vector<2x256xf32>
    %342 = tpu.matmul %340, %8, %cst_84 {dimension_numbers = #tpu.dot_dimension_numbers<[1], [0], [0], [1], [0, 0, 1, 1], [], []>} : vector<2x64xf32>, vector<64x256xf32>, vector<2x256xf32> -> vector<2x256xf32>
    %343 = vector.extract_strided_slice %342 {offsets = [0, 0], sizes = [2, 128], strides = [1, 1]} : vector<2x256xf32> to vector<2x128xf32>
    %344 = arith.index_cast %c6_i32 : i32 to index
    %c0_85 = arith.constant 0 : index
    %c0_86 = arith.constant 0 : index
    %345 = vector.load %arg13[%344, %c0_85, %c0_86] : memref<8x2x256xf32, #tpu.memory_space<vmem>>, vector<1x2x256xf32>
    %346 = vector.shape_cast %345 : vector<1x2x256xf32> to vector<2x256xf32>
    %347 = vector.extract_strided_slice %346 {offsets = [0, 0], sizes = [2, 128], strides = [1, 1]} : vector<2x256xf32> to vector<2x128xf32>
    %348 = arith.addf %343, %347 : vector<2x128xf32>
    %349 = vector.extract_strided_slice %342 {offsets = [0, 128], sizes = [2, 128], strides = [1, 1]} : vector<2x256xf32> to vector<2x128xf32>
    %350 = arith.index_cast %341 : i32 to index
    %c0_87 = arith.constant 0 : index
    %c0_88 = arith.constant 0 : index
    %351 = vector.load %arg13[%350, %c0_87, %c0_88] : memref<8x2x256xf32, #tpu.memory_space<vmem>>, vector<1x2x256xf32>
    %352 = vector.shape_cast %351 : vector<1x2x256xf32> to vector<2x256xf32>
    %353 = vector.extract_strided_slice %352 {offsets = [0, 128], sizes = [2, 128], strides = [1, 1]} : vector<2x256xf32> to vector<2x128xf32>
    %354 = arith.addf %349, %353 : vector<2x128xf32>
    %355 = vector.extract_strided_slice %348 {offsets = [0, 0], sizes = [2, 96], strides = [1, 1]} : vector<2x128xf32> to vector<2x96xf32>
    %356 = arith.negf %355 : vector<2x96xf32>
    %357 = math.exp %356 : vector<2x96xf32>
    %cst_89 = arith.constant 1.000000e+00 : f32
    %358 = vector.broadcast %cst_89 : f32 to vector<2x96xf32>
    %359 = arith.addf %358, %357 : vector<2x96xf32>
    %360 = arith.divf %358, %359 : vector<2x96xf32>
    %361 = vector.extract_strided_slice %360 {offsets = [0, 0], sizes = [2, 32], strides = [1, 1]} : vector<2x96xf32> to vector<2x32xf32>
    %362 = vector.extract_strided_slice %360 {offsets = [0, 32], sizes = [2, 32], strides = [1, 1]} : vector<2x96xf32> to vector<2x32xf32>
    %363 = vector.extract_strided_slice %360 {offsets = [0, 64], sizes = [2, 32], strides = [1, 1]} : vector<2x96xf32> to vector<2x32xf32>
    %364 = vector.extract_strided_slice %348 {offsets = [0, 96], sizes = [2, 32], strides = [1, 1]} : vector<2x128xf32> to vector<2x32xf32>
    %365 = math.tanh %364 : vector<2x32xf32>
    %366 = arith.mulf %362, %313 : vector<2x32xf32>
    %367 = arith.mulf %361, %365 : vector<2x32xf32>
    %368 = arith.addf %366, %367 : vector<2x32xf32>
    %369 = math.tanh %368 : vector<2x32xf32>
    %370 = arith.mulf %363, %369 : vector<2x32xf32>
    %371 = vector.extract_strided_slice %354 {offsets = [0, 0], sizes = [2, 96], strides = [1, 1]} : vector<2x128xf32> to vector<2x96xf32>
    %372 = arith.negf %371 : vector<2x96xf32>
    %373 = math.exp %372 : vector<2x96xf32>
    %cst_90 = arith.constant 1.000000e+00 : f32
    %374 = vector.broadcast %cst_90 : f32 to vector<2x96xf32>
    %375 = arith.addf %374, %373 : vector<2x96xf32>
    %376 = arith.divf %374, %375 : vector<2x96xf32>
    %377 = vector.extract_strided_slice %376 {offsets = [0, 0], sizes = [2, 32], strides = [1, 1]} : vector<2x96xf32> to vector<2x32xf32>
    %378 = vector.extract_strided_slice %376 {offsets = [0, 32], sizes = [2, 32], strides = [1, 1]} : vector<2x96xf32> to vector<2x32xf32>
    %379 = vector.extract_strided_slice %376 {offsets = [0, 64], sizes = [2, 32], strides = [1, 1]} : vector<2x96xf32> to vector<2x32xf32>
    %380 = vector.extract_strided_slice %354 {offsets = [0, 96], sizes = [2, 32], strides = [1, 1]} : vector<2x128xf32> to vector<2x32xf32>
    %381 = math.tanh %380 : vector<2x32xf32>
    %382 = arith.mulf %378, %329 : vector<2x32xf32>
    %383 = arith.mulf %377, %381 : vector<2x32xf32>
    %384 = arith.addf %382, %383 : vector<2x32xf32>
    %385 = math.tanh %384 : vector<2x32xf32>
    %386 = arith.mulf %379, %385 : vector<2x32xf32>
    %387 = arith.index_cast %c6_i32 : i32 to index
    %c0_91 = arith.constant 0 : index
    %c0_92 = arith.constant 0 : index
    %388 = vector.load %arg14[%387, %c0_91, %c0_92] : memref<8x2x32xf32, #tpu.memory_space<vmem>>, vector<1x2x32xf32>
    %389 = vector.shape_cast %388 : vector<1x2x32xf32> to vector<2x32xf32>
    %390 = vector.shape_cast %370 : vector<2x32xf32> to vector<1x2x32xf32>
    tpu.vector_store %arg14[%387, %c0_91, %c0_92], %390 {strides = array<i32>} : memref<8x2x32xf32, #tpu.memory_space<vmem>>, vector<1x2x32xf32>,
    %391 = arith.index_cast %341 : i32 to index
    %c0_93 = arith.constant 0 : index
    %c0_94 = arith.constant 0 : index
    %392 = vector.load %arg15[%391, %c0_93, %c0_94] : memref<8x2x32xf32, #tpu.memory_space<vmem>>, vector<1x2x32xf32>
    %393 = vector.shape_cast %392 : vector<1x2x32xf32> to vector<2x32xf32>
    %394 = vector.shape_cast %386 : vector<2x32xf32> to vector<1x2x32xf32>
    tpu.vector_store %arg15[%391, %c0_93, %c0_94], %394 {strides = array<i32>} : memref<8x2x32xf32, #tpu.memory_space<vmem>>, vector<1x2x32xf32>,
    %395 = tpu.concatenate %370, %386 in 1 : vector<2x32xf32>, vector<2x32xf32> -> vector<2x64xf32>
    %c7_i32_95 = arith.constant 7 : i32
    %c7_i32_96 = arith.constant 7 : i32
    %396 = arith.subi %c7_i32_96, %c7_i32_95 : i32
    %cst_97 = arith.constant dense<0.000000e+00> : vector<2x256xf32>
    %397 = tpu.matmul %395, %8, %cst_97 {dimension_numbers = #tpu.dot_dimension_numbers<[1], [0], [0], [1], [0, 0, 1, 1], [], []>} : vector<2x64xf32>, vector<64x256xf32>, vector<2x256xf32> -> vector<2x256xf32>
    %398 = vector.extract_strided_slice %397 {offsets = [0, 0], sizes = [2, 128], strides = [1, 1]} : vector<2x256xf32> to vector<2x128xf32>
    %399 = arith.index_cast %c7_i32_95 : i32 to index
    %c0_98 = arith.constant 0 : index
    %c0_99 = arith.constant 0 : index
    %400 = vector.load %arg13[%399, %c0_98, %c0_99] : memref<8x2x256xf32, #tpu.memory_space<vmem>>, vector<1x2x256xf32>
    %401 = vector.shape_cast %400 : vector<1x2x256xf32> to vector<2x256xf32>
    %402 = vector.extract_strided_slice %401 {offsets = [0, 0], sizes = [2, 128], strides = [1, 1]} : vector<2x256xf32> to vector<2x128xf32>
    %403 = arith.addf %398, %402 : vector<2x128xf32>
    %404 = vector.extract_strided_slice %397 {offsets = [0, 128], sizes = [2, 128], strides = [1, 1]} : vector<2x256xf32> to vector<2x128xf32>
    %405 = arith.index_cast %396 : i32 to index
    %c0_100 = arith.constant 0 : index
    %c0_101 = arith.constant 0 : index
    %406 = vector.load %arg13[%405, %c0_100, %c0_101] : memref<8x2x256xf32, #tpu.memory_space<vmem>>, vector<1x2x256xf32>
    %407 = vector.shape_cast %406 : vector<1x2x256xf32> to vector<2x256xf32>
    %408 = vector.extract_strided_slice %407 {offsets = [0, 128], sizes = [2, 128], strides = [1, 1]} : vector<2x256xf32> to vector<2x128xf32>
    %409 = arith.addf %404, %408 : vector<2x128xf32>
    %410 = vector.extract_strided_slice %403 {offsets = [0, 0], sizes = [2, 96], strides = [1, 1]} : vector<2x128xf32> to vector<2x96xf32>
    %411 = arith.negf %410 : vector<2x96xf32>
    %412 = math.exp %411 : vector<2x96xf32>
    %cst_102 = arith.constant 1.000000e+00 : f32
    %413 = vector.broadcast %cst_102 : f32 to vector<2x96xf32>
    %414 = arith.addf %413, %412 : vector<2x96xf32>
    %415 = arith.divf %413, %414 : vector<2x96xf32>
    %416 = vector.extract_strided_slice %415 {offsets = [0, 0], sizes = [2, 32], strides = [1, 1]} : vector<2x96xf32> to vector<2x32xf32>
    %417 = vector.extract_strided_slice %415 {offsets = [0, 32], sizes = [2, 32], strides = [1, 1]} : vector<2x96xf32> to vector<2x32xf32>
    %418 = vector.extract_strided_slice %415 {offsets = [0, 64], sizes = [2, 32], strides = [1, 1]} : vector<2x96xf32> to vector<2x32xf32>
    %419 = vector.extract_strided_slice %403 {offsets = [0, 96], sizes = [2, 32], strides = [1, 1]} : vector<2x128xf32> to vector<2x32xf32>
    %420 = math.tanh %419 : vector<2x32xf32>
    %421 = arith.mulf %417, %368 : vector<2x32xf32>
    %422 = arith.mulf %416, %420 : vector<2x32xf32>
    %423 = arith.addf %421, %422 : vector<2x32xf32>
    %424 = math.tanh %423 : vector<2x32xf32>
    %425 = arith.mulf %418, %424 : vector<2x32xf32>
    %426 = vector.extract_strided_slice %409 {offsets = [0, 0], sizes = [2, 96], strides = [1, 1]} : vector<2x128xf32> to vector<2x96xf32>
    %427 = arith.negf %426 : vector<2x96xf32>
    %428 = math.exp %427 : vector<2x96xf32>
    %cst_103 = arith.constant 1.000000e+00 : f32
    %429 = vector.broadcast %cst_103 : f32 to vector<2x96xf32>
    %430 = arith.addf %429, %428 : vector<2x96xf32>
    %431 = arith.divf %429, %430 : vector<2x96xf32>
    %432 = vector.extract_strided_slice %431 {offsets = [0, 0], sizes = [2, 32], strides = [1, 1]} : vector<2x96xf32> to vector<2x32xf32>
    %433 = vector.extract_strided_slice %431 {offsets = [0, 32], sizes = [2, 32], strides = [1, 1]} : vector<2x96xf32> to vector<2x32xf32>
    %434 = vector.extract_strided_slice %431 {offsets = [0, 64], sizes = [2, 32], strides = [1, 1]} : vector<2x96xf32> to vector<2x32xf32>
    %435 = vector.extract_strided_slice %409 {offsets = [0, 96], sizes = [2, 32], strides = [1, 1]} : vector<2x128xf32> to vector<2x32xf32>
    %436 = math.tanh %435 : vector<2x32xf32>
    %437 = arith.mulf %433, %384 : vector<2x32xf32>
    %438 = arith.mulf %432, %436 : vector<2x32xf32>
    %439 = arith.addf %437, %438 : vector<2x32xf32>
    %440 = math.tanh %439 : vector<2x32xf32>
    %441 = arith.mulf %434, %440 : vector<2x32xf32>
    %442 = arith.index_cast %c7_i32_95 : i32 to index
    %c0_104 = arith.constant 0 : index
    %c0_105 = arith.constant 0 : index
    %443 = vector.load %arg14[%442, %c0_104, %c0_105] : memref<8x2x32xf32, #tpu.memory_space<vmem>>, vector<1x2x32xf32>
    %444 = vector.shape_cast %443 : vector<1x2x32xf32> to vector<2x32xf32>
    %445 = vector.shape_cast %425 : vector<2x32xf32> to vector<1x2x32xf32>
    tpu.vector_store %arg14[%442, %c0_104, %c0_105], %445 {strides = array<i32>} : memref<8x2x32xf32, #tpu.memory_space<vmem>>, vector<1x2x32xf32>,
    %446 = arith.index_cast %396 : i32 to index
    %c0_106 = arith.constant 0 : index
    %c0_107 = arith.constant 0 : index
    %447 = vector.load %arg15[%446, %c0_106, %c0_107] : memref<8x2x32xf32, #tpu.memory_space<vmem>>, vector<1x2x32xf32>
    %448 = vector.shape_cast %447 : vector<1x2x32xf32> to vector<2x32xf32>
    %449 = vector.shape_cast %441 : vector<2x32xf32> to vector<1x2x32xf32>
    tpu.vector_store %arg15[%446, %c0_106, %c0_107], %449 {strides = array<i32>} : memref<8x2x32xf32, #tpu.memory_space<vmem>>, vector<1x2x32xf32>,
    %450 = tpu.concatenate %425, %441 in 1 : vector<2x32xf32>, vector<2x32xf32> -> vector<2x64xf32>
    %c8_i32 = arith.constant 8 : i32
    %c0_108 = arith.constant 0 : index
    %c0_109 = arith.constant 0 : index
    %c0_110 = arith.constant 0 : index
    %451 = vector.load %arg14[%c0_108, %c0_109, %c0_110] : memref<8x2x32xf32, #tpu.memory_space<vmem>>, vector<8x2x32xf32>
    %452 = vector.shape_cast %451 : vector<8x2x32xf32> to vector<16x32xf32>
    %c0_111 = arith.constant 0 : index
    %c0_112 = arith.constant 0 : index
    %c0_113 = arith.constant 0 : index
    %453 = vector.load %arg15[%c0_111, %c0_112, %c0_113] : memref<8x2x32xf32, #tpu.memory_space<vmem>>, vector<8x2x32xf32>
    %454 = vector.shape_cast %453 : vector<8x2x32xf32> to vector<16x32xf32>
    %c0_114 = arith.constant 0 : index
    %c0_115 = arith.constant 0 : index
    %455 = vector.load %arg8[%c0_114, %c0_115] : memref<1x256xf32, #tpu.memory_space<vmem>>, vector<1x256xf32>
    %c0_116 = arith.constant 0 : index
    %c0_117 = arith.constant 0 : index
    %456 = vector.load %arg5[%c0_116, %c0_117] : memref<32x256xf32, #tpu.memory_space<vmem>>, vector<32x256xf32>
    %cst_118 = arith.constant dense<0.000000e+00> : vector<16x256xf32>
    %457 = tpu.matmul %452, %456, %cst_118 {dimension_numbers = #tpu.dot_dimension_numbers<[1], [0], [0], [1], [0, 0, 1, 1], [], []>} : vector<16x32xf32>, vector<32x256xf32>, vector<16x256xf32> -> vector<16x256xf32>
    %458 = vector.broadcast %455 : vector<1x256xf32> to vector<16x256xf32>
    %459 = arith.addf %458, %457 : vector<16x256xf32>
    %c0_119 = arith.constant 0 : index
    %c0_120 = arith.constant 0 : index
    %460 = vector.load %arg6[%c0_119, %c0_120] : memref<32x256xf32, #tpu.memory_space<vmem>>, vector<32x256xf32>
    %cst_121 = arith.constant dense<0.000000e+00> : vector<16x256xf32>
    %461 = tpu.matmul %454, %460, %cst_121 {dimension_numbers = #tpu.dot_dimension_numbers<[1], [0], [0], [1], [0, 0, 1, 1], [], []>} : vector<16x32xf32>, vector<32x256xf32>, vector<16x256xf32> -> vector<16x256xf32>
    %462 = arith.addf %459, %461 : vector<16x256xf32>
    %463 = vector.shape_cast %462 : vector<16x256xf32> to vector<8x2x256xf32>
    %c0_122 = arith.constant 0 : index
    %c0_123 = arith.constant 0 : index
    %c0_124 = arith.constant 0 : index
    %464 = vector.load %arg13[%c0_122, %c0_123, %c0_124] : memref<8x2x256xf32, #tpu.memory_space<vmem>>, vector<8x2x256xf32>
    tpu.vector_store %arg13[%c0_122, %c0_123, %c0_124], %463 {strides = array<i32>} : memref<8x2x256xf32, #tpu.memory_space<vmem>>, vector<8x2x256xf32>,
    %c0_125 = arith.constant 0 : index
    %c0_126 = arith.constant 0 : index
    %465 = vector.load %arg7[%c0_125, %c0_126] : memref<64x256xf32, #tpu.memory_space<vmem>>, vector<64x256xf32>
    %cst_127 = arith.constant 0.000000e+00 : f32
    %466 = vector.broadcast %cst_127 : f32 to vector<2x64xf32>
    %cst_128 = arith.constant 0.000000e+00 : f32
    %467 = vector.broadcast %cst_128 : f32 to vector<2x32xf32>
    %c0_i32_129 = arith.constant 0 : i32
    %c7_i32_130 = arith.constant 7 : i32
    %468 = arith.subi %c7_i32_130, %c0_i32_129 : i32
    %cst_131 = arith.constant dense<0.000000e+00> : vector<2x256xf32>
    %469 = tpu.matmul %466, %465, %cst_131 {dimension_numbers = #tpu.dot_dimension_numbers<[1], [0], [0], [1], [0, 0, 1, 1], [], []>} : vector<2x64xf32>, vector<64x256xf32>, vector<2x256xf32> -> vector<2x256xf32>
    %470 = vector.extract_strided_slice %469 {offsets = [0, 0], sizes = [2, 128], strides = [1, 1]} : vector<2x256xf32> to vector<2x128xf32>
    %471 = arith.index_cast %c0_i32_129 : i32 to index
    %c0_132 = arith.constant 0 : index
    %c0_133 = arith.constant 0 : index
    %472 = vector.load %arg13[%471, %c0_132, %c0_133] : memref<8x2x256xf32, #tpu.memory_space<vmem>>, vector<1x2x256xf32>
    %473 = vector.shape_cast %472 : vector<1x2x256xf32> to vector<2x256xf32>
    %474 = vector.extract_strided_slice %473 {offsets = [0, 0], sizes = [2, 128], strides = [1, 1]} : vector<2x256xf32> to vector<2x128xf32>
    %475 = arith.addf %470, %474 : vector<2x128xf32>
    %476 = vector.extract_strided_slice %469 {offsets = [0, 128], sizes = [2, 128], strides = [1, 1]} : vector<2x256xf32> to vector<2x128xf32>
    %477 = arith.index_cast %468 : i32 to index
    %c0_134 = arith.constant 0 : index
    %c0_135 = arith.constant 0 : index
    %478 = vector.load %arg13[%477, %c0_134, %c0_135] : memref<8x2x256xf32, #tpu.memory_space<vmem>>, vector<1x2x256xf32>
    %479 = vector.shape_cast %478 : vector<1x2x256xf32> to vector<2x256xf32>
    %480 = vector.extract_strided_slice %479 {offsets = [0, 128], sizes = [2, 128], strides = [1, 1]} : vector<2x256xf32> to vector<2x128xf32>
    %481 = arith.addf %476, %480 : vector<2x128xf32>
    %482 = vector.extract_strided_slice %475 {offsets = [0, 0], sizes = [2, 96], strides = [1, 1]} : vector<2x128xf32> to vector<2x96xf32>
    %483 = arith.negf %482 : vector<2x96xf32>
    %484 = math.exp %483 : vector<2x96xf32>
    %cst_136 = arith.constant 1.000000e+00 : f32
    %485 = vector.broadcast %cst_136 : f32 to vector<2x96xf32>
    %486 = arith.addf %485, %484 : vector<2x96xf32>
    %487 = arith.divf %485, %486 : vector<2x96xf32>
    %488 = vector.extract_strided_slice %487 {offsets = [0, 0], sizes = [2, 32], strides = [1, 1]} : vector<2x96xf32> to vector<2x32xf32>
    %489 = vector.extract_strided_slice %487 {offsets = [0, 32], sizes = [2, 32], strides = [1, 1]} : vector<2x96xf32> to vector<2x32xf32>
    %490 = vector.extract_strided_slice %487 {offsets = [0, 64], sizes = [2, 32], strides = [1, 1]} : vector<2x96xf32> to vector<2x32xf32>
    %491 = vector.extract_strided_slice %475 {offsets = [0, 96], sizes = [2, 32], strides = [1, 1]} : vector<2x128xf32> to vector<2x32xf32>
    %492 = math.tanh %491 : vector<2x32xf32>
    %493 = arith.mulf %489, %467 : vector<2x32xf32>
    %494 = arith.mulf %488, %492 : vector<2x32xf32>
    %495 = arith.addf %493, %494 : vector<2x32xf32>
    %496 = math.tanh %495 : vector<2x32xf32>
    %497 = arith.mulf %490, %496 : vector<2x32xf32>
    %498 = vector.extract_strided_slice %481 {offsets = [0, 0], sizes = [2, 96], strides = [1, 1]} : vector<2x128xf32> to vector<2x96xf32>
    %499 = arith.negf %498 : vector<2x96xf32>
    %500 = math.exp %499 : vector<2x96xf32>
    %cst_137 = arith.constant 1.000000e+00 : f32
    %501 = vector.broadcast %cst_137 : f32 to vector<2x96xf32>
    %502 = arith.addf %501, %500 : vector<2x96xf32>
    %503 = arith.divf %501, %502 : vector<2x96xf32>
    %504 = vector.extract_strided_slice %503 {offsets = [0, 0], sizes = [2, 32], strides = [1, 1]} : vector<2x96xf32> to vector<2x32xf32>
    %505 = vector.extract_strided_slice %503 {offsets = [0, 32], sizes = [2, 32], strides = [1, 1]} : vector<2x96xf32> to vector<2x32xf32>
    %506 = vector.extract_strided_slice %503 {offsets = [0, 64], sizes = [2, 32], strides = [1, 1]} : vector<2x96xf32> to vector<2x32xf32>
    %507 = vector.extract_strided_slice %481 {offsets = [0, 96], sizes = [2, 32], strides = [1, 1]} : vector<2x128xf32> to vector<2x32xf32>
    %508 = math.tanh %507 : vector<2x32xf32>
    %509 = arith.mulf %505, %467 : vector<2x32xf32>
    %510 = arith.mulf %504, %508 : vector<2x32xf32>
    %511 = arith.addf %509, %510 : vector<2x32xf32>
    %512 = math.tanh %511 : vector<2x32xf32>
    %513 = arith.mulf %506, %512 : vector<2x32xf32>
    %514 = arith.index_cast %c0_i32_129 : i32 to index
    %c0_138 = arith.constant 0 : index
    %c0_139 = arith.constant 0 : index
    %515 = vector.load %arg14[%514, %c0_138, %c0_139] : memref<8x2x32xf32, #tpu.memory_space<vmem>>, vector<1x2x32xf32>
    %516 = vector.shape_cast %515 : vector<1x2x32xf32> to vector<2x32xf32>
    %517 = vector.shape_cast %497 : vector<2x32xf32> to vector<1x2x32xf32>
    tpu.vector_store %arg14[%514, %c0_138, %c0_139], %517 {strides = array<i32>} : memref<8x2x32xf32, #tpu.memory_space<vmem>>, vector<1x2x32xf32>,
    %518 = arith.index_cast %468 : i32 to index
    %c0_140 = arith.constant 0 : index
    %c0_141 = arith.constant 0 : index
    %519 = vector.load %arg15[%518, %c0_140, %c0_141] : memref<8x2x32xf32, #tpu.memory_space<vmem>>, vector<1x2x32xf32>
    %520 = vector.shape_cast %519 : vector<1x2x32xf32> to vector<2x32xf32>
    %521 = vector.shape_cast %513 : vector<2x32xf32> to vector<1x2x32xf32>
    tpu.vector_store %arg15[%518, %c0_140, %c0_141], %521 {strides = array<i32>} : memref<8x2x32xf32, #tpu.memory_space<vmem>>, vector<1x2x32xf32>,
    %522 = tpu.concatenate %497, %513 in 1 : vector<2x32xf32>, vector<2x32xf32> -> vector<2x64xf32>
    %c1_i32_142 = arith.constant 1 : i32
    %c7_i32_143 = arith.constant 7 : i32
    %523 = arith.subi %c7_i32_143, %c1_i32_142 : i32
    %cst_144 = arith.constant dense<0.000000e+00> : vector<2x256xf32>
    %524 = tpu.matmul %522, %465, %cst_144 {dimension_numbers = #tpu.dot_dimension_numbers<[1], [0], [0], [1], [0, 0, 1, 1], [], []>} : vector<2x64xf32>, vector<64x256xf32>, vector<2x256xf32> -> vector<2x256xf32>
    %525 = vector.extract_strided_slice %524 {offsets = [0, 0], sizes = [2, 128], strides = [1, 1]} : vector<2x256xf32> to vector<2x128xf32>
    %526 = arith.index_cast %c1_i32_142 : i32 to index
    %c0_145 = arith.constant 0 : index
    %c0_146 = arith.constant 0 : index
    %527 = vector.load %arg13[%526, %c0_145, %c0_146] : memref<8x2x256xf32, #tpu.memory_space<vmem>>, vector<1x2x256xf32>
    %528 = vector.shape_cast %527 : vector<1x2x256xf32> to vector<2x256xf32>
    %529 = vector.extract_strided_slice %528 {offsets = [0, 0], sizes = [2, 128], strides = [1, 1]} : vector<2x256xf32> to vector<2x128xf32>
    %530 = arith.addf %525, %529 : vector<2x128xf32>
    %531 = vector.extract_strided_slice %524 {offsets = [0, 128], sizes = [2, 128], strides = [1, 1]} : vector<2x256xf32> to vector<2x128xf32>
    %532 = arith.index_cast %523 : i32 to index
    %c0_147 = arith.constant 0 : index
    %c0_148 = arith.constant 0 : index
    %533 = vector.load %arg13[%532, %c0_147, %c0_148] : memref<8x2x256xf32, #tpu.memory_space<vmem>>, vector<1x2x256xf32>
    %534 = vector.shape_cast %533 : vector<1x2x256xf32> to vector<2x256xf32>
    %535 = vector.extract_strided_slice %534 {offsets = [0, 128], sizes = [2, 128], strides = [1, 1]} : vector<2x256xf32> to vector<2x128xf32>
    %536 = arith.addf %531, %535 : vector<2x128xf32>
    %537 = vector.extract_strided_slice %530 {offsets = [0, 0], sizes = [2, 96], strides = [1, 1]} : vector<2x128xf32> to vector<2x96xf32>
    %538 = arith.negf %537 : vector<2x96xf32>
    %539 = math.exp %538 : vector<2x96xf32>
    %cst_149 = arith.constant 1.000000e+00 : f32
    %540 = vector.broadcast %cst_149 : f32 to vector<2x96xf32>
    %541 = arith.addf %540, %539 : vector<2x96xf32>
    %542 = arith.divf %540, %541 : vector<2x96xf32>
    %543 = vector.extract_strided_slice %542 {offsets = [0, 0], sizes = [2, 32], strides = [1, 1]} : vector<2x96xf32> to vector<2x32xf32>
    %544 = vector.extract_strided_slice %542 {offsets = [0, 32], sizes = [2, 32], strides = [1, 1]} : vector<2x96xf32> to vector<2x32xf32>
    %545 = vector.extract_strided_slice %542 {offsets = [0, 64], sizes = [2, 32], strides = [1, 1]} : vector<2x96xf32> to vector<2x32xf32>
    %546 = vector.extract_strided_slice %530 {offsets = [0, 96], sizes = [2, 32], strides = [1, 1]} : vector<2x128xf32> to vector<2x32xf32>
    %547 = math.tanh %546 : vector<2x32xf32>
    %548 = arith.mulf %544, %495 : vector<2x32xf32>
    %549 = arith.mulf %543, %547 : vector<2x32xf32>
    %550 = arith.addf %548, %549 : vector<2x32xf32>
    %551 = math.tanh %550 : vector<2x32xf32>
    %552 = arith.mulf %545, %551 : vector<2x32xf32>
    %553 = vector.extract_strided_slice %536 {offsets = [0, 0], sizes = [2, 96], strides = [1, 1]} : vector<2x128xf32> to vector<2x96xf32>
    %554 = arith.negf %553 : vector<2x96xf32>
    %555 = math.exp %554 : vector<2x96xf32>
    %cst_150 = arith.constant 1.000000e+00 : f32
    %556 = vector.broadcast %cst_150 : f32 to vector<2x96xf32>
    %557 = arith.addf %556, %555 : vector<2x96xf32>
    %558 = arith.divf %556, %557 : vector<2x96xf32>
    %559 = vector.extract_strided_slice %558 {offsets = [0, 0], sizes = [2, 32], strides = [1, 1]} : vector<2x96xf32> to vector<2x32xf32>
    %560 = vector.extract_strided_slice %558 {offsets = [0, 32], sizes = [2, 32], strides = [1, 1]} : vector<2x96xf32> to vector<2x32xf32>
    %561 = vector.extract_strided_slice %558 {offsets = [0, 64], sizes = [2, 32], strides = [1, 1]} : vector<2x96xf32> to vector<2x32xf32>
    %562 = vector.extract_strided_slice %536 {offsets = [0, 96], sizes = [2, 32], strides = [1, 1]} : vector<2x128xf32> to vector<2x32xf32>
    %563 = math.tanh %562 : vector<2x32xf32>
    %564 = arith.mulf %560, %511 : vector<2x32xf32>
    %565 = arith.mulf %559, %563 : vector<2x32xf32>
    %566 = arith.addf %564, %565 : vector<2x32xf32>
    %567 = math.tanh %566 : vector<2x32xf32>
    %568 = arith.mulf %561, %567 : vector<2x32xf32>
    %569 = arith.index_cast %c1_i32_142 : i32 to index
    %c0_151 = arith.constant 0 : index
    %c0_152 = arith.constant 0 : index
    %570 = vector.load %arg14[%569, %c0_151, %c0_152] : memref<8x2x32xf32, #tpu.memory_space<vmem>>, vector<1x2x32xf32>
    %571 = vector.shape_cast %570 : vector<1x2x32xf32> to vector<2x32xf32>
    %572 = vector.shape_cast %552 : vector<2x32xf32> to vector<1x2x32xf32>
    tpu.vector_store %arg14[%569, %c0_151, %c0_152], %572 {strides = array<i32>} : memref<8x2x32xf32, #tpu.memory_space<vmem>>, vector<1x2x32xf32>,
    %573 = arith.index_cast %523 : i32 to index
    %c0_153 = arith.constant 0 : index
    %c0_154 = arith.constant 0 : index
    %574 = vector.load %arg15[%573, %c0_153, %c0_154] : memref<8x2x32xf32, #tpu.memory_space<vmem>>, vector<1x2x32xf32>
    %575 = vector.shape_cast %574 : vector<1x2x32xf32> to vector<2x32xf32>
    %576 = vector.shape_cast %568 : vector<2x32xf32> to vector<1x2x32xf32>
    tpu.vector_store %arg15[%573, %c0_153, %c0_154], %576 {strides = array<i32>} : memref<8x2x32xf32, #tpu.memory_space<vmem>>, vector<1x2x32xf32>,
    %577 = tpu.concatenate %552, %568 in 1 : vector<2x32xf32>, vector<2x32xf32> -> vector<2x64xf32>
    %c2_i32_155 = arith.constant 2 : i32
    %c7_i32_156 = arith.constant 7 : i32
    %578 = arith.subi %c7_i32_156, %c2_i32_155 : i32
    %cst_157 = arith.constant dense<0.000000e+00> : vector<2x256xf32>
    %579 = tpu.matmul %577, %465, %cst_157 {dimension_numbers = #tpu.dot_dimension_numbers<[1], [0], [0], [1], [0, 0, 1, 1], [], []>} : vector<2x64xf32>, vector<64x256xf32>, vector<2x256xf32> -> vector<2x256xf32>
    %580 = vector.extract_strided_slice %579 {offsets = [0, 0], sizes = [2, 128], strides = [1, 1]} : vector<2x256xf32> to vector<2x128xf32>
    %581 = arith.index_cast %c2_i32_155 : i32 to index
    %c0_158 = arith.constant 0 : index
    %c0_159 = arith.constant 0 : index
    %582 = vector.load %arg13[%581, %c0_158, %c0_159] : memref<8x2x256xf32, #tpu.memory_space<vmem>>, vector<1x2x256xf32>
    %583 = vector.shape_cast %582 : vector<1x2x256xf32> to vector<2x256xf32>
    %584 = vector.extract_strided_slice %583 {offsets = [0, 0], sizes = [2, 128], strides = [1, 1]} : vector<2x256xf32> to vector<2x128xf32>
    %585 = arith.addf %580, %584 : vector<2x128xf32>
    %586 = vector.extract_strided_slice %579 {offsets = [0, 128], sizes = [2, 128], strides = [1, 1]} : vector<2x256xf32> to vector<2x128xf32>
    %587 = arith.index_cast %578 : i32 to index
    %c0_160 = arith.constant 0 : index
    %c0_161 = arith.constant 0 : index
    %588 = vector.load %arg13[%587, %c0_160, %c0_161] : memref<8x2x256xf32, #tpu.memory_space<vmem>>, vector<1x2x256xf32>
    %589 = vector.shape_cast %588 : vector<1x2x256xf32> to vector<2x256xf32>
    %590 = vector.extract_strided_slice %589 {offsets = [0, 128], sizes = [2, 128], strides = [1, 1]} : vector<2x256xf32> to vector<2x128xf32>
    %591 = arith.addf %586, %590 : vector<2x128xf32>
    %592 = vector.extract_strided_slice %585 {offsets = [0, 0], sizes = [2, 96], strides = [1, 1]} : vector<2x128xf32> to vector<2x96xf32>
    %593 = arith.negf %592 : vector<2x96xf32>
    %594 = math.exp %593 : vector<2x96xf32>
    %cst_162 = arith.constant 1.000000e+00 : f32
    %595 = vector.broadcast %cst_162 : f32 to vector<2x96xf32>
    %596 = arith.addf %595, %594 : vector<2x96xf32>
    %597 = arith.divf %595, %596 : vector<2x96xf32>
    %598 = vector.extract_strided_slice %597 {offsets = [0, 0], sizes = [2, 32], strides = [1, 1]} : vector<2x96xf32> to vector<2x32xf32>
    %599 = vector.extract_strided_slice %597 {offsets = [0, 32], sizes = [2, 32], strides = [1, 1]} : vector<2x96xf32> to vector<2x32xf32>
    %600 = vector.extract_strided_slice %597 {offsets = [0, 64], sizes = [2, 32], strides = [1, 1]} : vector<2x96xf32> to vector<2x32xf32>
    %601 = vector.extract_strided_slice %585 {offsets = [0, 96], sizes = [2, 32], strides = [1, 1]} : vector<2x128xf32> to vector<2x32xf32>
    %602 = math.tanh %601 : vector<2x32xf32>
    %603 = arith.mulf %599, %550 : vector<2x32xf32>
    %604 = arith.mulf %598, %602 : vector<2x32xf32>
    %605 = arith.addf %603, %604 : vector<2x32xf32>
    %606 = math.tanh %605 : vector<2x32xf32>
    %607 = arith.mulf %600, %606 : vector<2x32xf32>
    %608 = vector.extract_strided_slice %591 {offsets = [0, 0], sizes = [2, 96], strides = [1, 1]} : vector<2x128xf32> to vector<2x96xf32>
    %609 = arith.negf %608 : vector<2x96xf32>
    %610 = math.exp %609 : vector<2x96xf32>
    %cst_163 = arith.constant 1.000000e+00 : f32
    %611 = vector.broadcast %cst_163 : f32 to vector<2x96xf32>
    %612 = arith.addf %611, %610 : vector<2x96xf32>
    %613 = arith.divf %611, %612 : vector<2x96xf32>
    %614 = vector.extract_strided_slice %613 {offsets = [0, 0], sizes = [2, 32], strides = [1, 1]} : vector<2x96xf32> to vector<2x32xf32>
    %615 = vector.extract_strided_slice %613 {offsets = [0, 32], sizes = [2, 32], strides = [1, 1]} : vector<2x96xf32> to vector<2x32xf32>
    %616 = vector.extract_strided_slice %613 {offsets = [0, 64], sizes = [2, 32], strides = [1, 1]} : vector<2x96xf32> to vector<2x32xf32>
    %617 = vector.extract_strided_slice %591 {offsets = [0, 96], sizes = [2, 32], strides = [1, 1]} : vector<2x128xf32> to vector<2x32xf32>
    %618 = math.tanh %617 : vector<2x32xf32>
    %619 = arith.mulf %615, %566 : vector<2x32xf32>
    %620 = arith.mulf %614, %618 : vector<2x32xf32>
    %621 = arith.addf %619, %620 : vector<2x32xf32>
    %622 = math.tanh %621 : vector<2x32xf32>
    %623 = arith.mulf %616, %622 : vector<2x32xf32>
    %624 = arith.index_cast %c2_i32_155 : i32 to index
    %c0_164 = arith.constant 0 : index
    %c0_165 = arith.constant 0 : index
    %625 = vector.load %arg14[%624, %c0_164, %c0_165] : memref<8x2x32xf32, #tpu.memory_space<vmem>>, vector<1x2x32xf32>
    %626 = vector.shape_cast %625 : vector<1x2x32xf32> to vector<2x32xf32>
    %627 = vector.shape_cast %607 : vector<2x32xf32> to vector<1x2x32xf32>
    tpu.vector_store %arg14[%624, %c0_164, %c0_165], %627 {strides = array<i32>} : memref<8x2x32xf32, #tpu.memory_space<vmem>>, vector<1x2x32xf32>,
    %628 = arith.index_cast %578 : i32 to index
    %c0_166 = arith.constant 0 : index
    %c0_167 = arith.constant 0 : index
    %629 = vector.load %arg15[%628, %c0_166, %c0_167] : memref<8x2x32xf32, #tpu.memory_space<vmem>>, vector<1x2x32xf32>
    %630 = vector.shape_cast %629 : vector<1x2x32xf32> to vector<2x32xf32>
    %631 = vector.shape_cast %623 : vector<2x32xf32> to vector<1x2x32xf32>
    tpu.vector_store %arg15[%628, %c0_166, %c0_167], %631 {strides = array<i32>} : memref<8x2x32xf32, #tpu.memory_space<vmem>>, vector<1x2x32xf32>,
    %632 = tpu.concatenate %607, %623 in 1 : vector<2x32xf32>, vector<2x32xf32> -> vector<2x64xf32>
    %c3_i32_168 = arith.constant 3 : i32
    %c7_i32_169 = arith.constant 7 : i32
    %633 = arith.subi %c7_i32_169, %c3_i32_168 : i32
    %cst_170 = arith.constant dense<0.000000e+00> : vector<2x256xf32>
    %634 = tpu.matmul %632, %465, %cst_170 {dimension_numbers = #tpu.dot_dimension_numbers<[1], [0], [0], [1], [0, 0, 1, 1], [], []>} : vector<2x64xf32>, vector<64x256xf32>, vector<2x256xf32> -> vector<2x256xf32>
    %635 = vector.extract_strided_slice %634 {offsets = [0, 0], sizes = [2, 128], strides = [1, 1]} : vector<2x256xf32> to vector<2x128xf32>
    %636 = arith.index_cast %c3_i32_168 : i32 to index
    %c0_171 = arith.constant 0 : index
    %c0_172 = arith.constant 0 : index
    %637 = vector.load %arg13[%636, %c0_171, %c0_172] : memref<8x2x256xf32, #tpu.memory_space<vmem>>, vector<1x2x256xf32>
    %638 = vector.shape_cast %637 : vector<1x2x256xf32> to vector<2x256xf32>
    %639 = vector.extract_strided_slice %638 {offsets = [0, 0], sizes = [2, 128], strides = [1, 1]} : vector<2x256xf32> to vector<2x128xf32>
    %640 = arith.addf %635, %639 : vector<2x128xf32>
    %641 = vector.extract_strided_slice %634 {offsets = [0, 128], sizes = [2, 128], strides = [1, 1]} : vector<2x256xf32> to vector<2x128xf32>
    %642 = arith.index_cast %633 : i32 to index
    %c0_173 = arith.constant 0 : index
    %c0_174 = arith.constant 0 : index
    %643 = vector.load %arg13[%642, %c0_173, %c0_174] : memref<8x2x256xf32, #tpu.memory_space<vmem>>, vector<1x2x256xf32>
    %644 = vector.shape_cast %643 : vector<1x2x256xf32> to vector<2x256xf32>
    %645 = vector.extract_strided_slice %644 {offsets = [0, 128], sizes = [2, 128], strides = [1, 1]} : vector<2x256xf32> to vector<2x128xf32>
    %646 = arith.addf %641, %645 : vector<2x128xf32>
    %647 = vector.extract_strided_slice %640 {offsets = [0, 0], sizes = [2, 96], strides = [1, 1]} : vector<2x128xf32> to vector<2x96xf32>
    %648 = arith.negf %647 : vector<2x96xf32>
    %649 = math.exp %648 : vector<2x96xf32>
    %cst_175 = arith.constant 1.000000e+00 : f32
    %650 = vector.broadcast %cst_175 : f32 to vector<2x96xf32>
    %651 = arith.addf %650, %649 : vector<2x96xf32>
    %652 = arith.divf %650, %651 : vector<2x96xf32>
    %653 = vector.extract_strided_slice %652 {offsets = [0, 0], sizes = [2, 32], strides = [1, 1]} : vector<2x96xf32> to vector<2x32xf32>
    %654 = vector.extract_strided_slice %652 {offsets = [0, 32], sizes = [2, 32], strides = [1, 1]} : vector<2x96xf32> to vector<2x32xf32>
    %655 = vector.extract_strided_slice %652 {offsets = [0, 64], sizes = [2, 32], strides = [1, 1]} : vector<2x96xf32> to vector<2x32xf32>
    %656 = vector.extract_strided_slice %640 {offsets = [0, 96], sizes = [2, 32], strides = [1, 1]} : vector<2x128xf32> to vector<2x32xf32>
    %657 = math.tanh %656 : vector<2x32xf32>
    %658 = arith.mulf %654, %605 : vector<2x32xf32>
    %659 = arith.mulf %653, %657 : vector<2x32xf32>
    %660 = arith.addf %658, %659 : vector<2x32xf32>
    %661 = math.tanh %660 : vector<2x32xf32>
    %662 = arith.mulf %655, %661 : vector<2x32xf32>
    %663 = vector.extract_strided_slice %646 {offsets = [0, 0], sizes = [2, 96], strides = [1, 1]} : vector<2x128xf32> to vector<2x96xf32>
    %664 = arith.negf %663 : vector<2x96xf32>
    %665 = math.exp %664 : vector<2x96xf32>
    %cst_176 = arith.constant 1.000000e+00 : f32
    %666 = vector.broadcast %cst_176 : f32 to vector<2x96xf32>
    %667 = arith.addf %666, %665 : vector<2x96xf32>
    %668 = arith.divf %666, %667 : vector<2x96xf32>
    %669 = vector.extract_strided_slice %668 {offsets = [0, 0], sizes = [2, 32], strides = [1, 1]} : vector<2x96xf32> to vector<2x32xf32>
    %670 = vector.extract_strided_slice %668 {offsets = [0, 32], sizes = [2, 32], strides = [1, 1]} : vector<2x96xf32> to vector<2x32xf32>
    %671 = vector.extract_strided_slice %668 {offsets = [0, 64], sizes = [2, 32], strides = [1, 1]} : vector<2x96xf32> to vector<2x32xf32>
    %672 = vector.extract_strided_slice %646 {offsets = [0, 96], sizes = [2, 32], strides = [1, 1]} : vector<2x128xf32> to vector<2x32xf32>
    %673 = math.tanh %672 : vector<2x32xf32>
    %674 = arith.mulf %670, %621 : vector<2x32xf32>
    %675 = arith.mulf %669, %673 : vector<2x32xf32>
    %676 = arith.addf %674, %675 : vector<2x32xf32>
    %677 = math.tanh %676 : vector<2x32xf32>
    %678 = arith.mulf %671, %677 : vector<2x32xf32>
    %679 = arith.index_cast %c3_i32_168 : i32 to index
    %c0_177 = arith.constant 0 : index
    %c0_178 = arith.constant 0 : index
    %680 = vector.load %arg14[%679, %c0_177, %c0_178] : memref<8x2x32xf32, #tpu.memory_space<vmem>>, vector<1x2x32xf32>
    %681 = vector.shape_cast %680 : vector<1x2x32xf32> to vector<2x32xf32>
    %682 = vector.shape_cast %662 : vector<2x32xf32> to vector<1x2x32xf32>
    tpu.vector_store %arg14[%679, %c0_177, %c0_178], %682 {strides = array<i32>} : memref<8x2x32xf32, #tpu.memory_space<vmem>>, vector<1x2x32xf32>,
    %683 = arith.index_cast %633 : i32 to index
    %c0_179 = arith.constant 0 : index
    %c0_180 = arith.constant 0 : index
    %684 = vector.load %arg15[%683, %c0_179, %c0_180] : memref<8x2x32xf32, #tpu.memory_space<vmem>>, vector<1x2x32xf32>
    %685 = vector.shape_cast %684 : vector<1x2x32xf32> to vector<2x32xf32>
    %686 = vector.shape_cast %678 : vector<2x32xf32> to vector<1x2x32xf32>
    tpu.vector_store %arg15[%683, %c0_179, %c0_180], %686 {strides = array<i32>} : memref<8x2x32xf32, #tpu.memory_space<vmem>>, vector<1x2x32xf32>,
    %687 = tpu.concatenate %662, %678 in 1 : vector<2x32xf32>, vector<2x32xf32> -> vector<2x64xf32>
    %c4_i32_181 = arith.constant 4 : i32
    %c7_i32_182 = arith.constant 7 : i32
    %688 = arith.subi %c7_i32_182, %c4_i32_181 : i32
    %cst_183 = arith.constant dense<0.000000e+00> : vector<2x256xf32>
    %689 = tpu.matmul %687, %465, %cst_183 {dimension_numbers = #tpu.dot_dimension_numbers<[1], [0], [0], [1], [0, 0, 1, 1], [], []>} : vector<2x64xf32>, vector<64x256xf32>, vector<2x256xf32> -> vector<2x256xf32>
    %690 = vector.extract_strided_slice %689 {offsets = [0, 0], sizes = [2, 128], strides = [1, 1]} : vector<2x256xf32> to vector<2x128xf32>
    %691 = arith.index_cast %c4_i32_181 : i32 to index
    %c0_184 = arith.constant 0 : index
    %c0_185 = arith.constant 0 : index
    %692 = vector.load %arg13[%691, %c0_184, %c0_185] : memref<8x2x256xf32, #tpu.memory_space<vmem>>, vector<1x2x256xf32>
    %693 = vector.shape_cast %692 : vector<1x2x256xf32> to vector<2x256xf32>
    %694 = vector.extract_strided_slice %693 {offsets = [0, 0], sizes = [2, 128], strides = [1, 1]} : vector<2x256xf32> to vector<2x128xf32>
    %695 = arith.addf %690, %694 : vector<2x128xf32>
    %696 = vector.extract_strided_slice %689 {offsets = [0, 128], sizes = [2, 128], strides = [1, 1]} : vector<2x256xf32> to vector<2x128xf32>
    %697 = arith.index_cast %688 : i32 to index
    %c0_186 = arith.constant 0 : index
    %c0_187 = arith.constant 0 : index
    %698 = vector.load %arg13[%697, %c0_186, %c0_187] : memref<8x2x256xf32, #tpu.memory_space<vmem>>, vector<1x2x256xf32>
    %699 = vector.shape_cast %698 : vector<1x2x256xf32> to vector<2x256xf32>
    %700 = vector.extract_strided_slice %699 {offsets = [0, 128], sizes = [2, 128], strides = [1, 1]} : vector<2x256xf32> to vector<2x128xf32>
    %701 = arith.addf %696, %700 : vector<2x128xf32>
    %702 = vector.extract_strided_slice %695 {offsets = [0, 0], sizes = [2, 96], strides = [1, 1]} : vector<2x128xf32> to vector<2x96xf32>
    %703 = arith.negf %702 : vector<2x96xf32>
    %704 = math.exp %703 : vector<2x96xf32>
    %cst_188 = arith.constant 1.000000e+00 : f32
    %705 = vector.broadcast %cst_188 : f32 to vector<2x96xf32>
    %706 = arith.addf %705, %704 : vector<2x96xf32>
    %707 = arith.divf %705, %706 : vector<2x96xf32>
    %708 = vector.extract_strided_slice %707 {offsets = [0, 0], sizes = [2, 32], strides = [1, 1]} : vector<2x96xf32> to vector<2x32xf32>
    %709 = vector.extract_strided_slice %707 {offsets = [0, 32], sizes = [2, 32], strides = [1, 1]} : vector<2x96xf32> to vector<2x32xf32>
    %710 = vector.extract_strided_slice %707 {offsets = [0, 64], sizes = [2, 32], strides = [1, 1]} : vector<2x96xf32> to vector<2x32xf32>
    %711 = vector.extract_strided_slice %695 {offsets = [0, 96], sizes = [2, 32], strides = [1, 1]} : vector<2x128xf32> to vector<2x32xf32>
    %712 = math.tanh %711 : vector<2x32xf32>
    %713 = arith.mulf %709, %660 : vector<2x32xf32>
    %714 = arith.mulf %708, %712 : vector<2x32xf32>
    %715 = arith.addf %713, %714 : vector<2x32xf32>
    %716 = math.tanh %715 : vector<2x32xf32>
    %717 = arith.mulf %710, %716 : vector<2x32xf32>
    %718 = vector.extract_strided_slice %701 {offsets = [0, 0], sizes = [2, 96], strides = [1, 1]} : vector<2x128xf32> to vector<2x96xf32>
    %719 = arith.negf %718 : vector<2x96xf32>
    %720 = math.exp %719 : vector<2x96xf32>
    %cst_189 = arith.constant 1.000000e+00 : f32
    %721 = vector.broadcast %cst_189 : f32 to vector<2x96xf32>
    %722 = arith.addf %721, %720 : vector<2x96xf32>
    %723 = arith.divf %721, %722 : vector<2x96xf32>
    %724 = vector.extract_strided_slice %723 {offsets = [0, 0], sizes = [2, 32], strides = [1, 1]} : vector<2x96xf32> to vector<2x32xf32>
    %725 = vector.extract_strided_slice %723 {offsets = [0, 32], sizes = [2, 32], strides = [1, 1]} : vector<2x96xf32> to vector<2x32xf32>
    %726 = vector.extract_strided_slice %723 {offsets = [0, 64], sizes = [2, 32], strides = [1, 1]} : vector<2x96xf32> to vector<2x32xf32>
    %727 = vector.extract_strided_slice %701 {offsets = [0, 96], sizes = [2, 32], strides = [1, 1]} : vector<2x128xf32> to vector<2x32xf32>
    %728 = math.tanh %727 : vector<2x32xf32>
    %729 = arith.mulf %725, %676 : vector<2x32xf32>
    %730 = arith.mulf %724, %728 : vector<2x32xf32>
    %731 = arith.addf %729, %730 : vector<2x32xf32>
    %732 = math.tanh %731 : vector<2x32xf32>
    %733 = arith.mulf %726, %732 : vector<2x32xf32>
    %734 = arith.index_cast %c4_i32_181 : i32 to index
    %c0_190 = arith.constant 0 : index
    %c0_191 = arith.constant 0 : index
    %735 = vector.load %arg14[%734, %c0_190, %c0_191] : memref<8x2x32xf32, #tpu.memory_space<vmem>>, vector<1x2x32xf32>
    %736 = vector.shape_cast %735 : vector<1x2x32xf32> to vector<2x32xf32>
    %737 = vector.shape_cast %717 : vector<2x32xf32> to vector<1x2x32xf32>
    tpu.vector_store %arg14[%734, %c0_190, %c0_191], %737 {strides = array<i32>} : memref<8x2x32xf32, #tpu.memory_space<vmem>>, vector<1x2x32xf32>,
    %738 = arith.index_cast %688 : i32 to index
    %c0_192 = arith.constant 0 : index
    %c0_193 = arith.constant 0 : index
    %739 = vector.load %arg15[%738, %c0_192, %c0_193] : memref<8x2x32xf32, #tpu.memory_space<vmem>>, vector<1x2x32xf32>
    %740 = vector.shape_cast %739 : vector<1x2x32xf32> to vector<2x32xf32>
    %741 = vector.shape_cast %733 : vector<2x32xf32> to vector<1x2x32xf32>
    tpu.vector_store %arg15[%738, %c0_192, %c0_193], %741 {strides = array<i32>} : memref<8x2x32xf32, #tpu.memory_space<vmem>>, vector<1x2x32xf32>,
    %742 = tpu.concatenate %717, %733 in 1 : vector<2x32xf32>, vector<2x32xf32> -> vector<2x64xf32>
    %c5_i32_194 = arith.constant 5 : i32
    %c7_i32_195 = arith.constant 7 : i32
    %743 = arith.subi %c7_i32_195, %c5_i32_194 : i32
    %cst_196 = arith.constant dense<0.000000e+00> : vector<2x256xf32>
    %744 = tpu.matmul %742, %465, %cst_196 {dimension_numbers = #tpu.dot_dimension_numbers<[1], [0], [0], [1], [0, 0, 1, 1], [], []>} : vector<2x64xf32>, vector<64x256xf32>, vector<2x256xf32> -> vector<2x256xf32>
    %745 = vector.extract_strided_slice %744 {offsets = [0, 0], sizes = [2, 128], strides = [1, 1]} : vector<2x256xf32> to vector<2x128xf32>
    %746 = arith.index_cast %c5_i32_194 : i32 to index
    %c0_197 = arith.constant 0 : index
    %c0_198 = arith.constant 0 : index
    %747 = vector.load %arg13[%746, %c0_197, %c0_198] : memref<8x2x256xf32, #tpu.memory_space<vmem>>, vector<1x2x256xf32>
    %748 = vector.shape_cast %747 : vector<1x2x256xf32> to vector<2x256xf32>
    %749 = vector.extract_strided_slice %748 {offsets = [0, 0], sizes = [2, 128], strides = [1, 1]} : vector<2x256xf32> to vector<2x128xf32>
    %750 = arith.addf %745, %749 : vector<2x128xf32>
    %751 = vector.extract_strided_slice %744 {offsets = [0, 128], sizes = [2, 128], strides = [1, 1]} : vector<2x256xf32> to vector<2x128xf32>
    %752 = arith.index_cast %743 : i32 to index
    %c0_199 = arith.constant 0 : index
    %c0_200 = arith.constant 0 : index
    %753 = vector.load %arg13[%752, %c0_199, %c0_200] : memref<8x2x256xf32, #tpu.memory_space<vmem>>, vector<1x2x256xf32>
    %754 = vector.shape_cast %753 : vector<1x2x256xf32> to vector<2x256xf32>
    %755 = vector.extract_strided_slice %754 {offsets = [0, 128], sizes = [2, 128], strides = [1, 1]} : vector<2x256xf32> to vector<2x128xf32>
    %756 = arith.addf %751, %755 : vector<2x128xf32>
    %757 = vector.extract_strided_slice %750 {offsets = [0, 0], sizes = [2, 96], strides = [1, 1]} : vector<2x128xf32> to vector<2x96xf32>
    %758 = arith.negf %757 : vector<2x96xf32>
    %759 = math.exp %758 : vector<2x96xf32>
    %cst_201 = arith.constant 1.000000e+00 : f32
    %760 = vector.broadcast %cst_201 : f32 to vector<2x96xf32>
    %761 = arith.addf %760, %759 : vector<2x96xf32>
    %762 = arith.divf %760, %761 : vector<2x96xf32>
    %763 = vector.extract_strided_slice %762 {offsets = [0, 0], sizes = [2, 32], strides = [1, 1]} : vector<2x96xf32> to vector<2x32xf32>
    %764 = vector.extract_strided_slice %762 {offsets = [0, 32], sizes = [2, 32], strides = [1, 1]} : vector<2x96xf32> to vector<2x32xf32>
    %765 = vector.extract_strided_slice %762 {offsets = [0, 64], sizes = [2, 32], strides = [1, 1]} : vector<2x96xf32> to vector<2x32xf32>
    %766 = vector.extract_strided_slice %750 {offsets = [0, 96], sizes = [2, 32], strides = [1, 1]} : vector<2x128xf32> to vector<2x32xf32>
    %767 = math.tanh %766 : vector<2x32xf32>
    %768 = arith.mulf %764, %715 : vector<2x32xf32>
    %769 = arith.mulf %763, %767 : vector<2x32xf32>
    %770 = arith.addf %768, %769 : vector<2x32xf32>
    %771 = math.tanh %770 : vector<2x32xf32>
    %772 = arith.mulf %765, %771 : vector<2x32xf32>
    %773 = vector.extract_strided_slice %756 {offsets = [0, 0], sizes = [2, 96], strides = [1, 1]} : vector<2x128xf32> to vector<2x96xf32>
    %774 = arith.negf %773 : vector<2x96xf32>
    %775 = math.exp %774 : vector<2x96xf32>
    %cst_202 = arith.constant 1.000000e+00 : f32
    %776 = vector.broadcast %cst_202 : f32 to vector<2x96xf32>
    %777 = arith.addf %776, %775 : vector<2x96xf32>
    %778 = arith.divf %776, %777 : vector<2x96xf32>
    %779 = vector.extract_strided_slice %778 {offsets = [0, 0], sizes = [2, 32], strides = [1, 1]} : vector<2x96xf32> to vector<2x32xf32>
    %780 = vector.extract_strided_slice %778 {offsets = [0, 32], sizes = [2, 32], strides = [1, 1]} : vector<2x96xf32> to vector<2x32xf32>
    %781 = vector.extract_strided_slice %778 {offsets = [0, 64], sizes = [2, 32], strides = [1, 1]} : vector<2x96xf32> to vector<2x32xf32>
    %782 = vector.extract_strided_slice %756 {offsets = [0, 96], sizes = [2, 32], strides = [1, 1]} : vector<2x128xf32> to vector<2x32xf32>
    %783 = math.tanh %782 : vector<2x32xf32>
    %784 = arith.mulf %780, %731 : vector<2x32xf32>
    %785 = arith.mulf %779, %783 : vector<2x32xf32>
    %786 = arith.addf %784, %785 : vector<2x32xf32>
    %787 = math.tanh %786 : vector<2x32xf32>
    %788 = arith.mulf %781, %787 : vector<2x32xf32>
    %789 = arith.index_cast %c5_i32_194 : i32 to index
    %c0_203 = arith.constant 0 : index
    %c0_204 = arith.constant 0 : index
    %790 = vector.load %arg14[%789, %c0_203, %c0_204] : memref<8x2x32xf32, #tpu.memory_space<vmem>>, vector<1x2x32xf32>
    %791 = vector.shape_cast %790 : vector<1x2x32xf32> to vector<2x32xf32>
    %792 = vector.shape_cast %772 : vector<2x32xf32> to vector<1x2x32xf32>
    tpu.vector_store %arg14[%789, %c0_203, %c0_204], %792 {strides = array<i32>} : memref<8x2x32xf32, #tpu.memory_space<vmem>>, vector<1x2x32xf32>,
    %793 = arith.index_cast %743 : i32 to index
    %c0_205 = arith.constant 0 : index
    %c0_206 = arith.constant 0 : index
    %794 = vector.load %arg15[%793, %c0_205, %c0_206] : memref<8x2x32xf32, #tpu.memory_space<vmem>>, vector<1x2x32xf32>
    %795 = vector.shape_cast %794 : vector<1x2x32xf32> to vector<2x32xf32>
    %796 = vector.shape_cast %788 : vector<2x32xf32> to vector<1x2x32xf32>
    tpu.vector_store %arg15[%793, %c0_205, %c0_206], %796 {strides = array<i32>} : memref<8x2x32xf32, #tpu.memory_space<vmem>>, vector<1x2x32xf32>,
    %797 = tpu.concatenate %772, %788 in 1 : vector<2x32xf32>, vector<2x32xf32> -> vector<2x64xf32>
    %c6_i32_207 = arith.constant 6 : i32
    %c7_i32_208 = arith.constant 7 : i32
    %798 = arith.subi %c7_i32_208, %c6_i32_207 : i32
    %cst_209 = arith.constant dense<0.000000e+00> : vector<2x256xf32>
    %799 = tpu.matmul %797, %465, %cst_209 {dimension_numbers = #tpu.dot_dimension_numbers<[1], [0], [0], [1], [0, 0, 1, 1], [], []>} : vector<2x64xf32>, vector<64x256xf32>, vector<2x256xf32> -> vector<2x256xf32>
    %800 = vector.extract_strided_slice %799 {offsets = [0, 0], sizes = [2, 128], strides = [1, 1]} : vector<2x256xf32> to vector<2x128xf32>
    %801 = arith.index_cast %c6_i32_207 : i32 to index
    %c0_210 = arith.constant 0 : index
    %c0_211 = arith.constant 0 : index
    %802 = vector.load %arg13[%801, %c0_210, %c0_211] : memref<8x2x256xf32, #tpu.memory_space<vmem>>, vector<1x2x256xf32>
    %803 = vector.shape_cast %802 : vector<1x2x256xf32> to vector<2x256xf32>
    %804 = vector.extract_strided_slice %803 {offsets = [0, 0], sizes = [2, 128], strides = [1, 1]} : vector<2x256xf32> to vector<2x128xf32>
    %805 = arith.addf %800, %804 : vector<2x128xf32>
    %806 = vector.extract_strided_slice %799 {offsets = [0, 128], sizes = [2, 128], strides = [1, 1]} : vector<2x256xf32> to vector<2x128xf32>
    %807 = arith.index_cast %798 : i32 to index
    %c0_212 = arith.constant 0 : index
    %c0_213 = arith.constant 0 : index
    %808 = vector.load %arg13[%807, %c0_212, %c0_213] : memref<8x2x256xf32, #tpu.memory_space<vmem>>, vector<1x2x256xf32>
    %809 = vector.shape_cast %808 : vector<1x2x256xf32> to vector<2x256xf32>
    %810 = vector.extract_strided_slice %809 {offsets = [0, 128], sizes = [2, 128], strides = [1, 1]} : vector<2x256xf32> to vector<2x128xf32>
    %811 = arith.addf %806, %810 : vector<2x128xf32>
    %812 = vector.extract_strided_slice %805 {offsets = [0, 0], sizes = [2, 96], strides = [1, 1]} : vector<2x128xf32> to vector<2x96xf32>
    %813 = arith.negf %812 : vector<2x96xf32>
    %814 = math.exp %813 : vector<2x96xf32>
    %cst_214 = arith.constant 1.000000e+00 : f32
    %815 = vector.broadcast %cst_214 : f32 to vector<2x96xf32>
    %816 = arith.addf %815, %814 : vector<2x96xf32>
    %817 = arith.divf %815, %816 : vector<2x96xf32>
    %818 = vector.extract_strided_slice %817 {offsets = [0, 0], sizes = [2, 32], strides = [1, 1]} : vector<2x96xf32> to vector<2x32xf32>
    %819 = vector.extract_strided_slice %817 {offsets = [0, 32], sizes = [2, 32], strides = [1, 1]} : vector<2x96xf32> to vector<2x32xf32>
    %820 = vector.extract_strided_slice %817 {offsets = [0, 64], sizes = [2, 32], strides = [1, 1]} : vector<2x96xf32> to vector<2x32xf32>
    %821 = vector.extract_strided_slice %805 {offsets = [0, 96], sizes = [2, 32], strides = [1, 1]} : vector<2x128xf32> to vector<2x32xf32>
    %822 = math.tanh %821 : vector<2x32xf32>
    %823 = arith.mulf %819, %770 : vector<2x32xf32>
    %824 = arith.mulf %818, %822 : vector<2x32xf32>
    %825 = arith.addf %823, %824 : vector<2x32xf32>
    %826 = math.tanh %825 : vector<2x32xf32>
    %827 = arith.mulf %820, %826 : vector<2x32xf32>
    %828 = vector.extract_strided_slice %811 {offsets = [0, 0], sizes = [2, 96], strides = [1, 1]} : vector<2x128xf32> to vector<2x96xf32>
    %829 = arith.negf %828 : vector<2x96xf32>
    %830 = math.exp %829 : vector<2x96xf32>
    %cst_215 = arith.constant 1.000000e+00 : f32
    %831 = vector.broadcast %cst_215 : f32 to vector<2x96xf32>
    %832 = arith.addf %831, %830 : vector<2x96xf32>
    %833 = arith.divf %831, %832 : vector<2x96xf32>
    %834 = vector.extract_strided_slice %833 {offsets = [0, 0], sizes = [2, 32], strides = [1, 1]} : vector<2x96xf32> to vector<2x32xf32>
    %835 = vector.extract_strided_slice %833 {offsets = [0, 32], sizes = [2, 32], strides = [1, 1]} : vector<2x96xf32> to vector<2x32xf32>
    %836 = vector.extract_strided_slice %833 {offsets = [0, 64], sizes = [2, 32], strides = [1, 1]} : vector<2x96xf32> to vector<2x32xf32>
    %837 = vector.extract_strided_slice %811 {offsets = [0, 96], sizes = [2, 32], strides = [1, 1]} : vector<2x128xf32> to vector<2x32xf32>
    %838 = math.tanh %837 : vector<2x32xf32>
    %839 = arith.mulf %835, %786 : vector<2x32xf32>
    %840 = arith.mulf %834, %838 : vector<2x32xf32>
    %841 = arith.addf %839, %840 : vector<2x32xf32>
    %842 = math.tanh %841 : vector<2x32xf32>
    %843 = arith.mulf %836, %842 : vector<2x32xf32>
    %844 = arith.index_cast %c6_i32_207 : i32 to index
    %c0_216 = arith.constant 0 : index
    %c0_217 = arith.constant 0 : index
    %845 = vector.load %arg14[%844, %c0_216, %c0_217] : memref<8x2x32xf32, #tpu.memory_space<vmem>>, vector<1x2x32xf32>
    %846 = vector.shape_cast %845 : vector<1x2x32xf32> to vector<2x32xf32>
    %847 = vector.shape_cast %827 : vector<2x32xf32> to vector<1x2x32xf32>
    tpu.vector_store %arg14[%844, %c0_216, %c0_217], %847 {strides = array<i32>} : memref<8x2x32xf32, #tpu.memory_space<vmem>>, vector<1x2x32xf32>,
    %848 = arith.index_cast %798 : i32 to index
    %c0_218 = arith.constant 0 : index
    %c0_219 = arith.constant 0 : index
    %849 = vector.load %arg15[%848, %c0_218, %c0_219] : memref<8x2x32xf32, #tpu.memory_space<vmem>>, vector<1x2x32xf32>
    %850 = vector.shape_cast %849 : vector<1x2x32xf32> to vector<2x32xf32>
    %851 = vector.shape_cast %843 : vector<2x32xf32> to vector<1x2x32xf32>
    tpu.vector_store %arg15[%848, %c0_218, %c0_219], %851 {strides = array<i32>} : memref<8x2x32xf32, #tpu.memory_space<vmem>>, vector<1x2x32xf32>,
    %852 = tpu.concatenate %827, %843 in 1 : vector<2x32xf32>, vector<2x32xf32> -> vector<2x64xf32>
    %c7_i32_220 = arith.constant 7 : i32
    %c7_i32_221 = arith.constant 7 : i32
    %853 = arith.subi %c7_i32_221, %c7_i32_220 : i32
    %cst_222 = arith.constant dense<0.000000e+00> : vector<2x256xf32>
    %854 = tpu.matmul %852, %465, %cst_222 {dimension_numbers = #tpu.dot_dimension_numbers<[1], [0], [0], [1], [0, 0, 1, 1], [], []>} : vector<2x64xf32>, vector<64x256xf32>, vector<2x256xf32> -> vector<2x256xf32>
    %855 = vector.extract_strided_slice %854 {offsets = [0, 0], sizes = [2, 128], strides = [1, 1]} : vector<2x256xf32> to vector<2x128xf32>
    %856 = arith.index_cast %c7_i32_220 : i32 to index
    %c0_223 = arith.constant 0 : index
    %c0_224 = arith.constant 0 : index
    %857 = vector.load %arg13[%856, %c0_223, %c0_224] : memref<8x2x256xf32, #tpu.memory_space<vmem>>, vector<1x2x256xf32>
    %858 = vector.shape_cast %857 : vector<1x2x256xf32> to vector<2x256xf32>
    %859 = vector.extract_strided_slice %858 {offsets = [0, 0], sizes = [2, 128], strides = [1, 1]} : vector<2x256xf32> to vector<2x128xf32>
    %860 = arith.addf %855, %859 : vector<2x128xf32>
    %861 = vector.extract_strided_slice %854 {offsets = [0, 128], sizes = [2, 128], strides = [1, 1]} : vector<2x256xf32> to vector<2x128xf32>
    %862 = arith.index_cast %853 : i32 to index
    %c0_225 = arith.constant 0 : index
    %c0_226 = arith.constant 0 : index
    %863 = vector.load %arg13[%862, %c0_225, %c0_226] : memref<8x2x256xf32, #tpu.memory_space<vmem>>, vector<1x2x256xf32>
    %864 = vector.shape_cast %863 : vector<1x2x256xf32> to vector<2x256xf32>
    %865 = vector.extract_strided_slice %864 {offsets = [0, 128], sizes = [2, 128], strides = [1, 1]} : vector<2x256xf32> to vector<2x128xf32>
    %866 = arith.addf %861, %865 : vector<2x128xf32>
    %867 = vector.extract_strided_slice %860 {offsets = [0, 0], sizes = [2, 96], strides = [1, 1]} : vector<2x128xf32> to vector<2x96xf32>
    %868 = arith.negf %867 : vector<2x96xf32>
    %869 = math.exp %868 : vector<2x96xf32>
    %cst_227 = arith.constant 1.000000e+00 : f32
    %870 = vector.broadcast %cst_227 : f32 to vector<2x96xf32>
    %871 = arith.addf %870, %869 : vector<2x96xf32>
    %872 = arith.divf %870, %871 : vector<2x96xf32>
    %873 = vector.extract_strided_slice %872 {offsets = [0, 0], sizes = [2, 32], strides = [1, 1]} : vector<2x96xf32> to vector<2x32xf32>
    %874 = vector.extract_strided_slice %872 {offsets = [0, 32], sizes = [2, 32], strides = [1, 1]} : vector<2x96xf32> to vector<2x32xf32>
    %875 = vector.extract_strided_slice %872 {offsets = [0, 64], sizes = [2, 32], strides = [1, 1]} : vector<2x96xf32> to vector<2x32xf32>
    %876 = vector.extract_strided_slice %860 {offsets = [0, 96], sizes = [2, 32], strides = [1, 1]} : vector<2x128xf32> to vector<2x32xf32>
    %877 = math.tanh %876 : vector<2x32xf32>
    %878 = arith.mulf %874, %825 : vector<2x32xf32>
    %879 = arith.mulf %873, %877 : vector<2x32xf32>
    %880 = arith.addf %878, %879 : vector<2x32xf32>
    %881 = math.tanh %880 : vector<2x32xf32>
    %882 = arith.mulf %875, %881 : vector<2x32xf32>
    %883 = vector.extract_strided_slice %866 {offsets = [0, 0], sizes = [2, 96], strides = [1, 1]} : vector<2x128xf32> to vector<2x96xf32>
    %884 = arith.negf %883 : vector<2x96xf32>
    %885 = math.exp %884 : vector<2x96xf32>
    %cst_228 = arith.constant 1.000000e+00 : f32
    %886 = vector.broadcast %cst_228 : f32 to vector<2x96xf32>
    %887 = arith.addf %886, %885 : vector<2x96xf32>
    %888 = arith.divf %886, %887 : vector<2x96xf32>
    %889 = vector.extract_strided_slice %888 {offsets = [0, 0], sizes = [2, 32], strides = [1, 1]} : vector<2x96xf32> to vector<2x32xf32>
    %890 = vector.extract_strided_slice %888 {offsets = [0, 32], sizes = [2, 32], strides = [1, 1]} : vector<2x96xf32> to vector<2x32xf32>
    %891 = vector.extract_strided_slice %888 {offsets = [0, 64], sizes = [2, 32], strides = [1, 1]} : vector<2x96xf32> to vector<2x32xf32>
    %892 = vector.extract_strided_slice %866 {offsets = [0, 96], sizes = [2, 32], strides = [1, 1]} : vector<2x128xf32> to vector<2x32xf32>
    %893 = math.tanh %892 : vector<2x32xf32>
    %894 = arith.mulf %890, %841 : vector<2x32xf32>
    %895 = arith.mulf %889, %893 : vector<2x32xf32>
    %896 = arith.addf %894, %895 : vector<2x32xf32>
    %897 = math.tanh %896 : vector<2x32xf32>
    %898 = arith.mulf %891, %897 : vector<2x32xf32>
    %899 = arith.index_cast %c7_i32_220 : i32 to index
    %c0_229 = arith.constant 0 : index
    %c0_230 = arith.constant 0 : index
    %900 = vector.load %arg14[%899, %c0_229, %c0_230] : memref<8x2x32xf32, #tpu.memory_space<vmem>>, vector<1x2x32xf32>
    %901 = vector.shape_cast %900 : vector<1x2x32xf32> to vector<2x32xf32>
    %902 = vector.shape_cast %882 : vector<2x32xf32> to vector<1x2x32xf32>
    tpu.vector_store %arg14[%899, %c0_229, %c0_230], %902 {strides = array<i32>} : memref<8x2x32xf32, #tpu.memory_space<vmem>>, vector<1x2x32xf32>,
    %903 = arith.index_cast %853 : i32 to index
    %c0_231 = arith.constant 0 : index
    %c0_232 = arith.constant 0 : index
    %904 = vector.load %arg15[%903, %c0_231, %c0_232] : memref<8x2x32xf32, #tpu.memory_space<vmem>>, vector<1x2x32xf32>
    %905 = vector.shape_cast %904 : vector<1x2x32xf32> to vector<2x32xf32>
    %906 = vector.shape_cast %898 : vector<2x32xf32> to vector<1x2x32xf32>
    tpu.vector_store %arg15[%903, %c0_231, %c0_232], %906 {strides = array<i32>} : memref<8x2x32xf32, #tpu.memory_space<vmem>>, vector<1x2x32xf32>,
    %907 = tpu.concatenate %882, %898 in 1 : vector<2x32xf32>, vector<2x32xf32> -> vector<2x64xf32>
    %c8_i32_233 = arith.constant 8 : i32
    %c0_234 = arith.constant 0 : index
    %c0_235 = arith.constant 0 : index
    %c0_236 = arith.constant 0 : index
    %908 = vector.load %arg14[%c0_234, %c0_235, %c0_236] : memref<8x2x32xf32, #tpu.memory_space<vmem>>, vector<8x2x32xf32>
    %909 = vector.shape_cast %908 : vector<8x2x32xf32> to vector<16x32xf32>
    %c0_237 = arith.constant 0 : index
    %c0_238 = arith.constant 0 : index
    %c0_239 = arith.constant 0 : index
    %910 = vector.load %arg15[%c0_237, %c0_238, %c0_239] : memref<8x2x32xf32, #tpu.memory_space<vmem>>, vector<8x2x32xf32>
    %911 = vector.shape_cast %910 : vector<8x2x32xf32> to vector<16x32xf32>
    %c0_240 = arith.constant 0 : index
    %c0_241 = arith.constant 0 : index
    %912 = vector.load %arg9[%c0_240, %c0_241] : memref<32x10xf32, #tpu.memory_space<vmem>>, vector<32x10xf32>
    %cst_242 = arith.constant dense<0.000000e+00> : vector<16x10xf32>
    %913 = tpu.matmul %909, %912, %cst_242 {dimension_numbers = #tpu.dot_dimension_numbers<[1], [0], [0], [1], [0, 0, 1, 1], [], []>} : vector<16x32xf32>, vector<32x10xf32>, vector<16x10xf32> -> vector<16x10xf32>
    %c0_243 = arith.constant 0 : index
    %c0_244 = arith.constant 0 : index
    %914 = vector.load %arg10[%c0_243, %c0_244] : memref<32x10xf32, #tpu.memory_space<vmem>>, vector<32x10xf32>
    %cst_245 = arith.constant dense<0.000000e+00> : vector<16x10xf32>
    %915 = tpu.matmul %911, %914, %cst_245 {dimension_numbers = #tpu.dot_dimension_numbers<[1], [0], [0], [1], [0, 0, 1, 1], [], []>} : vector<16x32xf32>, vector<32x10xf32>, vector<16x10xf32> -> vector<16x10xf32>
    %916 = arith.addf %913, %915 : vector<16x10xf32>
    %c0_246 = arith.constant 0 : index
    %c0_247 = arith.constant 0 : index
    %917 = vector.load %arg11[%c0_246, %c0_247] : memref<1x10xf32, #tpu.memory_space<vmem>>, vector<1x10xf32>
    %918 = vector.broadcast %917 : vector<1x10xf32> to vector<16x10xf32>
    %919 = arith.addf %916, %918 : vector<16x10xf32>
    %c0_248 = arith.constant 0 : index
    %c0_249 = arith.constant 0 : index
    %920 = vector.load %arg12[%c0_248, %c0_249] : memref<16x10xf32, #tpu.memory_space<vmem>>, vector<16x10xf32>
    tpu.vector_store %arg12[%c0_248, %c0_249], %919 {strides = array<i32>} : memref<16x10xf32, #tpu.memory_space<vmem>>, vector<16x10xf32>,
    return
  }
  func.func @transform_0(%arg0: i32) -> (i32, i32) {
    %c0_i32 = arith.constant 0 : i32
    %c0_i32_0 = arith.constant 0 : i32
    %c0_i32_1 = arith.constant 0 : i32
    return %c0_i32, %c0_i32_0 : i32, i32
  }
  func.func @transform_1(%arg0: i32) -> (i32, i32) {
    %c0_i32 = arith.constant 0 : i32
    %c0_i32_0 = arith.constant 0 : i32
    %c0_i32_1 = arith.constant 0 : i32
    return %c0_i32, %c0_i32_0 : i32, i32
  }
  func.func @transform_2(%arg0: i32) -> (i32, i32) {
    %c0_i32 = arith.constant 0 : i32
    %c0_i32_0 = arith.constant 0 : i32
    %c0_i32_1 = arith.constant 0 : i32
    return %c0_i32, %c0_i32_0 : i32, i32
  }
  func.func @transform_3(%arg0: i32) -> (i32, i32) {
    %c0_i32 = arith.constant 0 : i32
    %c0_i32_0 = arith.constant 0 : i32
    %c0_i32_1 = arith.constant 0 : i32
    return %c0_i32, %c0_i32_0 : i32, i32
  }
  func.func @transform_4(%arg0: i32) -> (i32, i32) {
    %c0_i32 = arith.constant 0 : i32
    %c0_i32_0 = arith.constant 0 : i32
    %c0_i32_1 = arith.constant 0 : i32
    return %c0_i32, %c0_i32_0 : i32, i32
  }
  func.func @transform_5(%arg0: i32) -> (i32, i32) {
    %c0_i32 = arith.constant 0 : i32
    %c0_i32_0 = arith.constant 0 : i32
    %c0_i32_1 = arith.constant 0 : i32
    return %c0_i32, %c0_i32_0 : i32, i32
  }
  func.func @transform_6(%arg0: i32) -> (i32, i32) {
    %c0_i32 = arith.constant 0 : i32
    %c0_i32_0 = arith.constant 0 : i32
    %c0_i32_1 = arith.constant 0 : i32
    return %c0_i32, %c0_i32_0 : i32, i32
  }
  func.func @transform_7(%arg0: i32) -> (i32, i32) {
    %c0_i32 = arith.constant 0 : i32
    %c0_i32_0 = arith.constant 0 : i32
    %c0_i32_1 = arith.constant 0 : i32
    return %c0_i32, %c0_i32_0 : i32, i32
  }
  func.func @transform_8(%arg0: i32) -> (i32, i32) {
    %c0_i32 = arith.constant 0 : i32
    %c0_i32_0 = arith.constant 0 : i32
    %c0_i32_1 = arith.constant 0 : i32
    return %c0_i32, %c0_i32_0 : i32, i32
  }
  func.func @transform_9(%arg0: i32) -> (i32, i32) {
    %c0_i32 = arith.constant 0 : i32
    %c0_i32_0 = arith.constant 0 : i32
    %c0_i32_1 = arith.constant 0 : i32
    return %c0_i32, %c0_i32_0 : i32, i32
  }
  func.func @transform_10(%arg0: i32) -> (i32, i32) {
    %c0_i32 = arith.constant 0 : i32
    %c0_i32_0 = arith.constant 0 : i32
    %c0_i32_1 = arith.constant 0 : i32
    return %c0_i32, %c0_i32_0 : i32, i32
  }
  func.func @transform_11(%arg0: i32) -> (i32, i32) {
    %c0_i32 = arith.constant 0 : i32
    %c0_i32_0 = arith.constant 0 : i32
    %c0_i32_1 = arith.constant 0 : i32
    return %c0_i32, %c0_i32_0 : i32, i32
  }
}

</mosaic_0001>

<llo_original>
// kernel: birnn_pallas.1
$region0: #{birnn_pallas.1}
  #allocation0 [shape = 'u32[]', space=smem, size = 0x4, offset = 0x4, fixed_abs, tag = 'smem constant byte address 0x4 - core index']
  #allocation1 [shape = 'u32[144,128]{1,0:T(1,128)}', space=vmem, size = 0x12000, scoped, tag = 'internal scratch']
  #allocation2 [shape = 'f32[8,2,256]{2,1,0:T(2,128)}', space=vmem, size = 0x4000, scoped, tag = 'scratch operand']
  #allocation3 [shape = 'f32[8,2,32]{2,1,0:T(2,128)}', space=vmem, size = 0x2000, scoped, tag = 'scratch operand']
  #allocation4 [shape = 'f32[8,2,32]{2,1,0:T(2,128)}', space=vmem, size = 0x2000, scoped, tag = 'scratch operand']
  %s0 = inlined_call_operand.hbm [shape: f32[16,16], index: 0, kind: input, shape index: {}]
  %s1 = inlined_call_operand.hbm [shape: f32[16,256], index: 1, kind: input, shape index: {}]
  %s2 = inlined_call_operand.hbm [shape: f32[64,256], index: 2, kind: input, shape index: {}]
  %s3 = inlined_call_operand.vmem [shape: f32[1,256], index: 3, kind: input, shape index: {}]
  %s4 = inlined_call_operand.vmem [shape: f32[32,256], index: 4, kind: input, shape index: {}]
  %s5 = inlined_call_operand.vmem [shape: f32[32,256], index: 5, kind: input, shape index: {}]
  %s6 = inlined_call_operand.hbm [shape: f32[64,256], index: 6, kind: input, shape index: {}]
  %s7 = inlined_call_operand.hbm [shape: f32[1,256], index: 7, kind: input, shape index: {}]
  %s8 = inlined_call_operand.vmem [shape: f32[32,10], index: 8, kind: input, shape index: {}]
  %s9 = inlined_call_operand.vmem [shape: f32[32,10], index: 9, kind: input, shape index: {}]
  %s10 = inlined_call_operand.hbm [shape: f32[1,10], index: 10, kind: input, shape index: {}]
  %s11 = inlined_call_operand.hbm [shape: f32[16,10], index: 11, kind: output, shape index: {}]
  %s12 = sld [smem:[#allocation0]]
  $region78: #{birnn_pallas.1} parent=0
    _
  %s14 = ssub.s32 1, %s12
  %s15 = scalar_select 0, %s14, %s12
  $region1: #{birnn_pallas.1} parent=0
    #allocation5 [shape = 'u8[8192]{0}', space=vmem, size = 0x2000, scoped, tag = 'input window, operand 0, single buffered']
    #allocation6 [shape = 's32[1]{0}', space=sflag, size = 0x4, scoped, tag = 'scoped memory for birnn_pallas.1']
    #allocation7 [shape = 's32[1]{0}', space=sflag, size = 0x4, scoped, tag = 'scoped memory for birnn_pallas.1']
    #allocation8 [shape = 'u8[16384]{0}', space=vmem, size = 0x4000, scoped, tag = 'input window, operand 1, single buffered']
    #allocation9 [shape = 's32[1]{0}', space=sflag, size = 0x4, scoped, tag = 'scoped memory for birnn_pallas.1']
    #allocation10 [shape = 'u8[65536]{0}', space=vmem, size = 0x10000, scoped, tag = 'input window, operand 2, single buffered']
    #allocation11 [shape = 'u8[65536]{0}', space=vmem, size = 0x10000, scoped, tag = 'input window, operand 6, single buffered']
    #allocation12 [shape = 's32[1]{0}', space=sflag, size = 0x4, scoped, tag = 'scoped memory for birnn_pallas.1']
    #allocation13 [shape = 'u8[1024]{0}', space=vmem, size = 0x400, scoped, tag = 'input window, operand 7, single buffered']
    #allocation14 [shape = 'u8[512]{0}', space=vmem, size = 0x400, scoped, tag = 'input window, operand 10, single buffered']
    #allocation15 [shape = 's32[1]{0}', space=sflag, size = 0x4, scoped, tag = 'scoped memory for birnn_pallas.1']
    #allocation16 [shape = 'u8[8192]{0}', space=vmem, size = 0x2000, scoped, tag = 'output window, operand 0, single buffered']
    %16 = vsyncpa [#allocation6], 0
    %17 = vsyncpa [#allocation9], 0
    %18 = vsyncpa [#allocation12], 0
    %19 = vsyncpa [#allocation15], 0
    %20 = vsyncpa [#allocation7], 0
    // Predicated region
    $region2: #{birnn_pallas.1} parent=1 // pred_check
      _
    $region3: #{birnn_pallas.1} parent=1 // pred_check_branch
      %22 = sbr.rel (0) target = $region5
    $region4: #{birnn_pallas.1} parent=1 // pred_region
      %s24 = ssub.s32 256, 256
      %25 = vsyncadd [#allocation6], %s24
      %s26 = sshll.u32 [#allocation5], 4
      %s27 = int_to_ptr.vmem [resolvable:$true] %s26
      %32 = dma.hbm_to_vmem [thread:$0]  %s0, 256, %s27, [#allocation6], 128, 128, 8
    $region5: #{birnn_pallas.1} parent=1 // pred_fallthru
      _
    // Predicated region
    $region6: #{birnn_pallas.1} parent=1 // pred_check
      _
    $region7: #{birnn_pallas.1} parent=1 // pred_check_branch
      %34 = sbr.rel (0) target = $region9
    $region8: #{birnn_pallas.1} parent=1 // pred_region
      %s36 = ssub.s32 512, 512
      %37 = vsyncadd [#allocation9], %s36
      %s38 = sshll.u32 [#allocation8], 4
      %s39 = int_to_ptr.vmem [resolvable:$true] %s38
      %44 = dma.hbm_to_vmem [thread:$0]  %s1, 512, %s39, [#allocation9], 256, 256, 16
    $region9: #{birnn_pallas.1} parent=1 // pred_fallthru
      _
    // Predicated region
    $region10: #{birnn_pallas.1} parent=1 // pred_check
      _
    $region11: #{birnn_pallas.1} parent=1 // pred_check_branch
      %46 = sbr.rel (0) target = $region13
    $region12: #{birnn_pallas.1} parent=1 // pred_region
      %s48 = ssub.s32 2048, 2048
      %49 = vsyncadd [#allocation9], %s48
      %s50 = sshll.u32 [#allocation10], 4
      %s51 = int_to_ptr.vmem [resolvable:$true] %s50
      %56 = dma.hbm_to_vmem [thread:$0]  %s2, 2048, %s51, [#allocation9], 256, 256, 16
    $region13: #{birnn_pallas.1} parent=1 // pred_fallthru
      _
    // Predicated region
    $region14: #{birnn_pallas.1} parent=1 // pred_check
      _
    $region15: #{birnn_pallas.1} parent=1 // pred_check_branch
      %58 = sbr.rel (0) target = $region17
    $region16: #{birnn_pallas.1} parent=1 // pred_region
      _
    $region17: #{birnn_pallas.1} parent=1 // pred_fallthru
      _
    // Predicated region
    $region18: #{birnn_pallas.1} parent=1 // pred_check
      _
    $region19: #{birnn_pallas.1} parent=1 // pred_check_branch
      %60 = sbr.rel (0) target = $region21
    $region20: #{birnn_pallas.1} parent=1 // pred_region
      _
    $region21: #{birnn_pallas.1} parent=1 // pred_fallthru
      _
    // Predicated region
    $region22: #{birnn_pallas.1} parent=1 // pred_check
      _
    $region23: #{birnn_pallas.1} parent=1 // pred_check_branch
      %62 = sbr.rel (0) target = $region25
    $region24: #{birnn_pallas.1} parent=1 // pred_region
      _
    $region25: #{birnn_pallas.1} parent=1 // pred_fallthru
      _
    // Predicated region
    $region26: #{birnn_pallas.1} parent=1 // pred_check
      _
    $region27: #{birnn_pallas.1} parent=1 // pred_check_branch
      %64 = sbr.rel (0) target = $region29
    $region28: #{birnn_pallas.1} parent=1 // pred_region
      %s66 = ssub.s32 2048, 2048
      %67 = vsyncadd [#allocation12], %s66
      %s68 = sshll.u32 [#allocation11], 4
      %s69 = int_to_ptr.vmem [resolvable:$true] %s68
      %74 = dma.hbm_to_vmem [thread:$0]  %s6, 2048, %s69, [#allocation12], 256, 256, 16
    $region29: #{birnn_pallas.1} parent=1 // pred_fallthru
      _
    // Predicated region
    $region30: #{birnn_pallas.1} parent=1 // pred_check
      _
    $region31: #{birnn_pallas.1} parent=1 // pred_check_branch
      %76 = sbr.rel (0) target = $region33
    $region32: #{birnn_pallas.1} parent=1 // pred_region
      %s78 = ssub.s32 32, 32
      %79 = vsyncadd [#allocation12], %s78
      %s81 = sshll.u32 [#allocation13], 4
      %s82 = int_to_ptr.vmem [resolvable:$true] %s81
      %84 = dma.hbm_to_vmem [thread:$0]  %s7, 32, %s82, [#allocation12]
    $region33: #{birnn_pallas.1} parent=1 // pred_fallthru
      _
    // Predicated region
    $region34: #{birnn_pallas.1} parent=1 // pred_check
      _
    $region35: #{birnn_pallas.1} parent=1 // pred_check_branch
      %86 = sbr.rel (0) target = $region37
    $region36: #{birnn_pallas.1} parent=1 // pred_region
      _
    $region37: #{birnn_pallas.1} parent=1 // pred_fallthru
      _
    // Predicated region
    $region38: #{birnn_pallas.1} parent=1 // pred_check
      _
    $region39: #{birnn_pallas.1} parent=1 // pred_check_branch
      %88 = sbr.rel (0) target = $region41
    $region40: #{birnn_pallas.1} parent=1 // pred_region
      _
    $region41: #{birnn_pallas.1} parent=1 // pred_fallthru
      _
    // Predicated region
    $region42: #{birnn_pallas.1} parent=1 // pred_check
      _
    $region43: #{birnn_pallas.1} parent=1 // pred_check_branch
      %90 = sbr.rel (0) target = $region45
    $region44: #{birnn_pallas.1} parent=1 // pred_region
      %s92 = ssub.s32 16, 16
      %93 = vsyncadd [#allocation15], %s92
      %s95 = sshll.u32 [#allocation14], 4
      %s96 = int_to_ptr.vmem [resolvable:$true] %s95
      %98 = dma.hbm_to_vmem [thread:$0]  %s10, 16, %s96, [#allocation15]
    $region45: #{birnn_pallas.1} parent=1 // pred_fallthru
      _
    // Predicated region
    $region46: #{birnn_pallas.1} parent=1 // pred_check
      _
    $region47: #{birnn_pallas.1} parent=1 // pred_check_branch
      %100 = sbr.rel (0) target = $region49
    $region48: #{birnn_pallas.1} parent=1 // pred_region
      %101 = dma.done [#allocation6], 256
    $region49: #{birnn_pallas.1} parent=1 // pred_fallthru
      _
    // Predicated region
    $region50: #{birnn_pallas.1} parent=1 // pred_check
      _
    $region51: #{birnn_pallas.1} parent=1 // pred_check_branch
      %103 = sbr.rel (0) target = $region53
    $region52: #{birnn_pallas.1} parent=1 // pred_region
      %104 = dma.done [#allocation9], 512
    $region53: #{birnn_pallas.1} parent=1 // pred_fallthru
      _
    // Predicated region
    $region54: #{birnn_pallas.1} parent=1 // pred_check
      _
    $region55: #{birnn_pallas.1} parent=1 // pred_check_branch
      %106 = sbr.rel (0) target = $region57
    $region56: #{birnn_pallas.1} parent=1 // pred_region
      %107 = dma.done [#allocation9], 2048
    $region57: #{birnn_pallas.1} parent=1 // pred_fallthru
      _
    // Predicated region
    $region58: #{birnn_pallas.1} parent=1 // pred_check
      _
    $region59: #{birnn_pallas.1} parent=1 // pred_check_branch
      %109 = sbr.rel (0) target = $region61
    $region60: #{birnn_pallas.1} parent=1 // pred_region
      %110 = dma.done [#allocation12], 2048
    $region61: #{birnn_pallas.1} parent=1 // pred_fallthru
      _
    // Predicated region
    $region62: #{birnn_pallas.1} parent=1 // pred_check
      _
    $region63: #{birnn_pallas.1} parent=1 // pred_check_branch
      %112 = sbr.rel (0) target = $region65
    $region64: #{birnn_pallas.1} parent=1 // pred_region
      %113 = dma.done [#allocation12], 32
    $region65: #{birnn_pallas.1} parent=1 // pred_fallthru
      _
    // Predicated region
    $region66: #{birnn_pallas.1} parent=1 // pred_check
      _
    $region67: #{birnn_pallas.1} parent=1 // pred_check_branch
      %115 = sbr.rel (0) target = $region69
    $region68: #{birnn_pallas.1} parent=1 // pred_region
      %116 = dma.done [#allocation15], 16
    $region69: #{birnn_pallas.1} parent=1 // pred_fallthru
      _
    %v117 = vld [vmem:[#allocation5] sm:$0xff]
    %v118 = vld [vmem:[#allocation5 + $0x8] sm:$0xff]
    %v119 = vld [vmem:[%s3] sm:$0x3]
    %v120 = vld [vmem:[#allocation8] sm:$0xff]
    %v121 = vld [vmem:[#allocation8 + $0x8] sm:$0xff]
    %v122 = vld [vmem:[#allocation8 + $0x10] sm:$0xff]
    %v123 = vld [vmem:[#allocation8 + $0x18] sm:$0xff]
    %vm124 = vcmask 130048
    %v126 = vsel %vm124, %v117, 0
    %v129 = vsel %vm124, %v118, 0
    %131 = vmatprep.subr.mxu0 %v121
    %132 = vmatpush1.msra.mxu0 %v120
    %133 = vmatprep.subr.mxu0 %v123
    %134 = vmatpush1.msra.mxu0 %v122
    %135 = vmatprep.subr.mxu0 0.0
    %136 = vmatpush1.msra.mxu0 0.0
    %137 = vmatprep.subr.mxu0 0.0
    %138 = vmatpush1.msra.mxu0 0.0
    %139 = vmatprep.subr.mxu0 0.0
    %140 = vmatpush1.msra.mxu0 0.0
    %141 = vmatprep.subr.mxu0 0.0
    %142 = vmatpush1.msra.mxu0 0.0
    %143 = vmatprep.subr.mxu0 0.0
    %144 = vmatpush1.msra.mxu0 0.0
    %145 = vmatprep.subr.mxu0 0.0
    %146 = vmatpush1.msra.mxu0 0.0
    %147 = vmatprep.subr.mxu0 0.0
    %148 = vmatpush1.msra.mxu0 0.0
    %149 = vmatprep.subr.mxu0 0.0
    %150 = vmatpush1.msra.mxu0 0.0
    %151 = vmatprep.subr.mxu0 0.0
    %152 = vmatpush1.msra.mxu0 0.0
    %153 = vmatprep.subr.mxu0 0.0
    %154 = vmatpush1.msra.mxu0 0.0
    %155 = vmatprep.subr.mxu0 0.0
    %156 = vmatpush1.msra.mxu0 0.0
    %157 = vmatprep.subr.mxu0 0.0
    %158 = vmatpush1.msra.mxu0 0.0
    %159 = vmatprep.subr.mxu0 0.0
    %160 = vmatpush1.msra.mxu0 0.0
    %161 = vmatprep.subr.mxu0 0.0
    %162 = vmatpush1.msra.mxu0 0.0
    %163 = vmatprep.subr.mxu0 0.0
    %164 = vmatpush1.msra.mxu0 0.0
    %165 = vmatprep.subr.mxu0 0.0
    %166 = vmatpush1.msra.mxu0 0.0
    %167 = vmatprep.subr.mxu0 0.0
    %168 = vmatpush1.msra.mxu0 0.0
    %169 = vmatprep.subr.mxu0 0.0
    %170 = vmatpush1.msra.mxu0 0.0
    %171 = vmatprep.subr.mxu0 0.0
    %172 = vmatpush1.msra.mxu0 0.0
    %173 = vmatprep.subr.mxu0 0.0
    %174 = vmatpush1.msra.mxu0 0.0
    %175 = vmatprep.subr.mxu0 0.0
    %176 = vmatpush1.msra.mxu0 0.0
    %177 = vmatprep.subr.mxu0 0.0
    %178 = vmatpush1.msra.mxu0 0.0
    %179 = vmatprep.subr.mxu0 0.0
    %180 = vmatpush1.msra.mxu0 0.0
    %181 = vmatprep.subr.mxu0 0.0
    %182 = vmatpush1.msra.mxu0 0.0
    %183 = vmatprep.subr.mxu0 0.0
    %184 = vmatpush1.msra.mxu0 0.0
    %185 = vmatprep.subr.mxu0 0.0
    %186 = vmatpush1.msra.mxu0 0.0
    %187 = vmatprep.subr.mxu0 0.0
    %188 = vmatpush1.msra.mxu0 0.0
    %189 = vmatprep.subr.mxu0 0.0
    %190 = vmatpush1.msra.mxu0 0.0
    %191 = vmatprep.subr.mxu0 0.0
    %192 = vmatpush1.msra.mxu0 0.0
    %193 = vmatprep.subr.mxu0 0.0
    %194 = vmatpush1.msra.mxu0 0.0
    %195 = vmatprep.mubr.f32.mxu0 0.0
    %196 = vmatmul.mubr.f32.gmra.mrb[0].mxu0 %v126
    %v197 = vpop.f32.mrb[0].mxu0
    %v198 = vadd.f32 0.0, %v197
    %v199 = vpop.f32.mrb[0].mxu0
    %v200 = vadd.f32 0.0, %v199
    %201 = vmatprep.mubr.f32.mxu0 0.0
    %202 = vmatmul.mubr.f32.gmra.mrb[0].mxu0 %v129
    %v203 = vpop.f32.mrb[0].mxu0
    %v204 = vadd.f32 0.0, %v203
    %v205 = vpop.f32.mrb[0].mxu0
    %v206 = vadd.f32 0.0, %v205
    %207 = vdwg.mxu0
    %v209 = vlaneseq
    %v210 = vshrl.u32 %v209, 7
    %v211 = vsub.s32 0, %v210
    %v212 = vrot.slane %v119, %v211
    %v213 = vlaneseq
    %v214 = vshrl.u32 %v213, 7
    %v215 = vsub.s32 1, %v214
    %v216 = vrot.slane %v119, %v215
    %v219 = vadd.f32 %v212, %v198
    %v220 = vadd.f32 %v216, %v200
    %v221 = vadd.f32 %v212, %v204
    %v222 = vadd.f32 %v216, %v206
    %v227 = vcombine.low %v219, %v220
    %v228 = vcombine.high %v219, %v220
    %v230 = vunpack.c.l.s4 1983009808
    %v231 = vunpack.c.0.s8 %v230
    %v232 = vlaneseq
    %v233 = vshrl.u32 %v232, 7
    %v234 = vsub.s32 %v231, %v233
    %v235 = vrot.slane %v227, %v234
    %v237 = vunpack.c.l.s4 1983009808
    %v238 = vunpack.c.0.s8 %v237
    %v239 = vlaneseq
    %v240 = vshrl.u32 %v239, 7
    %v241 = vsub.s32 %v238, %v240
    %v242 = vrot.slane %v228, %v241
    %v243 = vcombine.high %v235, %v235
    %v244 = vcombine.high %v242, %v242
    %v245 = vcombine.low %v221, %v222
    %v246 = vcombine.high %v221, %v222
    %v248 = vunpack.c.l.s4 1983009808
    %v249 = vunpack.c.0.s8 %v248
    %v250 = vlaneseq
    %v251 = vshrl.u32 %v250, 7
    %v252 = vsub.s32 %v249, %v251
    %v253 = vrot.slane %v245, %v252
    %v255 = vunpack.c.l.s4 1983009808
    %v256 = vunpack.c.0.s8 %v255
    %v257 = vlaneseq
    %v258 = vshrl.u32 %v257, 7
    %v259 = vsub.s32 %v256, %v258
    %v260 = vrot.slane %v246, %v259
    %v261 = vcombine.high %v253, %v253
    %v262 = vcombine.high %v260, %v260
    %271 = vst [vmem:[#allocation2] sm:$0xf] %v235
    %272 = vst [vmem:[#allocation2 + $0x4] sm:$0xf] %v243
    %273 = vst [vmem:[#allocation2 + $0x8] sm:$0xf] %v242
    %274 = vst [vmem:[#allocation2 + $0xc] sm:$0xf] %v244
    %275 = vst [vmem:[#allocation2 + $0x10] sm:$0xf] %v253
    %276 = vst [vmem:[#allocation2 + $0x14] sm:$0xf] %v261
    %277 = vst [vmem:[#allocation2 + $0x18] sm:$0xf] %v260
    %278 = vst [vmem:[#allocation2 + $0x1c] sm:$0xf] %v262
    %v279 = vld [vmem:[#allocation10] sm:$0xff]
    %v280 = vld [vmem:[#allocation10 + $0x8] sm:$0xff]
    %v281 = vld [vmem:[#allocation10 + $0x10] sm:$0xff]
    %v282 = vld [vmem:[#allocation10 + $0x18] sm:$0xff]
    %v283 = vld [vmem:[#allocation10 + $0x20] sm:$0xff]
    %v284 = vld [vmem:[#allocation10 + $0x28] sm:$0xff]
    %v285 = vld [vmem:[#allocation10 + $0x30] sm:$0xff]
    %v286 = vld [vmem:[#allocation10 + $0x38] sm:$0xff]
    %v287 = vld [vmem:[#allocation10 + $0x40] sm:$0xff]
    %v288 = vld [vmem:[#allocation10 + $0x48] sm:$0xff]
    %v289 = vld [vmem:[#allocation10 + $0x50] sm:$0xff]
    %v290 = vld [vmem:[#allocation10 + $0x58] sm:$0xff]
    %v291 = vld [vmem:[#allocation10 + $0x60] sm:$0xff]
    %v292 = vld [vmem:[#allocation10 + $0x68] sm:$0xff]
    %v293 = vld [vmem:[#allocation10 + $0x70] sm:$0xff]
    %v294 = vld [vmem:[#allocation10 + $0x78] sm:$0xff]
    %vm295 = vcmask 523264
    %v297 = vsel %vm295, 0.0, 0
    %299 = vmatprep.subr.mxu0 %v280
    %300 = vmatpush1.msra.mxu0 %v279
    %301 = vmatprep.subr.mxu0 %v282
    %302 = vmatpush1.msra.mxu0 %v281
    %303 = vmatprep.subr.mxu0 %v284
    %304 = vmatpush1.msra.mxu0 %v283
    %305 = vmatprep.subr.mxu0 %v286
    %306 = vmatpush1.msra.mxu0 %v285
    %307 = vmatprep.subr.mxu0 %v288
    %308 = vmatpush1.msra.mxu0 %v287
    %309 = vmatprep.subr.mxu0 %v290
    %310 = vmatpush1.msra.mxu0 %v289
    %311 = vmatprep.subr.mxu0 %v292
    %312 = vmatpush1.msra.mxu0 %v291
    %313 = vmatprep.subr.mxu0 %v294
    %314 = vmatpush1.msra.mxu0 %v293
    %315 = vmatprep.subr.mxu0 0.0
    %316 = vmatpush1.msra.mxu0 0.0
    %317 = vmatprep.subr.mxu0 0.0
    %318 = vmatpush1.msra.mxu0 0.0
    %319 = vmatprep.subr.mxu0 0.0
    %320 = vmatpush1.msra.mxu0 0.0
    %321 = vmatprep.subr.mxu0 0.0
    %322 = vmatpush1.msra.mxu0 0.0
    %323 = vmatprep.subr.mxu0 0.0
    %324 = vmatpush1.msra.mxu0 0.0
    %325 = vmatprep.subr.mxu0 0.0
    %326 = vmatpush1.msra.mxu0 0.0
    %327 = vmatprep.subr.mxu0 0.0
    %328 = vmatpush1.msra.mxu0 0.0
    %329 = vmatprep.subr.mxu0 0.0
    %330 = vmatpush1.msra.mxu0 0.0
    %331 = vmatprep.subr.mxu0 0.0
    %332 = vmatpush1.msra.mxu0 0.0
    %333 = vmatprep.subr.mxu0 0.0
    %334 = vmatpush1.msra.mxu0 0.0
    %335 = vmatprep.subr.mxu0 0.0
    %336 = vmatpush1.msra.mxu0 0.0
    %337 = vmatprep.subr.mxu0 0.0
    %338 = vmatpush1.msra.mxu0 0.0
    %339 = vmatprep.subr.mxu0 0.0
    %340 = vmatpush1.msra.mxu0 0.0
    %341 = vmatprep.subr.mxu0 0.0
    %342 = vmatpush1.msra.mxu0 0.0
    %343 = vmatprep.subr.mxu0 0.0
    %344 = vmatpush1.msra.mxu0 0.0
    %345 = vmatprep.subr.mxu0 0.0
    %346 = vmatpush1.msra.mxu0 0.0
    %347 = vmatprep.subr.mxu0 0.0
    %348 = vmatpush1.msra.mxu0 0.0
    %349 = vmatprep.subr.mxu0 0.0
    %350 = vmatpush1.msra.mxu0 0.0
    %351 = vmatprep.subr.mxu0 0.0
    %352 = vmatpush1.msra.mxu0 0.0
    %353 = vmatprep.subr.mxu0 0.0
    %354 = vmatpush1.msra.mxu0 0.0
    %355 = vmatprep.subr.mxu0 0.0
    %356 = vmatpush1.msra.mxu0 0.0
    %357 = vmatprep.subr.mxu0 0.0
    %358 = vmatpush1.msra.mxu0 0.0
    %359 = vmatprep.subr.mxu0 0.0
    %360 = vmatpush1.msra.mxu0 0.0
    %361 = vmatprep.subr.mxu0 0.0
    %362 = vmatpush1.msra.mxu0 0.0
    %363 = vmatprep.mubr.f32.mxu0 0.0
    %364 = vmatmul.mubr.f32.gmra.mrb[0].mxu0 %v297
    %v365 = vpop.f32.mrb[0].mxu0
    %v366 = vadd.f32 0.0, %v365
    %v367 = vpop.f32.mrb[0].mxu0
    %v368 = vadd.f32 0.0, %v367
    %369 = vdwg.mxu0
    %v370 = vld [vmem:[#allocation2] sm:$0xf]
    %v371 = vadd.f32 %v366, %v370
    %s372 = scalar_lea.vmem [#allocation2], 28
    %v373 = vld [vmem:[%s372] sm:$0xf]
    %v376 = vunpack.c.l.s4 1983009808
    %v377 = vunpack.c.0.s8 %v376
    %v378 = vlaneseq
    %v379 = vshrl.u32 %v378, 7
    %v380 = vsub.s32 %v377, %v379
    %v381 = vrot.slane %v373, %v380
    %v382 = vcombine.high %v381, %v381
    %v384 = vadd.f32 %v368, %v382
    %v385 = vxor.u32 %v371, 2147483648
    %v386 = vmul.f32 %v385, 1.442695
    %v387 = vpow.pop %v386
    %v388 = vadd.f32 %v387, 1.0
    %v389 = vrcp.pop %v388
    %v390 = vmul.f32 1.0, %v389
    %v391 = vtanh.pop %v371
    %v392 = vmul.f32 %v390, 0.0
    %394 = vrot.lane.b32.xlu0 %v391, 32
    %v395 = vpop.permute.xlu0 %394
    %v397 = vmul.f32 %v390, %v395
    %399 = vrot.lane.b32.xlu0 %v397, 32
    %v400 = vpop.permute.xlu0 %399
    %v402 = vadd.f32 %v392, %v400
    %v403 = vtanh.pop %v402
    %405 = vrot.lane.b32.xlu0 %v403, 32
    %v406 = vpop.permute.xlu0 %405
    %v408 = vmul.f32 %v390, %v406
    %v409 = vxor.u32 %v384, 2147483648
    %v410 = vmul.f32 %v409, 1.442695
    %v411 = vpow.pop %v410
    %v412 = vadd.f32 %v411, 1.0
    %v413 = vrcp.pop %v412
    %v414 = vmul.f32 1.0, %v413
    %v415 = vtanh.pop %v384
    %v416 = vmul.f32 %v414, 0.0
    %418 = vrot.lane.b32.xlu0 %v415, 32
    %v419 = vpop.permute.xlu0 %418
    %v421 = vmul.f32 %v414, %v419
    %423 = vrot.lane.b32.xlu0 %v421, 32
    %v424 = vpop.permute.xlu0 %423
    %v426 = vadd.f32 %v416, %v424
    %v427 = vtanh.pop %v426
    %429 = vrot.lane.b32.xlu0 %v427, 32
    %v430 = vpop.permute.xlu0 %429
    %v432 = vmul.f32 %v414, %v430
    %434 = vrot.lane.b32.xlu0 %v408, 64
    %v435 = vpop.permute.xlu0 %434
    %vm437 = vcmask 254976
    %438 = vst.msk [vmem:[#allocation3] sm:$0x3] %vm437, %v435
    %440 = vrot.lane.b32.xlu0 %v432, 64
    %v441 = vpop.permute.xlu0 %440
    %s443 = scalar_lea.vmem [#allocation4], 14
    %444 = vst.msk [vmem:[%s443] sm:$0x3] %vm437, %v441
    %445 = vrot.lane.b32.xlu0 %v432, 96
    %v446 = vpop.permute.xlu0 %445
    %vm448 = vcmask 261120
    %v449 = vsel %vm448, %v435, %v446
    %v451 = vsel %vm295, %v449, 0
    %453 = vmatprep.subr.mxu0 %v280
    %454 = vmatpush1.msra.mxu0 %v279
    %455 = vmatprep.subr.mxu0 %v282
    %456 = vmatpush1.msra.mxu0 %v281
    %457 = vmatprep.subr.mxu0 %v284
    %458 = vmatpush1.msra.mxu0 %v283
    %459 = vmatprep.subr.mxu0 %v286
    %460 = vmatpush1.msra.mxu0 %v285
    %461 = vmatprep.subr.mxu0 %v288
    %462 = vmatpush1.msra.mxu0 %v287
    %463 = vmatprep.subr.mxu0 %v290
    %464 = vmatpush1.msra.mxu0 %v289
    %465 = vmatprep.subr.mxu0 %v292
    %466 = vmatpush1.msra.mxu0 %v291
    %467 = vmatprep.subr.mxu0 %v294
    %468 = vmatpush1.msra.mxu0 %v293
    %469 = vmatprep.subr.mxu0 0.0
    %470 = vmatpush1.msra.mxu0 0.0
    %471 = vmatprep.subr.mxu0 0.0
    %472 = vmatpush1.msra.mxu0 0.0
    %473 = vmatprep.subr.mxu0 0.0
    %474 = vmatpush1.msra.mxu0 0.0
    %475 = vmatprep.subr.mxu0 0.0
    %476 = vmatpush1.msra.mxu0 0.0
    %477 = vmatprep.subr.mxu0 0.0
    %478 = vmatpush1.msra.mxu0 0.0
    %479 = vmatprep.subr.mxu0 0.0
    %480 = vmatpush1.msra.mxu0 0.0
    %481 = vmatprep.subr.mxu0 0.0
    %482 = vmatpush1.msra.mxu0 0.0
    %483 = vmatprep.subr.mxu0 0.0
    %484 = vmatpush1.msra.mxu0 0.0
    %485 = vmatprep.subr.mxu0 0.0
    %486 = vmatpush1.msra.mxu0 0.0
    %487 = vmatprep.subr.mxu0 0.0
    %488 = vmatpush1.msra.mxu0 0.0
    %489 = vmatprep.subr.mxu0 0.0
    %490 = vmatpush1.msra.mxu0 0.0
    %491 = vmatprep.subr.mxu0 0.0
    %492 = vmatpush1.msra.mxu0 0.0
    %493 = vmatprep.subr.mxu0 0.0
    %494 = vmatpush1.msra.mxu0 0.0
    %495 = vmatprep.subr.mxu0 0.0
    %496 = vmatpush1.msra.mxu0 0.0
    %497 = vmatprep.subr.mxu0 0.0
    %498 = vmatpush1.msra.mxu0 0.0
    %499 = vmatprep.subr.mxu0 0.0
    %500 = vmatpush1.msra.mxu0 0.0
    %501 = vmatprep.subr.mxu0 0.0
    %502 = vmatpush1.msra.mxu0 0.0
    %503 = vmatprep.subr.mxu0 0.0
    %504 = vmatpush1.msra.mxu0 0.0
    %505 = vmatprep.subr.mxu0 0.0
    %506 = vmatpush1.msra.mxu0 0.0
    %507 = vmatprep.subr.mxu0 0.0
    %508 = vmatpush1.msra.mxu0 0.0
    %509 = vmatprep.subr.mxu0 0.0
    %510 = vmatpush1.msra.mxu0 0.0
    %511 = vmatprep.subr.mxu0 0.0
    %512 = vmatpush1.msra.mxu0 0.0
    %513 = vmatprep.subr.mxu0 0.0
    %514 = vmatpush1.msra.mxu0 0.0
    %515 = vmatprep.subr.mxu0 0.0
    %516 = vmatpush1.msra.mxu0 0.0
    %517 = vmatprep.mubr.f32.mxu0 0.0
    %518 = vmatmul.mubr.f32.gmra.mrb[0].mxu0 %v451
    %v519 = vpop.f32.mrb[0].mxu0
    %v520 = vadd.f32 0.0, %v519
    %v521 = vpop.f32.mrb[0].mxu0
    %v522 = vadd.f32 0.0, %v521
    %523 = vdwg.mxu0
    %s524 = scalar_lea.vmem [#allocation2], 4
    %v525 = vld [vmem:[%s524] sm:$0xf]
    %v526 = vadd.f32 %v520, %v525
    %s527 = scalar_lea.vmem [#allocation2], 24
    %v528 = vld [vmem:[%s527] sm:$0xf]
    %v531 = vunpack.c.l.s4 1983009808
    %v532 = vunpack.c.0.s8 %v531
    %v533 = vlaneseq
    %v534 = vshrl.u32 %v533, 7
    %v535 = vsub.s32 %v532, %v534
    %v536 = vrot.slane %v528, %v535
    %v537 = vcombine.high %v536, %v536
    %v539 = vadd.f32 %v522, %v537
    %v540 = vxor.u32 %v526, 2147483648
    %v541 = vmul.f32 %v540, 1.442695
    %v542 = vpow.pop %v541
    %v543 = vadd.f32 %v542, 1.0
    %v544 = vrcp.pop %v543
    %v545 = vmul.f32 1.0, %v544
    %v546 = vtanh.pop %v526
    %v547 = vmul.f32 %v545, %v402
    %549 = vrot.lane.b32.xlu0 %v546, 32
    %v550 = vpop.permute.xlu0 %549
    %v552 = vmul.f32 %v545, %v550
    %554 = vrot.lane.b32.xlu0 %v552, 32
    %v555 = vpop.permute.xlu0 %554
    %v557 = vadd.f32 %v547, %v555
    %v558 = vtanh.pop %v557
    %560 = vrot.lane.b32.xlu0 %v558, 32
    %v561 = vpop.permute.xlu0 %560
    %v563 = vmul.f32 %v545, %v561
    %v564 = vxor.u32 %v539, 2147483648
    %v565 = vmul.f32 %v564, 1.442695
    %v566 = vpow.pop %v565
    %v567 = vadd.f32 %v566, 1.0
    %v568 = vrcp.pop %v567
    %v569 = vmul.f32 1.0, %v568
    %v570 = vtanh.pop %v539
    %v571 = vmul.f32 %v569, %v426
    %573 = vrot.lane.b32.xlu0 %v570, 32
    %v574 = vpop.permute.xlu0 %573
    %v576 = vmul.f32 %v569, %v574
    %578 = vrot.lane.b32.xlu0 %v576, 32
    %v579 = vpop.permute.xlu0 %578
    %v581 = vadd.f32 %v571, %v579
    %v582 = vtanh.pop %v581
    %584 = vrot.lane.b32.xlu0 %v582, 32
    %v585 = vpop.permute.xlu0 %584
    %v587 = vmul.f32 %v569, %v585
    %589 = vrot.lane.b32.xlu0 %v563, 64
    %v590 = vpop.permute.xlu0 %589
    %s592 = scalar_lea.vmem [#allocation3], 2
    %593 = vst.msk [vmem:[%s592] sm:$0x3] %vm437, %v590
    %595 = vrot.lane.b32.xlu0 %v587, 64
    %v596 = vpop.permute.xlu0 %595
    %s598 = scalar_lea.vmem [#allocation4], 12
    %599 = vst.msk [vmem:[%s598] sm:$0x3] %vm437, %v596
    %600 = vrot.lane.b32.xlu0 %v587, 96
    %v601 = vpop.permute.xlu0 %600
    %v603 = vsel %vm448, %v590, %v601
    %v605 = vsel %vm295, %v603, 0
    %607 = vmatprep.subr.mxu0 %v280
    %608 = vmatpush1.msra.mxu0 %v279
    %609 = vmatprep.subr.mxu0 %v282
    %610 = vmatpush1.msra.mxu0 %v281
    %611 = vmatprep.subr.mxu0 %v284
    %612 = vmatpush1.msra.mxu0 %v283
    %613 = vmatprep.subr.mxu0 %v286
    %614 = vmatpush1.msra.mxu0 %v285
    %615 = vmatprep.subr.mxu0 %v288
    %616 = vmatpush1.msra.mxu0 %v287
    %617 = vmatprep.subr.mxu0 %v290
    %618 = vmatpush1.msra.mxu0 %v289
    %619 = vmatprep.subr.mxu0 %v292
    %620 = vmatpush1.msra.mxu0 %v291
    %621 = vmatprep.subr.mxu0 %v294
    %622 = vmatpush1.msra.mxu0 %v293
    %623 = vmatprep.subr.mxu0 0.0
    %624 = vmatpush1.msra.mxu0 0.0
    %625 = vmatprep.subr.mxu0 0.0
    %626 = vmatpush1.msra.mxu0 0.0
    %627 = vmatprep.subr.mxu0 0.0
    %628 = vmatpush1.msra.mxu0 0.0
    %629 = vmatprep.subr.mxu0 0.0
    %630 = vmatpush1.msra.mxu0 0.0
    %631 = vmatprep.subr.mxu0 0.0
    %632 = vmatpush1.msra.mxu0 0.0
    %633 = vmatprep.subr.mxu0 0.0
    %634 = vmatpush1.msra.mxu0 0.0
    %635 = vmatprep.subr.mxu0 0.0
    %636 = vmatpush1.msra.mxu0 0.0
    %637 = vmatprep.subr.mxu0 0.0
    %638 = vmatpush1.msra.mxu0 0.0
    %639 = vmatprep.subr.mxu0 0.0
    %640 = vmatpush1.msra.mxu0 0.0
    %641 = vmatprep.subr.mxu0 0.0
    %642 = vmatpush1.msra.mxu0 0.0
    %643 = vmatprep.subr.mxu0 0.0
    %644 = vmatpush1.msra.mxu0 0.0
    %645 = vmatprep.subr.mxu0 0.0
    %646 = vmatpush1.msra.mxu0 0.0
    %647 = vmatprep.subr.mxu0 0.0
    %648 = vmatpush1.msra.mxu0 0.0
    %649 = vmatprep.subr.mxu0 0.0
    %650 = vmatpush1.msra.mxu0 0.0
    %651 = vmatprep.subr.mxu0 0.0
    %652 = vmatpush1.msra.mxu0 0.0
    %653 = vmatprep.subr.mxu0 0.0
    %654 = vmatpush1.msra.mxu0 0.0
    %655 = vmatprep.subr.mxu0 0.0
    %656 = vmatpush1.msra.mxu0 0.0
    %657 = vmatprep.subr.mxu0 0.0
    %658 = vmatpush1.msra.mxu0 0.0
    %659 = vmatprep.subr.mxu0 0.0
    %660 = vmatpush1.msra.mxu0 0.0
    %661 = vmatprep.subr.mxu0 0.0
    %662 = vmatpush1.msra.mxu0 0.0
    %663 = vmatprep.subr.mxu0 0.0
    %664 = vmatpush1.msra.mxu0 0.0
    %665 = vmatprep.subr.mxu0 0.0
    %666 = vmatpush1.msra.mxu0 0.0
    %667 = vmatprep.subr.mxu0 0.0
    %668 = vmatpush1.msra.mxu0 0.0
    %669 = vmatprep.subr.mxu0 0.0
    %670 = vmatpush1.msra.mxu0 0.0
    %671 = vmatprep.mubr.f32.mxu0 0.0
    %672 = vmatmul.mubr.f32.gmra.mrb[0].mxu0 %v605
    %v673 = vpop.f32.mrb[0].mxu0
    %v674 = vadd.f32 0.0, %v673
    %v675 = vpop.f32.mrb[0].mxu0
    %v676 = vadd.f32 0.0, %v675
    %677 = vdwg.mxu0
    %s678 = scalar_lea.vmem [#allocation2], 8
    %v679 = vld [vmem:[%s678] sm:$0xf]
    %v680 = vadd.f32 %v674, %v679
    %s681 = scalar_lea.vmem [#allocation2], 20
    %v682 = vld [vmem:[%s681] sm:$0xf]
    %v685 = vunpack.c.l.s4 1983009808
    %v686 = vunpack.c.0.s8 %v685
    %v687 = vlaneseq
    %v688 = vshrl.u32 %v687, 7
    %v689 = vsub.s32 %v686, %v688
    %v690 = vrot.slane %v682, %v689
    %v691 = vcombine.high %v690, %v690
    %v693 = vadd.f32 %v676, %v691
    %v694 = vxor.u32 %v680, 2147483648
    %v695 = vmul.f32 %v694, 1.442695
    %v696 = vpow.pop %v695
    %v697 = vadd.f32 %v696, 1.0
    %v698 = vrcp.pop %v697
    %v699 = vmul.f32 1.0, %v698
    %v700 = vtanh.pop %v680
    %v701 = vmul.f32 %v699, %v557
    %703 = vrot.lane.b32.xlu0 %v700, 32
    %v704 = vpop.permute.xlu0 %703
    %v706 = vmul.f32 %v699, %v704
    %708 = vrot.lane.b32.xlu0 %v706, 32
    %v709 = vpop.permute.xlu0 %708
    %v711 = vadd.f32 %v701, %v709
    %v712 = vtanh.pop %v711
    %714 = vrot.lane.b32.xlu0 %v712, 32
    %v715 = vpop.permute.xlu0 %714
    %v717 = vmul.f32 %v699, %v715
    %v718 = vxor.u32 %v693, 2147483648
    %v719 = vmul.f32 %v718, 1.442695
    %v720 = vpow.pop %v719
    %v721 = vadd.f32 %v720, 1.0
    %v722 = vrcp.pop %v721
    %v723 = vmul.f32 1.0, %v722
    %v724 = vtanh.pop %v693
    %v725 = vmul.f32 %v723, %v581
    %727 = vrot.lane.b32.xlu0 %v724, 32
    %v728 = vpop.permute.xlu0 %727
    %v730 = vmul.f32 %v723, %v728
    %732 = vrot.lane.b32.xlu0 %v730, 32
    %v733 = vpop.permute.xlu0 %732
    %v735 = vadd.f32 %v725, %v733
    %v736 = vtanh.pop %v735
    %738 = vrot.lane.b32.xlu0 %v736, 32
    %v739 = vpop.permute.xlu0 %738
    %v741 = vmul.f32 %v723, %v739
    %743 = vrot.lane.b32.xlu0 %v717, 64
    %v744 = vpop.permute.xlu0 %743
    %s746 = scalar_lea.vmem [#allocation3], 4
    %747 = vst.msk [vmem:[%s746] sm:$0x3] %vm437, %v744
    %749 = vrot.lane.b32.xlu0 %v741, 64
    %v750 = vpop.permute.xlu0 %749
    %s752 = scalar_lea.vmem [#allocation4], 10
    %753 = vst.msk [vmem:[%s752] sm:$0x3] %vm437, %v750
    %754 = vrot.lane.b32.xlu0 %v741, 96
    %v755 = vpop.permute.xlu0 %754
    %v757 = vsel %vm448, %v744, %v755
    %v759 = vsel %vm295, %v757, 0
    %761 = vmatprep.subr.mxu0 %v280
    %762 = vmatpush1.msra.mxu0 %v279
    %763 = vmatprep.subr.mxu0 %v282
    %764 = vmatpush1.msra.mxu0 %v281
    %765 = vmatprep.subr.mxu0 %v284
    %766 = vmatpush1.msra.mxu0 %v283
    %767 = vmatprep.subr.mxu0 %v286
    %768 = vmatpush1.msra.mxu0 %v285
    %769 = vmatprep.subr.mxu0 %v288
    %770 = vmatpush1.msra.mxu0 %v287
    %771 = vmatprep.subr.mxu0 %v290
    %772 = vmatpush1.msra.mxu0 %v289
    %773 = vmatprep.subr.mxu0 %v292
    %774 = vmatpush1.msra.mxu0 %v291
    %775 = vmatprep.subr.mxu0 %v294
    %776 = vmatpush1.msra.mxu0 %v293
    %777 = vmatprep.subr.mxu0 0.0
    %778 = vmatpush1.msra.mxu0 0.0
    %779 = vmatprep.subr.mxu0 0.0
    %780 = vmatpush1.msra.mxu0 0.0
    %781 = vmatprep.subr.mxu0 0.0
    %782 = vmatpush1.msra.mxu0 0.0
    %783 = vmatprep.subr.mxu0 0.0
    %784 = vmatpush1.msra.mxu0 0.0
    %785 = vmatprep.subr.mxu0 0.0
    %786 = vmatpush1.msra.mxu0 0.0
    %787 = vmatprep.subr.mxu0 0.0
    %788 = vmatpush1.msra.mxu0 0.0
    %789 = vmatprep.subr.mxu0 0.0
    %790 = vmatpush1.msra.mxu0 0.0
    %791 = vmatprep.subr.mxu0 0.0
    %792 = vmatpush1.msra.mxu0 0.0
    %793 = vmatprep.subr.mxu0 0.0
    %794 = vmatpush1.msra.mxu0 0.0
    %795 = vmatprep.subr.mxu0 0.0
    %796 = vmatpush1.msra.mxu0 0.0
    %797 = vmatprep.subr.mxu0 0.0
    %798 = vmatpush1.msra.mxu0 0.0
    %799 = vmatprep.subr.mxu0 0.0
    %800 = vmatpush1.msra.mxu0 0.0
    %801 = vmatprep.subr.mxu0 0.0
    %802 = vmatpush1.msra.mxu0 0.0
    %803 = vmatprep.subr.mxu0 0.0
    %804 = vmatpush1.msra.mxu0 0.0
    %805 = vmatprep.subr.mxu0 0.0
    %806 = vmatpush1.msra.mxu0 0.0
    %807 = vmatprep.subr.mxu0 0.0
    %808 = vmatpush1.msra.mxu0 0.0
    %809 = vmatprep.subr.mxu0 0.0
    %810 = vmatpush1.msra.mxu0 0.0
    %811 = vmatprep.subr.mxu0 0.0
    %812 = vmatpush1.msra.mxu0 0.0
    %813 = vmatprep.subr.mxu0 0.0
    %814 = vmatpush1.msra.mxu0 0.0
    %815 = vmatprep.subr.mxu0 0.0
    %816 = vmatpush1.msra.mxu0 0.0
    %817 = vmatprep.subr.mxu0 0.0
    %818 = vmatpush1.msra.mxu0 0.0
    %819 = vmatprep.subr.mxu0 0.0
    %820 = vmatpush1.msra.mxu0 0.0
    %821 = vmatprep.subr.mxu0 0.0
    %822 = vmatpush1.msra.mxu0 0.0
    %823 = vmatprep.subr.mxu0 0.0
    %824 = vmatpush1.msra.mxu0 0.0
    %825 = vmatprep.mubr.f32.mxu0 0.0
    %826 = vmatmul.mubr.f32.gmra.mrb[0].mxu0 %v759
    %v827 = vpop.f32.mrb[0].mxu0
    %v828 = vadd.f32 0.0, %v827
    %v829 = vpop.f32.mrb[0].mxu0
    %v830 = vadd.f32 0.0, %v829
    %831 = vdwg.mxu0
    %s832 = scalar_lea.vmem [#allocation2], 12
    %v833 = vld [vmem:[%s832] sm:$0xf]
    %v834 = vadd.f32 %v828, %v833
    %s835 = scalar_lea.vmem [#allocation2], 16
    %v836 = vld [vmem:[%s835] sm:$0xf]
    %v839 = vunpack.c.l.s4 1983009808
    %v840 = vunpack.c.0.s8 %v839
    %v841 = vlaneseq
    %v842 = vshrl.u32 %v841, 7
    %v843 = vsub.s32 %v840, %v842
    %v844 = vrot.slane %v836, %v843
    %v845 = vcombine.high %v844, %v844
    %v847 = vadd.f32 %v830, %v845
    %v848 = vxor.u32 %v834, 2147483648
    %v849 = vmul.f32 %v848, 1.442695
    %v850 = vpow.pop %v849
    %v851 = vadd.f32 %v850, 1.0
    %v852 = vrcp.pop %v851
    %v853 = vmul.f32 1.0, %v852
    %v854 = vtanh.pop %v834
    %v855 = vmul.f32 %v853, %v711
    %857 = vrot.lane.b32.xlu0 %v854, 32
    %v858 = vpop.permute.xlu0 %857
    %v860 = vmul.f32 %v853, %v858
    %862 = vrot.lane.b32.xlu0 %v860, 32
    %v863 = vpop.permute.xlu0 %862
    %v865 = vadd.f32 %v855, %v863
    %v866 = vtanh.pop %v865
    %868 = vrot.lane.b32.xlu0 %v866, 32
    %v869 = vpop.permute.xlu0 %868
    %v871 = vmul.f32 %v853, %v869
    %v872 = vxor.u32 %v847, 2147483648
    %v873 = vmul.f32 %v872, 1.442695
    %v874 = vpow.pop %v873
    %v875 = vadd.f32 %v874, 1.0
    %v876 = vrcp.pop %v875
    %v877 = vmul.f32 1.0, %v876
    %v878 = vtanh.pop %v847
    %v879 = vmul.f32 %v877, %v735
    %881 = vrot.lane.b32.xlu0 %v878, 32
    %v882 = vpop.permute.xlu0 %881
    %v884 = vmul.f32 %v877, %v882
    %886 = vrot.lane.b32.xlu0 %v884, 32
    %v887 = vpop.permute.xlu0 %886
    %v889 = vadd.f32 %v879, %v887
    %v890 = vtanh.pop %v889
    %892 = vrot.lane.b32.xlu0 %v890, 32
    %v893 = vpop.permute.xlu0 %892
    %v895 = vmul.f32 %v877, %v893
    %897 = vrot.lane.b32.xlu0 %v871, 64
    %v898 = vpop.permute.xlu0 %897
    %s900 = scalar_lea.vmem [#allocation3], 6
    %901 = vst.msk [vmem:[%s900] sm:$0x3] %vm437, %v898
    %903 = vrot.lane.b32.xlu0 %v895, 64
    %v904 = vpop.permute.xlu0 %903
    %s906 = scalar_lea.vmem [#allocation4], 8
    %907 = vst.msk [vmem:[%s906] sm:$0x3] %vm437, %v904
    %908 = vrot.lane.b32.xlu0 %v895, 96
    %v909 = vpop.permute.xlu0 %908
    %v911 = vsel %vm448, %v898, %v909
    %v913 = vsel %vm295, %v911, 0
    %915 = vmatprep.subr.mxu0 %v280
    %916 = vmatpush1.msra.mxu0 %v279
    %917 = vmatprep.subr.mxu0 %v282
    %918 = vmatpush1.msra.mxu0 %v281
    %919 = vmatprep.subr.mxu0 %v284
    %920 = vmatpush1.msra.mxu0 %v283
    %921 = vmatprep.subr.mxu0 %v286
    %922 = vmatpush1.msra.mxu0 %v285
    %923 = vmatprep.subr.mxu0 %v288
    %924 = vmatpush1.msra.mxu0 %v287
    %925 = vmatprep.subr.mxu0 %v290
    %926 = vmatpush1.msra.mxu0 %v289
    %927 = vmatprep.subr.mxu0 %v292
    %928 = vmatpush1.msra.mxu0 %v291
    %929 = vmatprep.subr.mxu0 %v294
    %930 = vmatpush1.msra.mxu0 %v293
    %931 = vmatprep.subr.mxu0 0.0
    %932 = vmatpush1.msra.mxu0 0.0
    %933 = vmatprep.subr.mxu0 0.0
    %934 = vmatpush1.msra.mxu0 0.0
    %935 = vmatprep.subr.mxu0 0.0
    %936 = vmatpush1.msra.mxu0 0.0
    %937 = vmatprep.subr.mxu0 0.0
    %938 = vmatpush1.msra.mxu0 0.0
    %939 = vmatprep.subr.mxu0 0.0
    %940 = vmatpush1.msra.mxu0 0.0
    %941 = vmatprep.subr.mxu0 0.0
    %942 = vmatpush1.msra.mxu0 0.0
    %943 = vmatprep.subr.mxu0 0.0
    %944 = vmatpush1.msra.mxu0 0.0
    %945 = vmatprep.subr.mxu0 0.0
    %946 = vmatpush1.msra.mxu0 0.0
    %947 = vmatprep.subr.mxu0 0.0
    %948 = vmatpush1.msra.mxu0 0.0
    %949 = vmatprep.subr.mxu0 0.0
    %950 = vmatpush1.msra.mxu0 0.0
    %951 = vmatprep.subr.mxu0 0.0
    %952 = vmatpush1.msra.mxu0 0.0
    %953 = vmatprep.subr.mxu0 0.0
    %954 = vmatpush1.msra.mxu0 0.0
    %955 = vmatprep.subr.mxu0 0.0
    %956 = vmatpush1.msra.mxu0 0.0
    %957 = vmatprep.subr.mxu0 0.0
    %958 = vmatpush1.msra.mxu0 0.0
    %959 = vmatprep.subr.mxu0 0.0
    %960 = vmatpush1.msra.mxu0 0.0
    %961 = vmatprep.subr.mxu0 0.0
    %962 = vmatpush1.msra.mxu0 0.0
    %963 = vmatprep.subr.mxu0 0.0
    %964 = vmatpush1.msra.mxu0 0.0
    %965 = vmatprep.subr.mxu0 0.0
    %966 = vmatpush1.msra.mxu0 0.0
    %967 = vmatprep.subr.mxu0 0.0
    %968 = vmatpush1.msra.mxu0 0.0
    %969 = vmatprep.subr.mxu0 0.0
    %970 = vmatpush1.msra.mxu0 0.0
    %971 = vmatprep.subr.mxu0 0.0
    %972 = vmatpush1.msra.mxu0 0.0
    %973 = vmatprep.subr.mxu0 0.0
    %974 = vmatpush1.msra.mxu0 0.0
    %975 = vmatprep.subr.mxu0 0.0
    %976 = vmatpush1.msra.mxu0 0.0
    %977 = vmatprep.subr.mxu0 0.0
    %978 = vmatpush1.msra.mxu0 0.0
    %979 = vmatprep.mubr.f32.mxu0 0.0
    %980 = vmatmul.mubr.f32.gmra.mrb[0].mxu0 %v913
    %v981 = vpop.f32.mrb[0].mxu0
    %v982 = vadd.f32 0.0, %v981
    %v983 = vpop.f32.mrb[0].mxu0
    %v984 = vadd.f32 0.0, %v983
    %985 = vdwg.mxu0
    %v986 = vld [vmem:[%s835] sm:$0xf]
    %v987 = vadd.f32 %v982, %v986
    %v988 = vld [vmem:[%s832] sm:$0xf]
    %v991 = vunpack.c.l.s4 1983009808
    %v992 = vunpack.c.0.s8 %v991
    %v993 = vlaneseq
    %v994 = vshrl.u32 %v993, 7
    %v995 = vsub.s32 %v992, %v994
    %v996 = vrot.slane %v988, %v995
    %v997 = vcombine.high %v996, %v996
    %v999 = vadd.f32 %v984, %v997
    %v1000 = vxor.u32 %v987, 2147483648
    %v1001 = vmul.f32 %v1000, 1.442695
    %v1002 = vpow.pop %v1001
    %v1003 = vadd.f32 %v1002, 1.0
    %v1004 = vrcp.pop %v1003
    %v1005 = vmul.f32 1.0, %v1004
    %v1006 = vtanh.pop %v987
    %v1007 = vmul.f32 %v1005, %v865
    %1009 = vrot.lane.b32.xlu0 %v1006, 32
    %v1010 = vpop.permute.xlu0 %1009
    %v1012 = vmul.f32 %v1005, %v1010
    %1014 = vrot.lane.b32.xlu0 %v1012, 32
    %v1015 = vpop.permute.xlu0 %1014
    %v1017 = vadd.f32 %v1007, %v1015
    %v1018 = vtanh.pop %v1017
    %1020 = vrot.lane.b32.xlu0 %v1018, 32
    %v1021 = vpop.permute.xlu0 %1020
    %v1023 = vmul.f32 %v1005, %v1021
    %v1024 = vxor.u32 %v999, 2147483648
    %v1025 = vmul.f32 %v1024, 1.442695
    %v1026 = vpow.pop %v1025
    %v1027 = vadd.f32 %v1026, 1.0
    %v1028 = vrcp.pop %v1027
    %v1029 = vmul.f32 1.0, %v1028
    %v1030 = vtanh.pop %v999
    %v1031 = vmul.f32 %v1029, %v889
    %1033 = vrot.lane.b32.xlu0 %v1030, 32
    %v1034 = vpop.permute.xlu0 %1033
    %v1036 = vmul.f32 %v1029, %v1034
    %1038 = vrot.lane.b32.xlu0 %v1036, 32
    %v1039 = vpop.permute.xlu0 %1038
    %v1041 = vadd.f32 %v1031, %v1039
    %v1042 = vtanh.pop %v1041
    %1044 = vrot.lane.b32.xlu0 %v1042, 32
    %v1045 = vpop.permute.xlu0 %1044
    %v1047 = vmul.f32 %v1029, %v1045
    %1049 = vrot.lane.b32.xlu0 %v1023, 64
    %v1050 = vpop.permute.xlu0 %1049
    %s1052 = scalar_lea.vmem [#allocation3], 8
    %1053 = vst.msk [vmem:[%s1052] sm:$0x3] %vm437, %v1050
    %1055 = vrot.lane.b32.xlu0 %v1047, 64
    %v1056 = vpop.permute.xlu0 %1055
    %s1058 = scalar_lea.vmem [#allocation4], 6
    %1059 = vst.msk [vmem:[%s1058] sm:$0x3] %vm437, %v1056
    %1060 = vrot.lane.b32.xlu0 %v1047, 96
    %v1061 = vpop.permute.xlu0 %1060
    %v1063 = vsel %vm448, %v1050, %v1061
    %v1065 = vsel %vm295, %v1063, 0
    %1067 = vmatprep.subr.mxu0 %v280
    %1068 = vmatpush1.msra.mxu0 %v279
    %1069 = vmatprep.subr.mxu0 %v282
    %1070 = vmatpush1.msra.mxu0 %v281
    %1071 = vmatprep.subr.mxu0 %v284
    %1072 = vmatpush1.msra.mxu0 %v283
    %1073 = vmatprep.subr.mxu0 %v286
    %1074 = vmatpush1.msra.mxu0 %v285
    %1075 = vmatprep.subr.mxu0 %v288
    %1076 = vmatpush1.msra.mxu0 %v287
    %1077 = vmatprep.subr.mxu0 %v290
    %1078 = vmatpush1.msra.mxu0 %v289
    %1079 = vmatprep.subr.mxu0 %v292
    %1080 = vmatpush1.msra.mxu0 %v291
    %1081 = vmatprep.subr.mxu0 %v294
    %1082 = vmatpush1.msra.mxu0 %v293
    %1083 = vmatprep.subr.mxu0 0.0
    %1084 = vmatpush1.msra.mxu0 0.0
    %1085 = vmatprep.subr.mxu0 0.0
    %1086 = vmatpush1.msra.mxu0 0.0
    %1087 = vmatprep.subr.mxu0 0.0
    %1088 = vmatpush1.msra.mxu0 0.0
    %1089 = vmatprep.subr.mxu0 0.0
    %1090 = vmatpush1.msra.mxu0 0.0
    %1091 = vmatprep.subr.mxu0 0.0
    %1092 = vmatpush1.msra.mxu0 0.0
    %1093 = vmatprep.subr.mxu0 0.0
    %1094 = vmatpush1.msra.mxu0 0.0
    %1095 = vmatprep.subr.mxu0 0.0
    %1096 = vmatpush1.msra.mxu0 0.0
    %1097 = vmatprep.subr.mxu0 0.0
    %1098 = vmatpush1.msra.mxu0 0.0
    %1099 = vmatprep.subr.mxu0 0.0
    %1100 = vmatpush1.msra.mxu0 0.0
    %1101 = vmatprep.subr.mxu0 0.0
    %1102 = vmatpush1.msra.mxu0 0.0
    %1103 = vmatprep.subr.mxu0 0.0
    %1104 = vmatpush1.msra.mxu0 0.0
    %1105 = vmatprep.subr.mxu0 0.0
    %1106 = vmatpush1.msra.mxu0 0.0
    %1107 = vmatprep.subr.mxu0 0.0
    %1108 = vmatpush1.msra.mxu0 0.0
    %1109 = vmatprep.subr.mxu0 0.0
    %1110 = vmatpush1.msra.mxu0 0.0
    %1111 = vmatprep.subr.mxu0 0.0
    %1112 = vmatpush1.msra.mxu0 0.0
    %1113 = vmatprep.subr.mxu0 0.0
    %1114 = vmatpush1.msra.mxu0 0.0
    %1115 = vmatprep.subr.mxu0 0.0
    %1116 = vmatpush1.msra.mxu0 0.0
    %1117 = vmatprep.subr.mxu0 0.0
    %1118 = vmatpush1.msra.mxu0 0.0
    %1119 = vmatprep.subr.mxu0 0.0
    %1120 = vmatpush1.msra.mxu0 0.0
    %1121 = vmatprep.subr.mxu0 0.0
    %1122 = vmatpush1.msra.mxu0 0.0
    %1123 = vmatprep.subr.mxu0 0.0
    %1124 = vmatpush1.msra.mxu0 0.0
    %1125 = vmatprep.subr.mxu0 0.0
    %1126 = vmatpush1.msra.mxu0 0.0
    %1127 = vmatprep.subr.mxu0 0.0
    %1128 = vmatpush1.msra.mxu0 0.0
    %1129 = vmatprep.subr.mxu0 0.0
    %1130 = vmatpush1.msra.mxu0 0.0
    %1131 = vmatprep.mubr.f32.mxu0 0.0
    %1132 = vmatmul.mubr.f32.gmra.mrb[0].mxu0 %v1065
    %v1133 = vpop.f32.mrb[0].mxu0
    %v1134 = vadd.f32 0.0, %v1133
    %v1135 = vpop.f32.mrb[0].mxu0
    %v1136 = vadd.f32 0.0, %v1135
    %1137 = vdwg.mxu0
    %v1138 = vld [vmem:[%s681] sm:$0xf]
    %v1139 = vadd.f32 %v1134, %v1138
    %v1140 = vld [vmem:[%s678] sm:$0xf]
    %v1143 = vunpack.c.l.s4 1983009808
    %v1144 = vunpack.c.0.s8 %v1143
    %v1145 = vlaneseq
    %v1146 = vshrl.u32 %v1145, 7
    %v1147 = vsub.s32 %v1144, %v1146
    %v1148 = vrot.slane %v1140, %v1147
    %v1149 = vcombine.high %v1148, %v1148
    %v1151 = vadd.f32 %v1136, %v1149
    %v1152 = vxor.u32 %v1139, 2147483648
    %v1153 = vmul.f32 %v1152, 1.442695
    %v1154 = vpow.pop %v1153
    %v1155 = vadd.f32 %v1154, 1.0
    %v1156 = vrcp.pop %v1155
    %v1157 = vmul.f32 1.0, %v1156
    %v1158 = vtanh.pop %v1139
    %v1159 = vmul.f32 %v1157, %v1017
    %1161 = vrot.lane.b32.xlu0 %v1158, 32
    %v1162 = vpop.permute.xlu0 %1161
    %v1164 = vmul.f32 %v1157, %v1162
    %1166 = vrot.lane.b32.xlu0 %v1164, 32
    %v1167 = vpop.permute.xlu0 %1166
    %v1169 = vadd.f32 %v1159, %v1167
    %v1170 = vtanh.pop %v1169
    %1172 = vrot.lane.b32.xlu0 %v1170, 32
    %v1173 = vpop.permute.xlu0 %1172
    %v1175 = vmul.f32 %v1157, %v1173
    %v1176 = vxor.u32 %v1151, 2147483648
    %v1177 = vmul.f32 %v1176, 1.442695
    %v1178 = vpow.pop %v1177
    %v1179 = vadd.f32 %v1178, 1.0
    %v1180 = vrcp.pop %v1179
    %v1181 = vmul.f32 1.0, %v1180
    %v1182 = vtanh.pop %v1151
    %v1183 = vmul.f32 %v1181, %v1041
    %1185 = vrot.lane.b32.xlu0 %v1182, 32
    %v1186 = vpop.permute.xlu0 %1185
    %v1188 = vmul.f32 %v1181, %v1186
    %1190 = vrot.lane.b32.xlu0 %v1188, 32
    %v1191 = vpop.permute.xlu0 %1190
    %v1193 = vadd.f32 %v1183, %v1191
    %v1194 = vtanh.pop %v1193
    %1196 = vrot.lane.b32.xlu0 %v1194, 32
    %v1197 = vpop.permute.xlu0 %1196
    %v1199 = vmul.f32 %v1181, %v1197
    %1201 = vrot.lane.b32.xlu0 %v1175, 64
    %v1202 = vpop.permute.xlu0 %1201
    %s1204 = scalar_lea.vmem [#allocation3], 10
    %1205 = vst.msk [vmem:[%s1204] sm:$0x3] %vm437, %v1202
    %1207 = vrot.lane.b32.xlu0 %v1199, 64
    %v1208 = vpop.permute.xlu0 %1207
    %s1210 = scalar_lea.vmem [#allocation4], 4
    %1211 = vst.msk [vmem:[%s1210] sm:$0x3] %vm437, %v1208
    %1212 = vrot.lane.b32.xlu0 %v1199, 96
    %v1213 = vpop.permute.xlu0 %1212
    %v1215 = vsel %vm448, %v1202, %v1213
    %v1217 = vsel %vm295, %v1215, 0
    %1219 = vmatprep.subr.mxu0 %v280
    %1220 = vmatpush1.msra.mxu0 %v279
    %1221 = vmatprep.subr.mxu0 %v282
    %1222 = vmatpush1.msra.mxu0 %v281
    %1223 = vmatprep.subr.mxu0 %v284
    %1224 = vmatpush1.msra.mxu0 %v283
    %1225 = vmatprep.subr.mxu0 %v286
    %1226 = vmatpush1.msra.mxu0 %v285
    %1227 = vmatprep.subr.mxu0 %v288
    %1228 = vmatpush1.msra.mxu0 %v287
    %1229 = vmatprep.subr.mxu0 %v290
    %1230 = vmatpush1.msra.mxu0 %v289
    %1231 = vmatprep.subr.mxu0 %v292
    %1232 = vmatpush1.msra.mxu0 %v291
    %1233 = vmatprep.subr.mxu0 %v294
    %1234 = vmatpush1.msra.mxu0 %v293
    %1235 = vmatprep.subr.mxu0 0.0
    %1236 = vmatpush1.msra.mxu0 0.0
    %1237 = vmatprep.subr.mxu0 0.0
    %1238 = vmatpush1.msra.mxu0 0.0
    %1239 = vmatprep.subr.mxu0 0.0
    %1240 = vmatpush1.msra.mxu0 0.0
    %1241 = vmatprep.subr.mxu0 0.0
    %1242 = vmatpush1.msra.mxu0 0.0
    %1243 = vmatprep.subr.mxu0 0.0
    %1244 = vmatpush1.msra.mxu0 0.0
    %1245 = vmatprep.subr.mxu0 0.0
    %1246 = vmatpush1.msra.mxu0 0.0
    %1247 = vmatprep.subr.mxu0 0.0
    %1248 = vmatpush1.msra.mxu0 0.0
    %1249 = vmatprep.subr.mxu0 0.0
    %1250 = vmatpush1.msra.mxu0 0.0
    %1251 = vmatprep.subr.mxu0 0.0
    %1252 = vmatpush1.msra.mxu0 0.0
    %1253 = vmatprep.subr.mxu0 0.0
    %1254 = vmatpush1.msra.mxu0 0.0
    %1255 = vmatprep.subr.mxu0 0.0
    %1256 = vmatpush1.msra.mxu0 0.0
    %1257 = vmatprep.subr.mxu0 0.0
    %1258 = vmatpush1.msra.mxu0 0.0
    %1259 = vmatprep.subr.mxu0 0.0
    %1260 = vmatpush1.msra.mxu0 0.0
    %1261 = vmatprep.subr.mxu0 0.0
    %1262 = vmatpush1.msra.mxu0 0.0
    %1263 = vmatprep.subr.mxu0 0.0
    %1264 = vmatpush1.msra.mxu0 0.0
    %1265 = vmatprep.subr.mxu0 0.0
    %1266 = vmatpush1.msra.mxu0 0.0
    %1267 = vmatprep.subr.mxu0 0.0
    %1268 = vmatpush1.msra.mxu0 0.0
    %1269 = vmatprep.subr.mxu0 0.0
    %1270 = vmatpush1.msra.mxu0 0.0
    %1271 = vmatprep.subr.mxu0 0.0
    %1272 = vmatpush1.msra.mxu0 0.0
    %1273 = vmatprep.subr.mxu0 0.0
    %1274 = vmatpush1.msra.mxu0 0.0
    %1275 = vmatprep.subr.mxu0 0.0
    %1276 = vmatpush1.msra.mxu0 0.0
    %1277 = vmatprep.subr.mxu0 0.0
    %1278 = vmatpush1.msra.mxu0 0.0
    %1279 = vmatprep.subr.mxu0 0.0
    %1280 = vmatpush1.msra.mxu0 0.0
    %1281 = vmatprep.subr.mxu0 0.0
    %1282 = vmatpush1.msra.mxu0 0.0
    %1283 = vmatprep.mubr.f32.mxu0 0.0
    %1284 = vmatmul.mubr.f32.gmra.mrb[0].mxu0 %v1217
    %v1285 = vpop.f32.mrb[0].mxu0
    %v1286 = vadd.f32 0.0, %v1285
    %v1287 = vpop.f32.mrb[0].mxu0
    %v1288 = vadd.f32 0.0, %v1287
    %1289 = vdwg.mxu0
    %v1290 = vld [vmem:[%s527] sm:$0xf]
    %v1291 = vadd.f32 %v1286, %v1290
    %v1292 = vld [vmem:[%s524] sm:$0xf]
    %v1295 = vunpack.c.l.s4 1983009808
    %v1296 = vunpack.c.0.s8 %v1295
    %v1297 = vlaneseq
    %v1298 = vshrl.u32 %v1297, 7
    %v1299 = vsub.s32 %v1296, %v1298
    %v1300 = vrot.slane %v1292, %v1299
    %v1301 = vcombine.high %v1300, %v1300
    %v1303 = vadd.f32 %v1288, %v1301
    %v1304 = vxor.u32 %v1291, 2147483648
    %v1305 = vmul.f32 %v1304, 1.442695
    %v1306 = vpow.pop %v1305
    %v1307 = vadd.f32 %v1306, 1.0
    %v1308 = vrcp.pop %v1307
    %v1309 = vmul.f32 1.0, %v1308
    %v1310 = vtanh.pop %v1291
    %v1311 = vmul.f32 %v1309, %v1169
    %1313 = vrot.lane.b32.xlu0 %v1310, 32
    %v1314 = vpop.permute.xlu0 %1313
    %v1316 = vmul.f32 %v1309, %v1314
    %1318 = vrot.lane.b32.xlu0 %v1316, 32
    %v1319 = vpop.permute.xlu0 %1318
    %v1321 = vadd.f32 %v1311, %v1319
    %v1322 = vtanh.pop %v1321
    %1324 = vrot.lane.b32.xlu0 %v1322, 32
    %v1325 = vpop.permute.xlu0 %1324
    %v1327 = vmul.f32 %v1309, %v1325
    %v1328 = vxor.u32 %v1303, 2147483648
    %v1329 = vmul.f32 %v1328, 1.442695
    %v1330 = vpow.pop %v1329
    %v1331 = vadd.f32 %v1330, 1.0
    %v1332 = vrcp.pop %v1331
    %v1333 = vmul.f32 1.0, %v1332
    %v1334 = vtanh.pop %v1303
    %v1335 = vmul.f32 %v1333, %v1193
    %1337 = vrot.lane.b32.xlu0 %v1334, 32
    %v1338 = vpop.permute.xlu0 %1337
    %v1340 = vmul.f32 %v1333, %v1338
    %1342 = vrot.lane.b32.xlu0 %v1340, 32
    %v1343 = vpop.permute.xlu0 %1342
    %v1345 = vadd.f32 %v1335, %v1343
    %v1346 = vtanh.pop %v1345
    %1348 = vrot.lane.b32.xlu0 %v1346, 32
    %v1349 = vpop.permute.xlu0 %1348
    %v1351 = vmul.f32 %v1333, %v1349
    %1353 = vrot.lane.b32.xlu0 %v1327, 64
    %v1354 = vpop.permute.xlu0 %1353
    %s1356 = scalar_lea.vmem [#allocation3], 12
    %1357 = vst.msk [vmem:[%s1356] sm:$0x3] %vm437, %v1354
    %1359 = vrot.lane.b32.xlu0 %v1351, 64
    %v1360 = vpop.permute.xlu0 %1359
    %s1362 = scalar_lea.vmem [#allocation4], 2
    %1363 = vst.msk [vmem:[%s1362] sm:$0x3] %vm437, %v1360
    %1364 = vrot.lane.b32.xlu0 %v1351, 96
    %v1365 = vpop.permute.xlu0 %1364
    %v1367 = vsel %vm448, %v1354, %v1365
    %v1369 = vsel %vm295, %v1367, 0
    %1371 = vmatprep.subr.mxu0 %v280
    %1372 = vmatpush1.msra.mxu0 %v279
    %1373 = vmatprep.subr.mxu0 %v282
    %1374 = vmatpush1.msra.mxu0 %v281
    %1375 = vmatprep.subr.mxu0 %v284
    %1376 = vmatpush1.msra.mxu0 %v283
    %1377 = vmatprep.subr.mxu0 %v286
    %1378 = vmatpush1.msra.mxu0 %v285
    %1379 = vmatprep.subr.mxu0 %v288
    %1380 = vmatpush1.msra.mxu0 %v287
    %1381 = vmatprep.subr.mxu0 %v290
    %1382 = vmatpush1.msra.mxu0 %v289
    %1383 = vmatprep.subr.mxu0 %v292
    %1384 = vmatpush1.msra.mxu0 %v291
    %1385 = vmatprep.subr.mxu0 %v294
    %1386 = vmatpush1.msra.mxu0 %v293
    %1387 = vmatprep.subr.mxu0 0.0
    %1388 = vmatpush1.msra.mxu0 0.0
    %1389 = vmatprep.subr.mxu0 0.0
    %1390 = vmatpush1.msra.mxu0 0.0
    %1391 = vmatprep.subr.mxu0 0.0
    %1392 = vmatpush1.msra.mxu0 0.0
    %1393 = vmatprep.subr.mxu0 0.0
    %1394 = vmatpush1.msra.mxu0 0.0
    %1395 = vmatprep.subr.mxu0 0.0
    %1396 = vmatpush1.msra.mxu0 0.0
    %1397 = vmatprep.subr.mxu0 0.0
    %1398 = vmatpush1.msra.mxu0 0.0
    %1399 = vmatprep.subr.mxu0 0.0
    %1400 = vmatpush1.msra.mxu0 0.0
    %1401 = vmatprep.subr.mxu0 0.0
    %1402 = vmatpush1.msra.mxu0 0.0
    %1403 = vmatprep.subr.mxu0 0.0
    %1404 = vmatpush1.msra.mxu0 0.0
    %1405 = vmatprep.subr.mxu0 0.0
    %1406 = vmatpush1.msra.mxu0 0.0
    %1407 = vmatprep.subr.mxu0 0.0
    %1408 = vmatpush1.msra.mxu0 0.0
    %1409 = vmatprep.subr.mxu0 0.0
    %1410 = vmatpush1.msra.mxu0 0.0
    %1411 = vmatprep.subr.mxu0 0.0
    %1412 = vmatpush1.msra.mxu0 0.0
    %1413 = vmatprep.subr.mxu0 0.0
    %1414 = vmatpush1.msra.mxu0 0.0
    %1415 = vmatprep.subr.mxu0 0.0
    %1416 = vmatpush1.msra.mxu0 0.0
    %1417 = vmatprep.subr.mxu0 0.0
    %1418 = vmatpush1.msra.mxu0 0.0
    %1419 = vmatprep.subr.mxu0 0.0
    %1420 = vmatpush1.msra.mxu0 0.0
    %1421 = vmatprep.subr.mxu0 0.0
    %1422 = vmatpush1.msra.mxu0 0.0
    %1423 = vmatprep.subr.mxu0 0.0
    %1424 = vmatpush1.msra.mxu0 0.0
    %1425 = vmatprep.subr.mxu0 0.0
    %1426 = vmatpush1.msra.mxu0 0.0
    %1427 = vmatprep.subr.mxu0 0.0
    %1428 = vmatpush1.msra.mxu0 0.0
    %1429 = vmatprep.subr.mxu0 0.0
    %1430 = vmatpush1.msra.mxu0 0.0
    %1431 = vmatprep.subr.mxu0 0.0
    %1432 = vmatpush1.msra.mxu0 0.0
    %1433 = vmatprep.subr.mxu0 0.0
    %1434 = vmatpush1.msra.mxu0 0.0
    %1435 = vmatprep.mubr.f32.mxu0 0.0
    %1436 = vmatmul.mubr.f32.gmra.mrb[0].mxu0 %v1369
    %v1437 = vpop.f32.mrb[0].mxu0
    %v1438 = vadd.f32 0.0, %v1437
    %v1439 = vpop.f32.mrb[0].mxu0
    %v1440 = vadd.f32 0.0, %v1439
    %1441 = vdwg.mxu0
    %v1442 = vld [vmem:[%s372] sm:$0xf]
    %v1443 = vadd.f32 %v1438, %v1442
    %v1444 = vld [vmem:[#allocation2] sm:$0xf]
    %v1447 = vunpack.c.l.s4 1983009808
    %v1448 = vunpack.c.0.s8 %v1447
    %v1449 = vlaneseq
    %v1450 = vshrl.u32 %v1449, 7
    %v1451 = vsub.s32 %v1448, %v1450
    %v1452 = vrot.slane %v1444, %v1451
    %v1453 = vcombine.high %v1452, %v1452
    %v1455 = vadd.f32 %v1440, %v1453
    %v1456 = vxor.u32 %v1443, 2147483648
    %v1457 = vmul.f32 %v1456, 1.442695
    %v1458 = vpow.pop %v1457
    %v1459 = vadd.f32 %v1458, 1.0
    %v1460 = vrcp.pop %v1459
    %v1461 = vmul.f32 1.0, %v1460
    %v1462 = vtanh.pop %v1443
    %v1463 = vmul.f32 %v1461, %v1321
    %1465 = vrot.lane.b32.xlu0 %v1462, 32
    %v1466 = vpop.permute.xlu0 %1465
    %v1468 = vmul.f32 %v1461, %v1466
    %1470 = vrot.lane.b32.xlu0 %v1468, 32
    %v1471 = vpop.permute.xlu0 %1470
    %v1473 = vadd.f32 %v1463, %v1471
    %v1474 = vtanh.pop %v1473
    %1476 = vrot.lane.b32.xlu0 %v1474, 32
    %v1477 = vpop.permute.xlu0 %1476
    %v1479 = vmul.f32 %v1461, %v1477
    %v1480 = vxor.u32 %v1455, 2147483648
    %v1481 = vmul.f32 %v1480, 1.442695
    %v1482 = vpow.pop %v1481
    %v1483 = vadd.f32 %v1482, 1.0
    %v1484 = vrcp.pop %v1483
    %v1485 = vmul.f32 1.0, %v1484
    %v1486 = vtanh.pop %v1455
    %v1487 = vmul.f32 %v1485, %v1345
    %1489 = vrot.lane.b32.xlu0 %v1486, 32
    %v1490 = vpop.permute.xlu0 %1489
    %v1492 = vmul.f32 %v1485, %v1490
    %1494 = vrot.lane.b32.xlu0 %v1492, 32
    %v1495 = vpop.permute.xlu0 %1494
    %v1497 = vadd.f32 %v1487, %v1495
    %v1498 = vtanh.pop %v1497
    %1500 = vrot.lane.b32.xlu0 %v1498, 32
    %v1501 = vpop.permute.xlu0 %1500
    %v1503 = vmul.f32 %v1485, %v1501
    %1505 = vrot.lane.b32.xlu0 %v1479, 64
    %v1506 = vpop.permute.xlu0 %1505
    %s1508 = scalar_lea.vmem [#allocation3], 14
    %1509 = vst.msk [vmem:[%s1508] sm:$0x3] %vm437, %v1506
    %1511 = vrot.lane.b32.xlu0 %v1503, 64
    %v1512 = vpop.permute.xlu0 %1511
    %1514 = vst.msk [vmem:[#allocation4] sm:$0x3] %vm437, %v1512
    %v1515 = vld [vmem:[#allocation3] sm:$0x3]
    %v1516 = vld [vmem:[#allocation3 + $0x2] sm:$0x3]
    %v1517 = vld [vmem:[#allocation3 + $0x4] sm:$0x3]
    %v1518 = vld [vmem:[#allocation3 + $0x6] sm:$0x3]
    %v1519 = vld [vmem:[#allocation3 + $0x8] sm:$0x3]
    %v1520 = vld [vmem:[#allocation3 + $0xa] sm:$0x3]
    %v1521 = vld [vmem:[#allocation3 + $0xc] sm:$0x3]
    %v1522 = vld [vmem:[#allocation3 + $0xe] sm:$0x3]
    %v1523 = vld [vmem:[#allocation4] sm:$0x3]
    %v1524 = vld [vmem:[#allocation4 + $0x2] sm:$0x3]
    %v1525 = vld [vmem:[#allocation4 + $0x4] sm:$0x3]
    %v1526 = vld [vmem:[#allocation4 + $0x6] sm:$0x3]
    %v1527 = vld [vmem:[#allocation4 + $0x8] sm:$0x3]
    %v1528 = vld [vmem:[#allocation4 + $0xa] sm:$0x3]
    %v1529 = vld [vmem:[#allocation4 + $0xc] sm:$0x3]
    %v1530 = vld [vmem:[#allocation4 + $0xe] sm:$0x3]
    %v1531 = vld [vmem:[#allocation13] sm:$0x3]
    %v1532 = vld [vmem:[%s4] sm:$0xff]
    %v1533 = vld [vmem:[%s4 + $0x8] sm:$0xff]
    %v1534 = vld [vmem:[%s4 + $0x10] sm:$0xff]
    %v1535 = vld [vmem:[%s4 + $0x18] sm:$0xff]
    %v1536 = vld [vmem:[%s4 + $0x20] sm:$0xff]
    %v1537 = vld [vmem:[%s4 + $0x28] sm:$0xff]
    %v1538 = vld [vmem:[%s4 + $0x30] sm:$0xff]
    %v1539 = vld [vmem:[%s4 + $0x38] sm:$0xff]
    %v1548 = vcombine.low %v1515, %v1516
    %v1549 = vcombine.low %v1517, %v1518
    %v1551 = vunpack.c.l.s4 1983009808
    %v1552 = vunpack.c.0.s8 %v1551
    %v1553 = vlaneseq
    %v1554 = vshrl.u32 %v1553, 7
    %v1555 = vsub.s32 %v1552, %v1554
    %v1556 = vrot.slane %v1548, %v1555
    %v1558 = vunpack.c.l.s4 1983009808
    %v1559 = vunpack.c.0.s8 %v1558
    %v1560 = vlaneseq
    %v1561 = vshrl.u32 %v1560, 7
    %v1562 = vsub.s32 %v1559, %v1561
    %v1563 = vrot.slane %v1549, %v1562
    %v1564 = vcombine.low %v1556, %v1563
    %v1565 = vcombine.low %v1519, %v1520
    %v1566 = vcombine.low %v1521, %v1522
    %v1568 = vunpack.c.l.s4 1983009808
    %v1569 = vunpack.c.0.s8 %v1568
    %v1570 = vlaneseq
    %v1571 = vshrl.u32 %v1570, 7
    %v1572 = vsub.s32 %v1569, %v1571
    %v1573 = vrot.slane %v1565, %v1572
    %v1575 = vunpack.c.l.s4 1983009808
    %v1576 = vunpack.c.0.s8 %v1575
    %v1577 = vlaneseq
    %v1578 = vshrl.u32 %v1577, 7
    %v1579 = vsub.s32 %v1576, %v1578
    %v1580 = vrot.slane %v1566, %v1579
    %v1581 = vcombine.low %v1573, %v1580
    %v1582 = vsel %vm448, %v1564, 0
    %v1584 = vsel %vm448, %v1581, 0
    %1586 = vmatprep.subr.mxu0 %v1533
    %1587 = vmatpush1.msra.mxu0 %v1532
    %1588 = vmatprep.subr.mxu0 %v1535
    %1589 = vmatpush1.msra.mxu0 %v1534
    %1590 = vmatprep.subr.mxu0 %v1537
    %1591 = vmatpush1.msra.mxu0 %v1536
    %1592 = vmatprep.subr.mxu0 %v1539
    %1593 = vmatpush1.msra.mxu0 %v1538
    %1594 = vmatprep.subr.mxu0 0.0
    %1595 = vmatpush1.msra.mxu0 0.0
    %1596 = vmatprep.subr.mxu0 0.0
    %1597 = vmatpush1.msra.mxu0 0.0
    %1598 = vmatprep.subr.mxu0 0.0
    %1599 = vmatpush1.msra.mxu0 0.0
    %1600 = vmatprep.subr.mxu0 0.0
    %1601 = vmatpush1.msra.mxu0 0.0
    %1602 = vmatprep.subr.mxu0 0.0
    %1603 = vmatpush1.msra.mxu0 0.0
    %1604 = vmatprep.subr.mxu0 0.0
    %1605 = vmatpush1.msra.mxu0 0.0
    %1606 = vmatprep.subr.mxu0 0.0
    %1607 = vmatpush1.msra.mxu0 0.0
    %1608 = vmatprep.subr.mxu0 0.0
    %1609 = vmatpush1.msra.mxu0 0.0
    %1610 = vmatprep.subr.mxu0 0.0
    %1611 = vmatpush1.msra.mxu0 0.0
    %1612 = vmatprep.subr.mxu0 0.0
    %1613 = vmatpush1.msra.mxu0 0.0
    %1614 = vmatprep.subr.mxu0 0.0
    %1615 = vmatpush1.msra.mxu0 0.0
    %1616 = vmatprep.subr.mxu0 0.0
    %1617 = vmatpush1.msra.mxu0 0.0
    %1618 = vmatprep.subr.mxu0 0.0
    %1619 = vmatpush1.msra.mxu0 0.0
    %1620 = vmatprep.subr.mxu0 0.0
    %1621 = vmatpush1.msra.mxu0 0.0
    %1622 = vmatprep.subr.mxu0 0.0
    %1623 = vmatpush1.msra.mxu0 0.0
    %1624 = vmatprep.subr.mxu0 0.0
    %1625 = vmatpush1.msra.mxu0 0.0
    %1626 = vmatprep.subr.mxu0 0.0
    %1627 = vmatpush1.msra.mxu0 0.0
    %1628 = vmatprep.subr.mxu0 0.0
    %1629 = vmatpush1.msra.mxu0 0.0
    %1630 = vmatprep.subr.mxu0 0.0
    %1631 = vmatpush1.msra.mxu0 0.0
    %1632 = vmatprep.subr.mxu0 0.0
    %1633 = vmatpush1.msra.mxu0 0.0
    %1634 = vmatprep.subr.mxu0 0.0
    %1635 = vmatpush1.msra.mxu0 0.0
    %1636 = vmatprep.subr.mxu0 0.0
    %1637 = vmatpush1.msra.mxu0 0.0
    %1638 = vmatprep.subr.mxu0 0.0
    %1639 = vmatpush1.msra.mxu0 0.0
    %1640 = vmatprep.subr.mxu0 0.0
    %1641 = vmatpush1.msra.mxu0 0.0
    %1642 = vmatprep.subr.mxu0 0.0
    %1643 = vmatpush1.msra.mxu0 0.0
    %1644 = vmatprep.subr.mxu0 0.0
    %1645 = vmatpush1.msra.mxu0 0.0
    %1646 = vmatprep.subr.mxu0 0.0
    %1647 = vmatpush1.msra.mxu0 0.0
    %1648 = vmatprep.subr.mxu0 0.0
    %1649 = vmatpush1.msra.mxu0 0.0
    %1650 = vmatprep.mubr.f32.mxu0 0.0
    %1651 = vmatmul.mubr.f32.gmra.mrb[0].mxu0 %v1582
    %v1652 = vpop.f32.mrb[0].mxu0
    %v1653 = vadd.f32 0.0, %v1652
    %v1654 = vpop.f32.mrb[0].mxu0
    %v1655 = vadd.f32 0.0, %v1654
    %1656 = vmatprep.mubr.f32.mxu0 0.0
    %1657 = vmatmul.mubr.f32.gmra.mrb[0].mxu0 %v1584
    %v1658 = vpop.f32.mrb[0].mxu0
    %v1659 = vadd.f32 0.0, %v1658
    %v1660 = vpop.f32.mrb[0].mxu0
    %v1661 = vadd.f32 0.0, %v1660
    %1662 = vdwg.mxu0
    %v1664 = vlaneseq
    %v1665 = vshrl.u32 %v1664, 7
    %v1666 = vsub.s32 0, %v1665
    %v1667 = vrot.slane %v1531, %v1666
    %v1668 = vlaneseq
    %v1669 = vshrl.u32 %v1668, 7
    %v1670 = vsub.s32 1, %v1669
    %v1671 = vrot.slane %v1531, %v1670
    %v1674 = vadd.f32 %v1667, %v1653
    %v1675 = vadd.f32 %v1671, %v1655
    %v1676 = vadd.f32 %v1667, %v1659
    %v1677 = vadd.f32 %v1671, %v1661
    %v1678 = vld [vmem:[%s5] sm:$0xff]
    %v1679 = vld [vmem:[%s5 + $0x8] sm:$0xff]
    %v1680 = vld [vmem:[%s5 + $0x10] sm:$0xff]
    %v1681 = vld [vmem:[%s5 + $0x18] sm:$0xff]
    %v1682 = vld [vmem:[%s5 + $0x20] sm:$0xff]
    %v1683 = vld [vmem:[%s5 + $0x28] sm:$0xff]
    %v1684 = vld [vmem:[%s5 + $0x30] sm:$0xff]
    %v1685 = vld [vmem:[%s5 + $0x38] sm:$0xff]
    %v1694 = vcombine.low %v1523, %v1524
    %v1695 = vcombine.low %v1525, %v1526
    %v1697 = vunpack.c.l.s4 1983009808
    %v1698 = vunpack.c.0.s8 %v1697
    %v1699 = vlaneseq
    %v1700 = vshrl.u32 %v1699, 7
    %v1701 = vsub.s32 %v1698, %v1700
    %v1702 = vrot.slane %v1694, %v1701
    %v1704 = vunpack.c.l.s4 1983009808
    %v1705 = vunpack.c.0.s8 %v1704
    %v1706 = vlaneseq
    %v1707 = vshrl.u32 %v1706, 7
    %v1708 = vsub.s32 %v1705, %v1707
    %v1709 = vrot.slane %v1695, %v1708
    %v1710 = vcombine.low %v1702, %v1709
    %v1711 = vcombine.low %v1527, %v1528
    %v1712 = vcombine.low %v1529, %v1530
    %v1714 = vunpack.c.l.s4 1983009808
    %v1715 = vunpack.c.0.s8 %v1714
    %v1716 = vlaneseq
    %v1717 = vshrl.u32 %v1716, 7
    %v1718 = vsub.s32 %v1715, %v1717
    %v1719 = vrot.slane %v1711, %v1718
    %v1721 = vunpack.c.l.s4 1983009808
    %v1722 = vunpack.c.0.s8 %v1721
    %v1723 = vlaneseq
    %v1724 = vshrl.u32 %v1723, 7
    %v1725 = vsub.s32 %v1722, %v1724
    %v1726 = vrot.slane %v1712, %v1725
    %v1727 = vcombine.low %v1719, %v1726
    %v1728 = vsel %vm448, %v1710, 0
    %v1730 = vsel %vm448, %v1727, 0
    %1732 = vmatprep.subr.mxu0 %v1679
    %1733 = vmatpush1.msra.mxu0 %v1678
    %1734 = vmatprep.subr.mxu0 %v1681
    %1735 = vmatpush1.msra.mxu0 %v1680
    %1736 = vmatprep.subr.mxu0 %v1683
    %1737 = vmatpush1.msra.mxu0 %v1682
    %1738 = vmatprep.subr.mxu0 %v1685
    %1739 = vmatpush1.msra.mxu0 %v1684
    %1740 = vmatprep.subr.mxu0 0.0
    %1741 = vmatpush1.msra.mxu0 0.0
    %1742 = vmatprep.subr.mxu0 0.0
    %1743 = vmatpush1.msra.mxu0 0.0
    %1744 = vmatprep.subr.mxu0 0.0
    %1745 = vmatpush1.msra.mxu0 0.0
    %1746 = vmatprep.subr.mxu0 0.0
    %1747 = vmatpush1.msra.mxu0 0.0
    %1748 = vmatprep.subr.mxu0 0.0
    %1749 = vmatpush1.msra.mxu0 0.0
    %1750 = vmatprep.subr.mxu0 0.0
    %1751 = vmatpush1.msra.mxu0 0.0
    %1752 = vmatprep.subr.mxu0 0.0
    %1753 = vmatpush1.msra.mxu0 0.0
    %1754 = vmatprep.subr.mxu0 0.0
    %1755 = vmatpush1.msra.mxu0 0.0
    %1756 = vmatprep.subr.mxu0 0.0
    %1757 = vmatpush1.msra.mxu0 0.0
    %1758 = vmatprep.subr.mxu0 0.0
    %1759 = vmatpush1.msra.mxu0 0.0
    %1760 = vmatprep.subr.mxu0 0.0
    %1761 = vmatpush1.msra.mxu0 0.0
    %1762 = vmatprep.subr.mxu0 0.0
    %1763 = vmatpush1.msra.mxu0 0.0
    %1764 = vmatprep.subr.mxu0 0.0
    %1765 = vmatpush1.msra.mxu0 0.0
    %1766 = vmatprep.subr.mxu0 0.0
    %1767 = vmatpush1.msra.mxu0 0.0
    %1768 = vmatprep.subr.mxu0 0.0
    %1769 = vmatpush1.msra.mxu0 0.0
    %1770 = vmatprep.subr.mxu0 0.0
    %1771 = vmatpush1.msra.mxu0 0.0
    %1772 = vmatprep.subr.mxu0 0.0
    %1773 = vmatpush1.msra.mxu0 0.0
    %1774 = vmatprep.subr.mxu0 0.0
    %1775 = vmatpush1.msra.mxu0 0.0
    %1776 = vmatprep.subr.mxu0 0.0
    %1777 = vmatpush1.msra.mxu0 0.0
    %1778 = vmatprep.subr.mxu0 0.0
    %1779 = vmatpush1.msra.mxu0 0.0
    %1780 = vmatprep.subr.mxu0 0.0
    %1781 = vmatpush1.msra.mxu0 0.0
    %1782 = vmatprep.subr.mxu0 0.0
    %1783 = vmatpush1.msra.mxu0 0.0
    %1784 = vmatprep.subr.mxu0 0.0
    %1785 = vmatpush1.msra.mxu0 0.0
    %1786 = vmatprep.subr.mxu0 0.0
    %1787 = vmatpush1.msra.mxu0 0.0
    %1788 = vmatprep.subr.mxu0 0.0
    %1789 = vmatpush1.msra.mxu0 0.0
    %1790 = vmatprep.subr.mxu0 0.0
    %1791 = vmatpush1.msra.mxu0 0.0
    %1792 = vmatprep.subr.mxu0 0.0
    %1793 = vmatpush1.msra.mxu0 0.0
    %1794 = vmatprep.subr.mxu0 0.0
    %1795 = vmatpush1.msra.mxu0 0.0
    %1796 = vmatprep.mubr.f32.mxu0 0.0
    %1797 = vmatmul.mubr.f32.gmra.mrb[0].mxu0 %v1728
    %v1798 = vpop.f32.mrb[0].mxu0
    %v1799 = vadd.f32 0.0, %v1798
    %v1800 = vpop.f32.mrb[0].mxu0
    %v1801 = vadd.f32 0.0, %v1800
    %1802 = vmatprep.mubr.f32.mxu0 0.0
    %1803 = vmatmul.mubr.f32.gmra.mrb[0].mxu0 %v1730
    %v1804 = vpop.f32.mrb[0].mxu0
    %v1805 = vadd.f32 0.0, %v1804
    %v1806 = vpop.f32.mrb[0].mxu0
    %v1807 = vadd.f32 0.0, %v1806
    %1808 = vdwg.mxu0
    %v1809 = vadd.f32 %v1674, %v1799
    %v1810 = vadd.f32 %v1675, %v1801
    %v1811 = vadd.f32 %v1676, %v1805
    %v1812 = vadd.f32 %v1677, %v1807
    %v1817 = vcombine.low %v1809, %v1810
    %v1818 = vcombine.high %v1809, %v1810
    %v1820 = vunpack.c.l.s4 1983009808
    %v1821 = vunpack.c.0.s8 %v1820
    %v1822 = vlaneseq
    %v1823 = vshrl.u32 %v1822, 7
    %v1824 = vsub.s32 %v1821, %v1823
    %v1825 = vrot.slane %v1817, %v1824
    %v1827 = vunpack.c.l.s4 1983009808
    %v1828 = vunpack.c.0.s8 %v1827
    %v1829 = vlaneseq
    %v1830 = vshrl.u32 %v1829, 7
    %v1831 = vsub.s32 %v1828, %v1830
    %v1832 = vrot.slane %v1818, %v1831
    %v1833 = vcombine.high %v1825, %v1825
    %v1834 = vcombine.high %v1832, %v1832
    %v1835 = vcombine.low %v1811, %v1812
    %v1836 = vcombine.high %v1811, %v1812
    %v1838 = vunpack.c.l.s4 1983009808
    %v1839 = vunpack.c.0.s8 %v1838
    %v1840 = vlaneseq
    %v1841 = vshrl.u32 %v1840, 7
    %v1842 = vsub.s32 %v1839, %v1841
    %v1843 = vrot.slane %v1835, %v1842
    %v1845 = vunpack.c.l.s4 1983009808
    %v1846 = vunpack.c.0.s8 %v1845
    %v1847 = vlaneseq
    %v1848 = vshrl.u32 %v1847, 7
    %v1849 = vsub.s32 %v1846, %v1848
    %v1850 = vrot.slane %v1836, %v1849
    %v1851 = vcombine.high %v1843, %v1843
    %v1852 = vcombine.high %v1850, %v1850
    %1861 = vst [vmem:[#allocation2] sm:$0xf] %v1825
    %1862 = vst [vmem:[#allocation2 + $0x4] sm:$0xf] %v1833
    %1863 = vst [vmem:[#allocation2 + $0x8] sm:$0xf] %v1832
    %1864 = vst [vmem:[#allocation2 + $0xc] sm:$0xf] %v1834
    %1865 = vst [vmem:[#allocation2 + $0x10] sm:$0xf] %v1843
    %1866 = vst [vmem:[#allocation2 + $0x14] sm:$0xf] %v1851
    %1867 = vst [vmem:[#allocation2 + $0x18] sm:$0xf] %v1850
    %1868 = vst [vmem:[#allocation2 + $0x1c] sm:$0xf] %v1852
    %v1869 = vld [vmem:[#allocation11] sm:$0xff]
    %v1870 = vld [vmem:[#allocation11 + $0x8] sm:$0xff]
    %v1871 = vld [vmem:[#allocation11 + $0x10] sm:$0xff]
    %v1872 = vld [vmem:[#allocation11 + $0x18] sm:$0xff]
    %v1873 = vld [vmem:[#allocation11 + $0x20] sm:$0xff]
    %v1874 = vld [vmem:[#allocation11 + $0x28] sm:$0xff]
    %v1875 = vld [vmem:[#allocation11 + $0x30] sm:$0xff]
    %v1876 = vld [vmem:[#allocation11 + $0x38] sm:$0xff]
    %v1877 = vld [vmem:[#allocation11 + $0x40] sm:$0xff]
    %v1878 = vld [vmem:[#allocation11 + $0x48] sm:$0xff]
    %v1879 = vld [vmem:[#allocation11 + $0x50] sm:$0xff]
    %v1880 = vld [vmem:[#allocation11 + $0x58] sm:$0xff]
    %v1881 = vld [vmem:[#allocation11 + $0x60] sm:$0xff]
    %v1882 = vld [vmem:[#allocation11 + $0x68] sm:$0xff]
    %v1883 = vld [vmem:[#allocation11 + $0x70] sm:$0xff]
    %v1884 = vld [vmem:[#allocation11 + $0x78] sm:$0xff]
    %1885 = vmatprep.subr.mxu0 %v1870
    %1886 = vmatpush1.msra.mxu0 %v1869
    %1887 = vmatprep.subr.mxu0 %v1872
    %1888 = vmatpush1.msra.mxu0 %v1871
    %1889 = vmatprep.subr.mxu0 %v1874
    %1890 = vmatpush1.msra.mxu0 %v1873
    %1891 = vmatprep.subr.mxu0 %v1876
    %1892 = vmatpush1.msra.mxu0 %v1875
    %1893 = vmatprep.subr.mxu0 %v1878
    %1894 = vmatpush1.msra.mxu0 %v1877
    %1895 = vmatprep.subr.mxu0 %v1880
    %1896 = vmatpush1.msra.mxu0 %v1879
    %1897 = vmatprep.subr.mxu0 %v1882
    %1898 = vmatpush1.msra.mxu0 %v1881
    %1899 = vmatprep.subr.mxu0 %v1884
    %1900 = vmatpush1.msra.mxu0 %v1883
    %1901 = vmatprep.subr.mxu0 0.0
    %1902 = vmatpush1.msra.mxu0 0.0
    %1903 = vmatprep.subr.mxu0 0.0
    %1904 = vmatpush1.msra.mxu0 0.0
    %1905 = vmatprep.subr.mxu0 0.0
    %1906 = vmatpush1.msra.mxu0 0.0
    %1907 = vmatprep.subr.mxu0 0.0
    %1908 = vmatpush1.msra.mxu0 0.0
    %1909 = vmatprep.subr.mxu0 0.0
    %1910 = vmatpush1.msra.mxu0 0.0
    %1911 = vmatprep.subr.mxu0 0.0
    %1912 = vmatpush1.msra.mxu0 0.0
    %1913 = vmatprep.subr.mxu0 0.0
    %1914 = vmatpush1.msra.mxu0 0.0
    %1915 = vmatprep.subr.mxu0 0.0
    %1916 = vmatpush1.msra.mxu0 0.0
    %1917 = vmatprep.subr.mxu0 0.0
    %1918 = vmatpush1.msra.mxu0 0.0
    %1919 = vmatprep.subr.mxu0 0.0
    %1920 = vmatpush1.msra.mxu0 0.0
    %1921 = vmatprep.subr.mxu0 0.0
    %1922 = vmatpush1.msra.mxu0 0.0
    %1923 = vmatprep.subr.mxu0 0.0
    %1924 = vmatpush1.msra.mxu0 0.0
    %1925 = vmatprep.subr.mxu0 0.0
    %1926 = vmatpush1.msra.mxu0 0.0
    %1927 = vmatprep.subr.mxu0 0.0
    %1928 = vmatpush1.msra.mxu0 0.0
    %1929 = vmatprep.subr.mxu0 0.0
    %1930 = vmatpush1.msra.mxu0 0.0
    %1931 = vmatprep.subr.mxu0 0.0
    %1932 = vmatpush1.msra.mxu0 0.0
    %1933 = vmatprep.subr.mxu0 0.0
    %1934 = vmatpush1.msra.mxu0 0.0
    %1935 = vmatprep.subr.mxu0 0.0
    %1936 = vmatpush1.msra.mxu0 0.0
    %1937 = vmatprep.subr.mxu0 0.0
    %1938 = vmatpush1.msra.mxu0 0.0
    %1939 = vmatprep.subr.mxu0 0.0
    %1940 = vmatpush1.msra.mxu0 0.0
    %1941 = vmatprep.subr.mxu0 0.0
    %1942 = vmatpush1.msra.mxu0 0.0
    %1943 = vmatprep.subr.mxu0 0.0
    %1944 = vmatpush1.msra.mxu0 0.0
    %1945 = vmatprep.subr.mxu0 0.0
    %1946 = vmatpush1.msra.mxu0 0.0
    %1947 = vmatprep.subr.mxu0 0.0
    %1948 = vmatpush1.msra.mxu0 0.0
    %1949 = vmatprep.mubr.f32.mxu0 0.0
    %1950 = vmatmul.mubr.f32.gmra.mrb[0].mxu0 %v297
    %v1951 = vpop.f32.mrb[0].mxu0
    %v1952 = vadd.f32 0.0, %v1951
    %v1953 = vpop.f32.mrb[0].mxu0
    %v1954 = vadd.f32 0.0, %v1953
    %1955 = vdwg.mxu0
    %v1956 = vld [vmem:[#allocation2] sm:$0xf]
    %v1957 = vadd.f32 %v1952, %v1956
    %v1958 = vld [vmem:[%s372] sm:$0xf]
    %v1961 = vunpack.c.l.s4 1983009808
    %v1962 = vunpack.c.0.s8 %v1961
    %v1963 = vlaneseq
    %v1964 = vshrl.u32 %v1963, 7
    %v1965 = vsub.s32 %v1962, %v1964
    %v1966 = vrot.slane %v1958, %v1965
    %v1967 = vcombine.high %v1966, %v1966
    %v1969 = vadd.f32 %v1954, %v1967
    %v1970 = vxor.u32 %v1957, 2147483648
    %v1971 = vmul.f32 %v1970, 1.442695
    %v1972 = vpow.pop %v1971
    %v1973 = vadd.f32 %v1972, 1.0
    %v1974 = vrcp.pop %v1973
    %v1975 = vmul.f32 1.0, %v1974
    %v1976 = vtanh.pop %v1957
    %v1977 = vmul.f32 %v1975, 0.0
    %1979 = vrot.lane.b32.xlu0 %v1976, 32
    %v1980 = vpop.permute.xlu0 %1979
    %v1982 = vmul.f32 %v1975, %v1980
    %1984 = vrot.lane.b32.xlu0 %v1982, 32
    %v1985 = vpop.permute.xlu0 %1984
    %v1987 = vadd.f32 %v1977, %v1985
    %v1988 = vtanh.pop %v1987
    %1990 = vrot.lane.b32.xlu0 %v1988, 32
    %v1991 = vpop.permute.xlu0 %1990
    %v1993 = vmul.f32 %v1975, %v1991
    %v1994 = vxor.u32 %v1969, 2147483648
    %v1995 = vmul.f32 %v1994, 1.442695
    %v1996 = vpow.pop %v1995
    %v1997 = vadd.f32 %v1996, 1.0
    %v1998 = vrcp.pop %v1997
    %v1999 = vmul.f32 1.0, %v1998
    %v2000 = vtanh.pop %v1969
    %v2001 = vmul.f32 %v1999, 0.0
    %2003 = vrot.lane.b32.xlu0 %v2000, 32
    %v2004 = vpop.permute.xlu0 %2003
    %v2006 = vmul.f32 %v1999, %v2004
    %2008 = vrot.lane.b32.xlu0 %v2006, 32
    %v2009 = vpop.permute.xlu0 %2008
    %v2011 = vadd.f32 %v2001, %v2009
    %v2012 = vtanh.pop %v2011
    %2014 = vrot.lane.b32.xlu0 %v2012, 32
    %v2015 = vpop.permute.xlu0 %2014
    %v2017 = vmul.f32 %v1999, %v2015
    %2019 = vrot.lane.b32.xlu0 %v1993, 64
    %v2020 = vpop.permute.xlu0 %2019
    %2022 = vst.msk [vmem:[#allocation3] sm:$0x3] %vm437, %v2020
    %2024 = vrot.lane.b32.xlu0 %v2017, 64
    %v2025 = vpop.permute.xlu0 %2024
    %2027 = vst.msk [vmem:[%s443] sm:$0x3] %vm437, %v2025
    %2028 = vrot.lane.b32.xlu0 %v2017, 96
    %v2029 = vpop.permute.xlu0 %2028
    %v2031 = vsel %vm448, %v2020, %v2029
    %v2033 = vsel %vm295, %v2031, 0
    %2035 = vmatprep.subr.mxu0 %v1870
    %2036 = vmatpush1.msra.mxu0 %v1869
    %2037 = vmatprep.subr.mxu0 %v1872
    %2038 = vmatpush1.msra.mxu0 %v1871
    %2039 = vmatprep.subr.mxu0 %v1874
    %2040 = vmatpush1.msra.mxu0 %v1873
    %2041 = vmatprep.subr.mxu0 %v1876
    %2042 = vmatpush1.msra.mxu0 %v1875
    %2043 = vmatprep.subr.mxu0 %v1878
    %2044 = vmatpush1.msra.mxu0 %v1877
    %2045 = vmatprep.subr.mxu0 %v1880
    %2046 = vmatpush1.msra.mxu0 %v1879
    %2047 = vmatprep.subr.mxu0 %v1882
    %2048 = vmatpush1.msra.mxu0 %v1881
    %2049 = vmatprep.subr.mxu0 %v1884
    %2050 = vmatpush1.msra.mxu0 %v1883
    %2051 = vmatprep.subr.mxu0 0.0
    %2052 = vmatpush1.msra.mxu0 0.0
    %2053 = vmatprep.subr.mxu0 0.0
    %2054 = vmatpush1.msra.mxu0 0.0
    %2055 = vmatprep.subr.mxu0 0.0
    %2056 = vmatpush1.msra.mxu0 0.0
    %2057 = vmatprep.subr.mxu0 0.0
    %2058 = vmatpush1.msra.mxu0 0.0
    %2059 = vmatprep.subr.mxu0 0.0
    %2060 = vmatpush1.msra.mxu0 0.0
    %2061 = vmatprep.subr.mxu0 0.0
    %2062 = vmatpush1.msra.mxu0 0.0
    %2063 = vmatprep.subr.mxu0 0.0
    %2064 = vmatpush1.msra.mxu0 0.0
    %2065 = vmatprep.subr.mxu0 0.0
    %2066 = vmatpush1.msra.mxu0 0.0
    %2067 = vmatprep.subr.mxu0 0.0
    %2068 = vmatpush1.msra.mxu0 0.0
    %2069 = vmatprep.subr.mxu0 0.0
    %2070 = vmatpush1.msra.mxu0 0.0
    %2071 = vmatprep.subr.mxu0 0.0
    %2072 = vmatpush1.msra.mxu0 0.0
    %2073 = vmatprep.subr.mxu0 0.0
    %2074 = vmatpush1.msra.mxu0 0.0
    %2075 = vmatprep.subr.mxu0 0.0
    %2076 = vmatpush1.msra.mxu0 0.0
    %2077 = vmatprep.subr.mxu0 0.0
    %2078 = vmatpush1.msra.mxu0 0.0
    %2079 = vmatprep.subr.mxu0 0.0
    %2080 = vmatpush1.msra.mxu0 0.0
    %2081 = vmatprep.subr.mxu0 0.0
    %2082 = vmatpush1.msra.mxu0 0.0
    %2083 = vmatprep.subr.mxu0 0.0
    %2084 = vmatpush1.msra.mxu0 0.0
    %2085 = vmatprep.subr.mxu0 0.0
    %2086 = vmatpush1.msra.mxu0 0.0
    %2087 = vmatprep.subr.mxu0 0.0
    %2088 = vmatpush1.msra.mxu0 0.0
    %2089 = vmatprep.subr.mxu0 0.0
    %2090 = vmatpush1.msra.mxu0 0.0
    %2091 = vmatprep.subr.mxu0 0.0
    %2092 = vmatpush1.msra.mxu0 0.0
    %2093 = vmatprep.subr.mxu0 0.0
    %2094 = vmatpush1.msra.mxu0 0.0
    %2095 = vmatprep.subr.mxu0 0.0
    %2096 = vmatpush1.msra.mxu0 0.0
    %2097 = vmatprep.subr.mxu0 0.0
    %2098 = vmatpush1.msra.mxu0 0.0
    %2099 = vmatprep.mubr.f32.mxu0 0.0
    %2100 = vmatmul.mubr.f32.gmra.mrb[0].mxu0 %v2033
    %v2101 = vpop.f32.mrb[0].mxu0
    %v2102 = vadd.f32 0.0, %v2101
    %v2103 = vpop.f32.mrb[0].mxu0
    %v2104 = vadd.f32 0.0, %v2103
    %2105 = vdwg.mxu0
    %v2106 = vld [vmem:[%s524] sm:$0xf]
    %v2107 = vadd.f32 %v2102, %v2106
    %v2108 = vld [vmem:[%s527] sm:$0xf]
    %v2111 = vunpack.c.l.s4 1983009808
    %v2112 = vunpack.c.0.s8 %v2111
    %v2113 = vlaneseq
    %v2114 = vshrl.u32 %v2113, 7
    %v2115 = vsub.s32 %v2112, %v2114
    %v2116 = vrot.slane %v2108, %v2115
    %v2117 = vcombine.high %v2116, %v2116
    %v2119 = vadd.f32 %v2104, %v2117
    %v2120 = vxor.u32 %v2107, 2147483648
    %v2121 = vmul.f32 %v2120, 1.442695
    %v2122 = vpow.pop %v2121
    %v2123 = vadd.f32 %v2122, 1.0
    %v2124 = vrcp.pop %v2123
    %v2125 = vmul.f32 1.0, %v2124
    %v2126 = vtanh.pop %v2107
    %v2127 = vmul.f32 %v2125, %v1987
    %2129 = vrot.lane.b32.xlu0 %v2126, 32
    %v2130 = vpop.permute.xlu0 %2129
    %v2132 = vmul.f32 %v2125, %v2130
    %2134 = vrot.lane.b32.xlu0 %v2132, 32
    %v2135 = vpop.permute.xlu0 %2134
    %v2137 = vadd.f32 %v2127, %v2135
    %v2138 = vtanh.pop %v2137
    %2140 = vrot.lane.b32.xlu0 %v2138, 32
    %v2141 = vpop.permute.xlu0 %2140
    %v2143 = vmul.f32 %v2125, %v2141
    %v2144 = vxor.u32 %v2119, 2147483648
    %v2145 = vmul.f32 %v2144, 1.442695
    %v2146 = vpow.pop %v2145
    %v2147 = vadd.f32 %v2146, 1.0
    %v2148 = vrcp.pop %v2147
    %v2149 = vmul.f32 1.0, %v2148
    %v2150 = vtanh.pop %v2119
    %v2151 = vmul.f32 %v2149, %v2011
    %2153 = vrot.lane.b32.xlu0 %v2150, 32
    %v2154 = vpop.permute.xlu0 %2153
    %v2156 = vmul.f32 %v2149, %v2154
    %2158 = vrot.lane.b32.xlu0 %v2156, 32
    %v2159 = vpop.permute.xlu0 %2158
    %v2161 = vadd.f32 %v2151, %v2159
    %v2162 = vtanh.pop %v2161
    %2164 = vrot.lane.b32.xlu0 %v2162, 32
    %v2165 = vpop.permute.xlu0 %2164
    %v2167 = vmul.f32 %v2149, %v2165
    %2169 = vrot.lane.b32.xlu0 %v2143, 64
    %v2170 = vpop.permute.xlu0 %2169
    %2172 = vst.msk [vmem:[%s592] sm:$0x3] %vm437, %v2170
    %2174 = vrot.lane.b32.xlu0 %v2167, 64
    %v2175 = vpop.permute.xlu0 %2174
    %2177 = vst.msk [vmem:[%s598] sm:$0x3] %vm437, %v2175
    %2178 = vrot.lane.b32.xlu0 %v2167, 96
    %v2179 = vpop.permute.xlu0 %2178
    %v2181 = vsel %vm448, %v2170, %v2179
    %v2183 = vsel %vm295, %v2181, 0
    %2185 = vmatprep.subr.mxu0 %v1870
    %2186 = vmatpush1.msra.mxu0 %v1869
    %2187 = vmatprep.subr.mxu0 %v1872
    %2188 = vmatpush1.msra.mxu0 %v1871
    %2189 = vmatprep.subr.mxu0 %v1874
    %2190 = vmatpush1.msra.mxu0 %v1873
    %2191 = vmatprep.subr.mxu0 %v1876
    %2192 = vmatpush1.msra.mxu0 %v1875
    %2193 = vmatprep.subr.mxu0 %v1878
    %2194 = vmatpush1.msra.mxu0 %v1877
    %2195 = vmatprep.subr.mxu0 %v1880
    %2196 = vmatpush1.msra.mxu0 %v1879
    %2197 = vmatprep.subr.mxu0 %v1882
    %2198 = vmatpush1.msra.mxu0 %v1881
    %2199 = vmatprep.subr.mxu0 %v1884
    %2200 = vmatpush1.msra.mxu0 %v1883
    %2201 = vmatprep.subr.mxu0 0.0
    %2202 = vmatpush1.msra.mxu0 0.0
    %2203 = vmatprep.subr.mxu0 0.0
    %2204 = vmatpush1.msra.mxu0 0.0
    %2205 = vmatprep.subr.mxu0 0.0
    %2206 = vmatpush1.msra.mxu0 0.0
    %2207 = vmatprep.subr.mxu0 0.0
    %2208 = vmatpush1.msra.mxu0 0.0
    %2209 = vmatprep.subr.mxu0 0.0
    %2210 = vmatpush1.msra.mxu0 0.0
    %2211 = vmatprep.subr.mxu0 0.0
    %2212 = vmatpush1.msra.mxu0 0.0
    %2213 = vmatprep.subr.mxu0 0.0
    %2214 = vmatpush1.msra.mxu0 0.0
    %2215 = vmatprep.subr.mxu0 0.0
    %2216 = vmatpush1.msra.mxu0 0.0
    %2217 = vmatprep.subr.mxu0 0.0
    %2218 = vmatpush1.msra.mxu0 0.0
    %2219 = vmatprep.subr.mxu0 0.0
    %2220 = vmatpush1.msra.mxu0 0.0
    %2221 = vmatprep.subr.mxu0 0.0
    %2222 = vmatpush1.msra.mxu0 0.0
    %2223 = vmatprep.subr.mxu0 0.0
    %2224 = vmatpush1.msra.mxu0 0.0
    %2225 = vmatprep.subr.mxu0 0.0
    %2226 = vmatpush1.msra.mxu0 0.0
    %2227 = vmatprep.subr.mxu0 0.0
    %2228 = vmatpush1.msra.mxu0 0.0
    %2229 = vmatprep.subr.mxu0 0.0
    %2230 = vmatpush1.msra.mxu0 0.0
    %2231 = vmatprep.subr.mxu0 0.0
    %2232 = vmatpush1.msra.mxu0 0.0
    %2233 = vmatprep.subr.mxu0 0.0
    %2234 = vmatpush1.msra.mxu0 0.0
    %2235 = vmatprep.subr.mxu0 0.0
    %2236 = vmatpush1.msra.mxu0 0.0
    %2237 = vmatprep.subr.mxu0 0.0
    %2238 = vmatpush1.msra.mxu0 0.0
    %2239 = vmatprep.subr.mxu0 0.0
    %2240 = vmatpush1.msra.mxu0 0.0
    %2241 = vmatprep.subr.mxu0 0.0
    %2242 = vmatpush1.msra.mxu0 0.0
    %2243 = vmatprep.subr.mxu0 0.0
    %2244 = vmatpush1.msra.mxu0 0.0
    %2245 = vmatprep.subr.mxu0 0.0
    %2246 = vmatpush1.msra.mxu0 0.0
    %2247 = vmatprep.subr.mxu0 0.0
    %2248 = vmatpush1.msra.mxu0 0.0
    %2249 = vmatprep.mubr.f32.mxu0 0.0
    %2250 = vmatmul.mubr.f32.gmra.mrb[0].mxu0 %v2183
    %v2251 = vpop.f32.mrb[0].mxu0
    %v2252 = vadd.f32 0.0, %v2251
    %v2253 = vpop.f32.mrb[0].mxu0
    %v2254 = vadd.f32 0.0, %v2253
    %2255 = vdwg.mxu0
    %v2256 = vld [vmem:[%s678] sm:$0xf]
    %v2257 = vadd.f32 %v2252, %v2256
    %v2258 = vld [vmem:[%s681] sm:$0xf]
    %v2261 = vunpack.c.l.s4 1983009808
    %v2262 = vunpack.c.0.s8 %v2261
    %v2263 = vlaneseq
    %v2264 = vshrl.u32 %v2263, 7
    %v2265 = vsub.s32 %v2262, %v2264
    %v2266 = vrot.slane %v2258, %v2265
    %v2267 = vcombine.high %v2266, %v2266
    %v2269 = vadd.f32 %v2254, %v2267
    %v2270 = vxor.u32 %v2257, 2147483648
    %v2271 = vmul.f32 %v2270, 1.442695
    %v2272 = vpow.pop %v2271
    %v2273 = vadd.f32 %v2272, 1.0
    %v2274 = vrcp.pop %v2273
    %v2275 = vmul.f32 1.0, %v2274
    %v2276 = vtanh.pop %v2257
    %v2277 = vmul.f32 %v2275, %v2137
    %2279 = vrot.lane.b32.xlu0 %v2276, 32
    %v2280 = vpop.permute.xlu0 %2279
    %v2282 = vmul.f32 %v2275, %v2280
    %2284 = vrot.lane.b32.xlu0 %v2282, 32
    %v2285 = vpop.permute.xlu0 %2284
    %v2287 = vadd.f32 %v2277, %v2285
    %v2288 = vtanh.pop %v2287
    %2290 = vrot.lane.b32.xlu0 %v2288, 32
    %v2291 = vpop.permute.xlu0 %2290
    %v2293 = vmul.f32 %v2275, %v2291
    %v2294 = vxor.u32 %v2269, 2147483648
    %v2295 = vmul.f32 %v2294, 1.442695
    %v2296 = vpow.pop %v2295
    %v2297 = vadd.f32 %v2296, 1.0
    %v2298 = vrcp.pop %v2297
    %v2299 = vmul.f32 1.0, %v2298
    %v2300 = vtanh.pop %v2269
    %v2301 = vmul.f32 %v2299, %v2161
    %2303 = vrot.lane.b32.xlu0 %v2300, 32
    %v2304 = vpop.permute.xlu0 %2303
    %v2306 = vmul.f32 %v2299, %v2304
    %2308 = vrot.lane.b32.xlu0 %v2306, 32
    %v2309 = vpop.permute.xlu0 %2308
    %v2311 = vadd.f32 %v2301, %v2309
    %v2312 = vtanh.pop %v2311
    %2314 = vrot.lane.b32.xlu0 %v2312, 32
    %v2315 = vpop.permute.xlu0 %2314
    %v2317 = vmul.f32 %v2299, %v2315
    %2319 = vrot.lane.b32.xlu0 %v2293, 64
    %v2320 = vpop.permute.xlu0 %2319
    %2322 = vst.msk [vmem:[%s746] sm:$0x3] %vm437, %v2320
    %2324 = vrot.lane.b32.xlu0 %v2317, 64
    %v2325 = vpop.permute.xlu0 %2324
    %2327 = vst.msk [vmem:[%s752] sm:$0x3] %vm437, %v2325
    %2328 = vrot.lane.b32.xlu0 %v2317, 96
    %v2329 = vpop.permute.xlu0 %2328
    %v2331 = vsel %vm448, %v2320, %v2329
    %v2333 = vsel %vm295, %v2331, 0
    %2335 = vmatprep.subr.mxu0 %v1870
    %2336 = vmatpush1.msra.mxu0 %v1869
    %2337 = vmatprep.subr.mxu0 %v1872
    %2338 = vmatpush1.msra.mxu0 %v1871
    %2339 = vmatprep.subr.mxu0 %v1874
    %2340 = vmatpush1.msra.mxu0 %v1873
    %2341 = vmatprep.subr.mxu0 %v1876
    %2342 = vmatpush1.msra.mxu0 %v1875
    %2343 = vmatprep.subr.mxu0 %v1878
    %2344 = vmatpush1.msra.mxu0 %v1877
    %2345 = vmatprep.subr.mxu0 %v1880
    %2346 = vmatpush1.msra.mxu0 %v1879
    %2347 = vmatprep.subr.mxu0 %v1882
    %2348 = vmatpush1.msra.mxu0 %v1881
    %2349 = vmatprep.subr.mxu0 %v1884
    %2350 = vmatpush1.msra.mxu0 %v1883
    %2351 = vmatprep.subr.mxu0 0.0
    %2352 = vmatpush1.msra.mxu0 0.0
    %2353 = vmatprep.subr.mxu0 0.0
    %2354 = vmatpush1.msra.mxu0 0.0
    %2355 = vmatprep.subr.mxu0 0.0
    %2356 = vmatpush1.msra.mxu0 0.0
    %2357 = vmatprep.subr.mxu0 0.0
    %2358 = vmatpush1.msra.mxu0 0.0
    %2359 = vmatprep.subr.mxu0 0.0
    %2360 = vmatpush1.msra.mxu0 0.0
    %2361 = vmatprep.subr.mxu0 0.0
    %2362 = vmatpush1.msra.mxu0 0.0
    %2363 = vmatprep.subr.mxu0 0.0
    %2364 = vmatpush1.msra.mxu0 0.0
    %2365 = vmatprep.subr.mxu0 0.0
    %2366 = vmatpush1.msra.mxu0 0.0
    %2367 = vmatprep.subr.mxu0 0.0
    %2368 = vmatpush1.msra.mxu0 0.0
    %2369 = vmatprep.subr.mxu0 0.0
    %2370 = vmatpush1.msra.mxu0 0.0
    %2371 = vmatprep.subr.mxu0 0.0
    %2372 = vmatpush1.msra.mxu0 0.0
    %2373 = vmatprep.subr.mxu0 0.0
    %2374 = vmatpush1.msra.mxu0 0.0
    %2375 = vmatprep.subr.mxu0 0.0
    %2376 = vmatpush1.msra.mxu0 0.0
    %2377 = vmatprep.subr.mxu0 0.0
    %2378 = vmatpush1.msra.mxu0 0.0
    %2379 = vmatprep.subr.mxu0 0.0
    %2380 = vmatpush1.msra.mxu0 0.0
    %2381 = vmatprep.subr.mxu0 0.0
    %2382 = vmatpush1.msra.mxu0 0.0
    %2383 = vmatprep.subr.mxu0 0.0
    %2384 = vmatpush1.msra.mxu0 0.0
    %2385 = vmatprep.subr.mxu0 0.0
    %2386 = vmatpush1.msra.mxu0 0.0
    %2387 = vmatprep.subr.mxu0 0.0
    %2388 = vmatpush1.msra.mxu0 0.0
    %2389 = vmatprep.subr.mxu0 0.0
    %2390 = vmatpush1.msra.mxu0 0.0
    %2391 = vmatprep.subr.mxu0 0.0
    %2392 = vmatpush1.msra.mxu0 0.0
    %2393 = vmatprep.subr.mxu0 0.0
    %2394 = vmatpush1.msra.mxu0 0.0
    %2395 = vmatprep.subr.mxu0 0.0
    %2396 = vmatpush1.msra.mxu0 0.0
    %2397 = vmatprep.subr.mxu0 0.0
    %2398 = vmatpush1.msra.mxu0 0.0
    %2399 = vmatprep.mubr.f32.mxu0 0.0
    %2400 = vmatmul.mubr.f32.gmra.mrb[0].mxu0 %v2333
    %v2401 = vpop.f32.mrb[0].mxu0
    %v2402 = vadd.f32 0.0, %v2401
    %v2403 = vpop.f32.mrb[0].mxu0
    %v2404 = vadd.f32 0.0, %v2403
    %2405 = vdwg.mxu0
    %v2406 = vld [vmem:[%s832] sm:$0xf]
    %v2407 = vadd.f32 %v2402, %v2406
    %v2408 = vld [vmem:[%s835] sm:$0xf]
    %v2411 = vunpack.c.l.s4 1983009808
    %v2412 = vunpack.c.0.s8 %v2411
    %v2413 = vlaneseq
    %v2414 = vshrl.u32 %v2413, 7
    %v2415 = vsub.s32 %v2412, %v2414
    %v2416 = vrot.slane %v2408, %v2415
    %v2417 = vcombine.high %v2416, %v2416
    %v2419 = vadd.f32 %v2404, %v2417
    %v2420 = vxor.u32 %v2407, 2147483648
    %v2421 = vmul.f32 %v2420, 1.442695
    %v2422 = vpow.pop %v2421
    %v2423 = vadd.f32 %v2422, 1.0
    %v2424 = vrcp.pop %v2423
    %v2425 = vmul.f32 1.0, %v2424
    %v2426 = vtanh.pop %v2407
    %v2427 = vmul.f32 %v2425, %v2287
    %2429 = vrot.lane.b32.xlu0 %v2426, 32
    %v2430 = vpop.permute.xlu0 %2429
    %v2432 = vmul.f32 %v2425, %v2430
    %2434 = vrot.lane.b32.xlu0 %v2432, 32
    %v2435 = vpop.permute.xlu0 %2434
    %v2437 = vadd.f32 %v2427, %v2435
    %v2438 = vtanh.pop %v2437
    %2440 = vrot.lane.b32.xlu0 %v2438, 32
    %v2441 = vpop.permute.xlu0 %2440
    %v2443 = vmul.f32 %v2425, %v2441
    %v2444 = vxor.u32 %v2419, 2147483648
    %v2445 = vmul.f32 %v2444, 1.442695
    %v2446 = vpow.pop %v2445
    %v2447 = vadd.f32 %v2446, 1.0
    %v2448 = vrcp.pop %v2447
    %v2449 = vmul.f32 1.0, %v2448
    %v2450 = vtanh.pop %v2419
    %v2451 = vmul.f32 %v2449, %v2311
    %2453 = vrot.lane.b32.xlu0 %v2450, 32
    %v2454 = vpop.permute.xlu0 %2453
    %v2456 = vmul.f32 %v2449, %v2454
    %2458 = vrot.lane.b32.xlu0 %v2456, 32
    %v2459 = vpop.permute.xlu0 %2458
    %v2461 = vadd.f32 %v2451, %v2459
    %v2462 = vtanh.pop %v2461
    %2464 = vrot.lane.b32.xlu0 %v2462, 32
    %v2465 = vpop.permute.xlu0 %2464
    %v2467 = vmul.f32 %v2449, %v2465
    %2469 = vrot.lane.b32.xlu0 %v2443, 64
    %v2470 = vpop.permute.xlu0 %2469
    %2472 = vst.msk [vmem:[%s900] sm:$0x3] %vm437, %v2470
    %2474 = vrot.lane.b32.xlu0 %v2467, 64
    %v2475 = vpop.permute.xlu0 %2474
    %2477 = vst.msk [vmem:[%s906] sm:$0x3] %vm437, %v2475
    %2478 = vrot.lane.b32.xlu0 %v2467, 96
    %v2479 = vpop.permute.xlu0 %2478
    %v2481 = vsel %vm448, %v2470, %v2479
    %v2483 = vsel %vm295, %v2481, 0
    %2485 = vmatprep.subr.mxu0 %v1870
    %2486 = vmatpush1.msra.mxu0 %v1869
    %2487 = vmatprep.subr.mxu0 %v1872
    %2488 = vmatpush1.msra.mxu0 %v1871
    %2489 = vmatprep.subr.mxu0 %v1874
    %2490 = vmatpush1.msra.mxu0 %v1873
    %2491 = vmatprep.subr.mxu0 %v1876
    %2492 = vmatpush1.msra.mxu0 %v1875
    %2493 = vmatprep.subr.mxu0 %v1878
    %2494 = vmatpush1.msra.mxu0 %v1877
    %2495 = vmatprep.subr.mxu0 %v1880
    %2496 = vmatpush1.msra.mxu0 %v1879
    %2497 = vmatprep.subr.mxu0 %v1882
    %2498 = vmatpush1.msra.mxu0 %v1881
    %2499 = vmatprep.subr.mxu0 %v1884
    %2500 = vmatpush1.msra.mxu0 %v1883
    %2501 = vmatprep.subr.mxu0 0.0
    %2502 = vmatpush1.msra.mxu0 0.0
    %2503 = vmatprep.subr.mxu0 0.0
    %2504 = vmatpush1.msra.mxu0 0.0
    %2505 = vmatprep.subr.mxu0 0.0
    %2506 = vmatpush1.msra.mxu0 0.0
    %2507 = vmatprep.subr.mxu0 0.0
    %2508 = vmatpush1.msra.mxu0 0.0
    %2509 = vmatprep.subr.mxu0 0.0
    %2510 = vmatpush1.msra.mxu0 0.0
    %2511 = vmatprep.subr.mxu0 0.0
    %2512 = vmatpush1.msra.mxu0 0.0
    %2513 = vmatprep.subr.mxu0 0.0
    %2514 = vmatpush1.msra.mxu0 0.0
    %2515 = vmatprep.subr.mxu0 0.0
    %2516 = vmatpush1.msra.mxu0 0.0
    %2517 = vmatprep.subr.mxu0 0.0
    %2518 = vmatpush1.msra.mxu0 0.0
    %2519 = vmatprep.subr.mxu0 0.0
    %2520 = vmatpush1.msra.mxu0 0.0
    %2521 = vmatprep.subr.mxu0 0.0
    %2522 = vmatpush1.msra.mxu0 0.0
    %2523 = vmatprep.subr.mxu0 0.0
    %2524 = vmatpush1.msra.mxu0 0.0
    %2525 = vmatprep.subr.mxu0 0.0
    %2526 = vmatpush1.msra.mxu0 0.0
    %2527 = vmatprep.subr.mxu0 0.0
    %2528 = vmatpush1.msra.mxu0 0.0
    %2529 = vmatprep.subr.mxu0 0.0
    %2530 = vmatpush1.msra.mxu0 0.0
    %2531 = vmatprep.subr.mxu0 0.0
    %2532 = vmatpush1.msra.mxu0 0.0
    %2533 = vmatprep.subr.mxu0 0.0
    %2534 = vmatpush1.msra.mxu0 0.0
    %2535 = vmatprep.subr.mxu0 0.0
    %2536 = vmatpush1.msra.mxu0 0.0
    %2537 = vmatprep.subr.mxu0 0.0
    %2538 = vmatpush1.msra.mxu0 0.0
    %2539 = vmatprep.subr.mxu0 0.0
    %2540 = vmatpush1.msra.mxu0 0.0
    %2541 = vmatprep.subr.mxu0 0.0
    %2542 = vmatpush1.msra.mxu0 0.0
    %2543 = vmatprep.subr.mxu0 0.0
    %2544 = vmatpush1.msra.mxu0 0.0
    %2545 = vmatprep.subr.mxu0 0.0
    %2546 = vmatpush1.msra.mxu0 0.0
    %2547 = vmatprep.subr.mxu0 0.0
    %2548 = vmatpush1.msra.mxu0 0.0
    %2549 = vmatprep.mubr.f32.mxu0 0.0
    %2550 = vmatmul.mubr.f32.gmra.mrb[0].mxu0 %v2483
    %v2551 = vpop.f32.mrb[0].mxu0
    %v2552 = vadd.f32 0.0, %v2551
    %v2553 = vpop.f32.mrb[0].mxu0
    %v2554 = vadd.f32 0.0, %v2553
    %2555 = vdwg.mxu0
    %v2556 = vld [vmem:[%s835] sm:$0xf]
    %v2557 = vadd.f32 %v2552, %v2556
    %v2558 = vld [vmem:[%s832] sm:$0xf]
    %v2561 = vunpack.c.l.s4 1983009808
    %v2562 = vunpack.c.0.s8 %v2561
    %v2563 = vlaneseq
    %v2564 = vshrl.u32 %v2563, 7
    %v2565 = vsub.s32 %v2562, %v2564
    %v2566 = vrot.slane %v2558, %v2565
    %v2567 = vcombine.high %v2566, %v2566
    %v2569 = vadd.f32 %v2554, %v2567
    %v2570 = vxor.u32 %v2557, 2147483648
    %v2571 = vmul.f32 %v2570, 1.442695
    %v2572 = vpow.pop %v2571
    %v2573 = vadd.f32 %v2572, 1.0
    %v2574 = vrcp.pop %v2573
    %v2575 = vmul.f32 1.0, %v2574
    %v2576 = vtanh.pop %v2557
    %v2577 = vmul.f32 %v2575, %v2437
    %2579 = vrot.lane.b32.xlu0 %v2576, 32
    %v2580 = vpop.permute.xlu0 %2579
    %v2582 = vmul.f32 %v2575, %v2580
    %2584 = vrot.lane.b32.xlu0 %v2582, 32
    %v2585 = vpop.permute.xlu0 %2584
    %v2587 = vadd.f32 %v2577, %v2585
    %v2588 = vtanh.pop %v2587
    %2590 = vrot.lane.b32.xlu0 %v2588, 32
    %v2591 = vpop.permute.xlu0 %2590
    %v2593 = vmul.f32 %v2575, %v2591
    %v2594 = vxor.u32 %v2569, 2147483648
    %v2595 = vmul.f32 %v2594, 1.442695
    %v2596 = vpow.pop %v2595
    %v2597 = vadd.f32 %v2596, 1.0
    %v2598 = vrcp.pop %v2597
    %v2599 = vmul.f32 1.0, %v2598
    %v2600 = vtanh.pop %v2569
    %v2601 = vmul.f32 %v2599, %v2461
    %2603 = vrot.lane.b32.xlu0 %v2600, 32
    %v2604 = vpop.permute.xlu0 %2603
    %v2606 = vmul.f32 %v2599, %v2604
    %2608 = vrot.lane.b32.xlu0 %v2606, 32
    %v2609 = vpop.permute.xlu0 %2608
    %v2611 = vadd.f32 %v2601, %v2609
    %v2612 = vtanh.pop %v2611
    %2614 = vrot.lane.b32.xlu0 %v2612, 32
    %v2615 = vpop.permute.xlu0 %2614
    %v2617 = vmul.f32 %v2599, %v2615
    %2619 = vrot.lane.b32.xlu0 %v2593, 64
    %v2620 = vpop.permute.xlu0 %2619
    %2622 = vst.msk [vmem:[%s1052] sm:$0x3] %vm437, %v2620
    %2624 = vrot.lane.b32.xlu0 %v2617, 64
    %v2625 = vpop.permute.xlu0 %2624
    %2627 = vst.msk [vmem:[%s1058] sm:$0x3] %vm437, %v2625
    %2628 = vrot.lane.b32.xlu0 %v2617, 96
    %v2629 = vpop.permute.xlu0 %2628
    %v2631 = vsel %vm448, %v2620, %v2629
    %v2633 = vsel %vm295, %v2631, 0
    %2635 = vmatprep.subr.mxu0 %v1870
    %2636 = vmatpush1.msra.mxu0 %v1869
    %2637 = vmatprep.subr.mxu0 %v1872
    %2638 = vmatpush1.msra.mxu0 %v1871
    %2639 = vmatprep.subr.mxu0 %v1874
    %2640 = vmatpush1.msra.mxu0 %v1873
    %2641 = vmatprep.subr.mxu0 %v1876
    %2642 = vmatpush1.msra.mxu0 %v1875
    %2643 = vmatprep.subr.mxu0 %v1878
    %2644 = vmatpush1.msra.mxu0 %v1877
    %2645 = vmatprep.subr.mxu0 %v1880
    %2646 = vmatpush1.msra.mxu0 %v1879
    %2647 = vmatprep.subr.mxu0 %v1882
    %2648 = vmatpush1.msra.mxu0 %v1881
    %2649 = vmatprep.subr.mxu0 %v1884
    %2650 = vmatpush1.msra.mxu0 %v1883
    %2651 = vmatprep.subr.mxu0 0.0
    %2652 = vmatpush1.msra.mxu0 0.0
    %2653 = vmatprep.subr.mxu0 0.0
    %2654 = vmatpush1.msra.mxu0 0.0
    %2655 = vmatprep.subr.mxu0 0.0
    %2656 = vmatpush1.msra.mxu0 0.0
    %2657 = vmatprep.subr.mxu0 0.0
    %2658 = vmatpush1.msra.mxu0 0.0
    %2659 = vmatprep.subr.mxu0 0.0
    %2660 = vmatpush1.msra.mxu0 0.0
    %2661 = vmatprep.subr.mxu0 0.0
    %2662 = vmatpush1.msra.mxu0 0.0
    %2663 = vmatprep.subr.mxu0 0.0
    %2664 = vmatpush1.msra.mxu0 0.0
    %2665 = vmatprep.subr.mxu0 0.0
    %2666 = vmatpush1.msra.mxu0 0.0
    %2667 = vmatprep.subr.mxu0 0.0
    %2668 = vmatpush1.msra.mxu0 0.0
    %2669 = vmatprep.subr.mxu0 0.0
    %2670 = vmatpush1.msra.mxu0 0.0
    %2671 = vmatprep.subr.mxu0 0.0
    %2672 = vmatpush1.msra.mxu0 0.0
    %2673 = vmatprep.subr.mxu0 0.0
    %2674 = vmatpush1.msra.mxu0 0.0
    %2675 = vmatprep.subr.mxu0 0.0
    %2676 = vmatpush1.msra.mxu0 0.0
    %2677 = vmatprep.subr.mxu0 0.0
    %2678 = vmatpush1.msra.mxu0 0.0
    %2679 = vmatprep.subr.mxu0 0.0
    %2680 = vmatpush1.msra.mxu0 0.0
    %2681 = vmatprep.subr.mxu0 0.0
    %2682 = vmatpush1.msra.mxu0 0.0
    %2683 = vmatprep.subr.mxu0 0.0
    %2684 = vmatpush1.msra.mxu0 0.0
    %2685 = vmatprep.subr.mxu0 0.0
    %2686 = vmatpush1.msra.mxu0 0.0
    %2687 = vmatprep.subr.mxu0 0.0
    %2688 = vmatpush1.msra.mxu0 0.0
    %2689 = vmatprep.subr.mxu0 0.0
    %2690 = vmatpush1.msra.mxu0 0.0
    %2691 = vmatprep.subr.mxu0 0.0
    %2692 = vmatpush1.msra.mxu0 0.0
    %2693 = vmatprep.subr.mxu0 0.0
    %2694 = vmatpush1.msra.mxu0 0.0
    %2695 = vmatprep.subr.mxu0 0.0
    %2696 = vmatpush1.msra.mxu0 0.0
    %2697 = vmatprep.subr.mxu0 0.0
    %2698 = vmatpush1.msra.mxu0 0.0
    %2699 = vmatprep.mubr.f32.mxu0 0.0
    %2700 = vmatmul.mubr.f32.gmra.mrb[0].mxu0 %v2633
    %v2701 = vpop.f32.mrb[0].mxu0
    %v2702 = vadd.f32 0.0, %v2701
    %v2703 = vpop.f32.mrb[0].mxu0
    %v2704 = vadd.f32 0.0, %v2703
    %2705 = vdwg.mxu0
    %v2706 = vld [vmem:[%s681] sm:$0xf]
    %v2707 = vadd.f32 %v2702, %v2706
    %v2708 = vld [vmem:[%s678] sm:$0xf]
    %v2711 = vunpack.c.l.s4 1983009808
    %v2712 = vunpack.c.0.s8 %v2711
    %v2713 = vlaneseq
    %v2714 = vshrl.u32 %v2713, 7
    %v2715 = vsub.s32 %v2712, %v2714
    %v2716 = vrot.slane %v2708, %v2715
    %v2717 = vcombine.high %v2716, %v2716
    %v2719 = vadd.f32 %v2704, %v2717
    %v2720 = vxor.u32 %v2707, 2147483648
    %v2721 = vmul.f32 %v2720, 1.442695
    %v2722 = vpow.pop %v2721
    %v2723 = vadd.f32 %v2722, 1.0
    %v2724 = vrcp.pop %v2723
    %v2725 = vmul.f32 1.0, %v2724
    %v2726 = vtanh.pop %v2707
    %v2727 = vmul.f32 %v2725, %v2587
    %2729 = vrot.lane.b32.xlu0 %v2726, 32
    %v2730 = vpop.permute.xlu0 %2729
    %v2732 = vmul.f32 %v2725, %v2730
    %2734 = vrot.lane.b32.xlu0 %v2732, 32
    %v2735 = vpop.permute.xlu0 %2734
    %v2737 = vadd.f32 %v2727, %v2735
    %v2738 = vtanh.pop %v2737
    %2740 = vrot.lane.b32.xlu0 %v2738, 32
    %v2741 = vpop.permute.xlu0 %2740
    %v2743 = vmul.f32 %v2725, %v2741
    %v2744 = vxor.u32 %v2719, 2147483648
    %v2745 = vmul.f32 %v2744, 1.442695
    %v2746 = vpow.pop %v2745
    %v2747 = vadd.f32 %v2746, 1.0
    %v2748 = vrcp.pop %v2747
    %v2749 = vmul.f32 1.0, %v2748
    %v2750 = vtanh.pop %v2719
    %v2751 = vmul.f32 %v2749, %v2611
    %2753 = vrot.lane.b32.xlu0 %v2750, 32
    %v2754 = vpop.permute.xlu0 %2753
    %v2756 = vmul.f32 %v2749, %v2754
    %2758 = vrot.lane.b32.xlu0 %v2756, 32
    %v2759 = vpop.permute.xlu0 %2758
    %v2761 = vadd.f32 %v2751, %v2759
    %v2762 = vtanh.pop %v2761
    %2764 = vrot.lane.b32.xlu0 %v2762, 32
    %v2765 = vpop.permute.xlu0 %2764
    %v2767 = vmul.f32 %v2749, %v2765
    %2769 = vrot.lane.b32.xlu0 %v2743, 64
    %v2770 = vpop.permute.xlu0 %2769
    %2772 = vst.msk [vmem:[%s1204] sm:$0x3] %vm437, %v2770
    %2774 = vrot.lane.b32.xlu0 %v2767, 64
    %v2775 = vpop.permute.xlu0 %2774
    %2777 = vst.msk [vmem:[%s1210] sm:$0x3] %vm437, %v2775
    %2778 = vrot.lane.b32.xlu0 %v2767, 96
    %v2779 = vpop.permute.xlu0 %2778
    %v2781 = vsel %vm448, %v2770, %v2779
    %v2783 = vsel %vm295, %v2781, 0
    %2785 = vmatprep.subr.mxu0 %v1870
    %2786 = vmatpush1.msra.mxu0 %v1869
    %2787 = vmatprep.subr.mxu0 %v1872
    %2788 = vmatpush1.msra.mxu0 %v1871
    %2789 = vmatprep.subr.mxu0 %v1874
    %2790 = vmatpush1.msra.mxu0 %v1873
    %2791 = vmatprep.subr.mxu0 %v1876
    %2792 = vmatpush1.msra.mxu0 %v1875
    %2793 = vmatprep.subr.mxu0 %v1878
    %2794 = vmatpush1.msra.mxu0 %v1877
    %2795 = vmatprep.subr.mxu0 %v1880
    %2796 = vmatpush1.msra.mxu0 %v1879
    %2797 = vmatprep.subr.mxu0 %v1882
    %2798 = vmatpush1.msra.mxu0 %v1881
    %2799 = vmatprep.subr.mxu0 %v1884
    %2800 = vmatpush1.msra.mxu0 %v1883
    %2801 = vmatprep.subr.mxu0 0.0
    %2802 = vmatpush1.msra.mxu0 0.0
    %2803 = vmatprep.subr.mxu0 0.0
    %2804 = vmatpush1.msra.mxu0 0.0
    %2805 = vmatprep.subr.mxu0 0.0
    %2806 = vmatpush1.msra.mxu0 0.0
    %2807 = vmatprep.subr.mxu0 0.0
    %2808 = vmatpush1.msra.mxu0 0.0
    %2809 = vmatprep.subr.mxu0 0.0
    %2810 = vmatpush1.msra.mxu0 0.0
    %2811 = vmatprep.subr.mxu0 0.0
    %2812 = vmatpush1.msra.mxu0 0.0
    %2813 = vmatprep.subr.mxu0 0.0
    %2814 = vmatpush1.msra.mxu0 0.0
    %2815 = vmatprep.subr.mxu0 0.0
    %2816 = vmatpush1.msra.mxu0 0.0
    %2817 = vmatprep.subr.mxu0 0.0
    %2818 = vmatpush1.msra.mxu0 0.0
    %2819 = vmatprep.subr.mxu0 0.0
    %2820 = vmatpush1.msra.mxu0 0.0
    %2821 = vmatprep.subr.mxu0 0.0
    %2822 = vmatpush1.msra.mxu0 0.0
    %2823 = vmatprep.subr.mxu0 0.0
    %2824 = vmatpush1.msra.mxu0 0.0
    %2825 = vmatprep.subr.mxu0 0.0
    %2826 = vmatpush1.msra.mxu0 0.0
    %2827 = vmatprep.subr.mxu0 0.0
    %2828 = vmatpush1.msra.mxu0 0.0
    %2829 = vmatprep.subr.mxu0 0.0
    %2830 = vmatpush1.msra.mxu0 0.0
    %2831 = vmatprep.subr.mxu0 0.0
    %2832 = vmatpush1.msra.mxu0 0.0
    %2833 = vmatprep.subr.mxu0 0.0
    %2834 = vmatpush1.msra.mxu0 0.0
    %2835 = vmatprep.subr.mxu0 0.0
    %2836 = vmatpush1.msra.mxu0 0.0
    %2837 = vmatprep.subr.mxu0 0.0
    %2838 = vmatpush1.msra.mxu0 0.0
    %2839 = vmatprep.subr.mxu0 0.0
    %2840 = vmatpush1.msra.mxu0 0.0
    %2841 = vmatprep.subr.mxu0 0.0
    %2842 = vmatpush1.msra.mxu0 0.0
    %2843 = vmatprep.subr.mxu0 0.0
    %2844 = vmatpush1.msra.mxu0 0.0
    %2845 = vmatprep.subr.mxu0 0.0
    %2846 = vmatpush1.msra.mxu0 0.0
    %2847 = vmatprep.subr.mxu0 0.0
    %2848 = vmatpush1.msra.mxu0 0.0
    %2849 = vmatprep.mubr.f32.mxu0 0.0
    %2850 = vmatmul.mubr.f32.gmra.mrb[0].mxu0 %v2783
    %v2851 = vpop.f32.mrb[0].mxu0
    %v2852 = vadd.f32 0.0, %v2851
    %v2853 = vpop.f32.mrb[0].mxu0
    %v2854 = vadd.f32 0.0, %v2853
    %2855 = vdwg.mxu0
    %v2856 = vld [vmem:[%s527] sm:$0xf]
    %v2857 = vadd.f32 %v2852, %v2856
    %v2858 = vld [vmem:[%s524] sm:$0xf]
    %v2861 = vunpack.c.l.s4 1983009808
    %v2862 = vunpack.c.0.s8 %v2861
    %v2863 = vlaneseq
    %v2864 = vshrl.u32 %v2863, 7
    %v2865 = vsub.s32 %v2862, %v2864
    %v2866 = vrot.slane %v2858, %v2865
    %v2867 = vcombine.high %v2866, %v2866
    %v2869 = vadd.f32 %v2854, %v2867
    %v2870 = vxor.u32 %v2857, 2147483648
    %v2871 = vmul.f32 %v2870, 1.442695
    %v2872 = vpow.pop %v2871
    %v2873 = vadd.f32 %v2872, 1.0
    %v2874 = vrcp.pop %v2873
    %v2875 = vmul.f32 1.0, %v2874
    %v2876 = vtanh.pop %v2857
    %v2877 = vmul.f32 %v2875, %v2737
    %2879 = vrot.lane.b32.xlu0 %v2876, 32
    %v2880 = vpop.permute.xlu0 %2879
    %v2882 = vmul.f32 %v2875, %v2880
    %2884 = vrot.lane.b32.xlu0 %v2882, 32
    %v2885 = vpop.permute.xlu0 %2884
    %v2887 = vadd.f32 %v2877, %v2885
    %v2888 = vtanh.pop %v2887
    %2890 = vrot.lane.b32.xlu0 %v2888, 32
    %v2891 = vpop.permute.xlu0 %2890
    %v2893 = vmul.f32 %v2875, %v2891
    %v2894 = vxor.u32 %v2869, 2147483648
    %v2895 = vmul.f32 %v2894, 1.442695
    %v2896 = vpow.pop %v2895
    %v2897 = vadd.f32 %v2896, 1.0
    %v2898 = vrcp.pop %v2897
    %v2899 = vmul.f32 1.0, %v2898
    %v2900 = vtanh.pop %v2869
    %v2901 = vmul.f32 %v2899, %v2761
    %2903 = vrot.lane.b32.xlu0 %v2900, 32
    %v2904 = vpop.permute.xlu0 %2903
    %v2906 = vmul.f32 %v2899, %v2904
    %2908 = vrot.lane.b32.xlu0 %v2906, 32
    %v2909 = vpop.permute.xlu0 %2908
    %v2911 = vadd.f32 %v2901, %v2909
    %v2912 = vtanh.pop %v2911
    %2914 = vrot.lane.b32.xlu0 %v2912, 32
    %v2915 = vpop.permute.xlu0 %2914
    %v2917 = vmul.f32 %v2899, %v2915
    %2919 = vrot.lane.b32.xlu0 %v2893, 64
    %v2920 = vpop.permute.xlu0 %2919
    %2922 = vst.msk [vmem:[%s1356] sm:$0x3] %vm437, %v2920
    %2924 = vrot.lane.b32.xlu0 %v2917, 64
    %v2925 = vpop.permute.xlu0 %2924
    %2927 = vst.msk [vmem:[%s1362] sm:$0x3] %vm437, %v2925
    %2928 = vrot.lane.b32.xlu0 %v2917, 96
    %v2929 = vpop.permute.xlu0 %2928
    %v2931 = vsel %vm448, %v2920, %v2929
    %v2933 = vsel %vm295, %v2931, 0
    %2935 = vmatprep.subr.mxu0 %v1870
    %2936 = vmatpush1.msra.mxu0 %v1869
    %2937 = vmatprep.subr.mxu0 %v1872
    %2938 = vmatpush1.msra.mxu0 %v1871
    %2939 = vmatprep.subr.mxu0 %v1874
    %2940 = vmatpush1.msra.mxu0 %v1873
    %2941 = vmatprep.subr.mxu0 %v1876
    %2942 = vmatpush1.msra.mxu0 %v1875
    %2943 = vmatprep.subr.mxu0 %v1878
    %2944 = vmatpush1.msra.mxu0 %v1877
    %2945 = vmatprep.subr.mxu0 %v1880
    %2946 = vmatpush1.msra.mxu0 %v1879
    %2947 = vmatprep.subr.mxu0 %v1882
    %2948 = vmatpush1.msra.mxu0 %v1881
    %2949 = vmatprep.subr.mxu0 %v1884
    %2950 = vmatpush1.msra.mxu0 %v1883
    %2951 = vmatprep.subr.mxu0 0.0
    %2952 = vmatpush1.msra.mxu0 0.0
    %2953 = vmatprep.subr.mxu0 0.0
    %2954 = vmatpush1.msra.mxu0 0.0
    %2955 = vmatprep.subr.mxu0 0.0
    %2956 = vmatpush1.msra.mxu0 0.0
    %2957 = vmatprep.subr.mxu0 0.0
    %2958 = vmatpush1.msra.mxu0 0.0
    %2959 = vmatprep.subr.mxu0 0.0
    %2960 = vmatpush1.msra.mxu0 0.0
    %2961 = vmatprep.subr.mxu0 0.0
    %2962 = vmatpush1.msra.mxu0 0.0
    %2963 = vmatprep.subr.mxu0 0.0
    %2964 = vmatpush1.msra.mxu0 0.0
    %2965 = vmatprep.subr.mxu0 0.0
    %2966 = vmatpush1.msra.mxu0 0.0
    %2967 = vmatprep.subr.mxu0 0.0
    %2968 = vmatpush1.msra.mxu0 0.0
    %2969 = vmatprep.subr.mxu0 0.0
    %2970 = vmatpush1.msra.mxu0 0.0
    %2971 = vmatprep.subr.mxu0 0.0
    %2972 = vmatpush1.msra.mxu0 0.0
    %2973 = vmatprep.subr.mxu0 0.0
    %2974 = vmatpush1.msra.mxu0 0.0
    %2975 = vmatprep.subr.mxu0 0.0
    %2976 = vmatpush1.msra.mxu0 0.0
    %2977 = vmatprep.subr.mxu0 0.0
    %2978 = vmatpush1.msra.mxu0 0.0
    %2979 = vmatprep.subr.mxu0 0.0
    %2980 = vmatpush1.msra.mxu0 0.0
    %2981 = vmatprep.subr.mxu0 0.0
    %2982 = vmatpush1.msra.mxu0 0.0
    %2983 = vmatprep.subr.mxu0 0.0
    %2984 = vmatpush1.msra.mxu0 0.0
    %2985 = vmatprep.subr.mxu0 0.0
    %2986 = vmatpush1.msra.mxu0 0.0
    %2987 = vmatprep.subr.mxu0 0.0
    %2988 = vmatpush1.msra.mxu0 0.0
    %2989 = vmatprep.subr.mxu0 0.0
    %2990 = vmatpush1.msra.mxu0 0.0
    %2991 = vmatprep.subr.mxu0 0.0
    %2992 = vmatpush1.msra.mxu0 0.0
    %2993 = vmatprep.subr.mxu0 0.0
    %2994 = vmatpush1.msra.mxu0 0.0
    %2995 = vmatprep.subr.mxu0 0.0
    %2996 = vmatpush1.msra.mxu0 0.0
    %2997 = vmatprep.subr.mxu0 0.0
    %2998 = vmatpush1.msra.mxu0 0.0
    %2999 = vmatprep.mubr.f32.mxu0 0.0
    %3000 = vmatmul.mubr.f32.gmra.mrb[0].mxu0 %v2933
    %v3001 = vpop.f32.mrb[0].mxu0
    %v3002 = vadd.f32 0.0, %v3001
    %v3003 = vpop.f32.mrb[0].mxu0
    %v3004 = vadd.f32 0.0, %v3003
    %3005 = vdwg.mxu0
    %v3006 = vld [vmem:[%s372] sm:$0xf]
    %v3007 = vadd.f32 %v3002, %v3006
    %v3008 = vld [vmem:[#allocation2] sm:$0xf]
    %v3011 = vunpack.c.l.s4 1983009808
    %v3012 = vunpack.c.0.s8 %v3011
    %v3013 = vlaneseq
    %v3014 = vshrl.u32 %v3013, 7
    %v3015 = vsub.s32 %v3012, %v3014
    %v3016 = vrot.slane %v3008, %v3015
    %v3017 = vcombine.high %v3016, %v3016
    %v3019 = vadd.f32 %v3004, %v3017
    %v3020 = vxor.u32 %v3007, 2147483648
    %v3021 = vmul.f32 %v3020, 1.442695
    %v3022 = vpow.pop %v3021
    %v3023 = vadd.f32 %v3022, 1.0
    %v3024 = vrcp.pop %v3023
    %v3025 = vmul.f32 1.0, %v3024
    %v3026 = vtanh.pop %v3007
    %v3027 = vmul.f32 %v3025, %v2887
    %3029 = vrot.lane.b32.xlu0 %v3026, 32
    %v3030 = vpop.permute.xlu0 %3029
    %v3032 = vmul.f32 %v3025, %v3030
    %3034 = vrot.lane.b32.xlu0 %v3032, 32
    %v3035 = vpop.permute.xlu0 %3034
    %v3037 = vadd.f32 %v3027, %v3035
    %v3038 = vtanh.pop %v3037
    %3040 = vrot.lane.b32.xlu0 %v3038, 32
    %v3041 = vpop.permute.xlu0 %3040
    %v3043 = vmul.f32 %v3025, %v3041
    %v3044 = vxor.u32 %v3019, 2147483648
    %v3045 = vmul.f32 %v3044, 1.442695
    %v3046 = vpow.pop %v3045
    %v3047 = vadd.f32 %v3046, 1.0
    %v3048 = vrcp.pop %v3047
    %v3049 = vmul.f32 1.0, %v3048
    %v3050 = vtanh.pop %v3019
    %v3051 = vmul.f32 %v3049, %v2911
    %3053 = vrot.lane.b32.xlu0 %v3050, 32
    %v3054 = vpop.permute.xlu0 %3053
    %v3056 = vmul.f32 %v3049, %v3054
    %3058 = vrot.lane.b32.xlu0 %v3056, 32
    %v3059 = vpop.permute.xlu0 %3058
    %v3061 = vadd.f32 %v3051, %v3059
    %v3062 = vtanh.pop %v3061
    %3064 = vrot.lane.b32.xlu0 %v3062, 32
    %v3065 = vpop.permute.xlu0 %3064
    %v3067 = vmul.f32 %v3049, %v3065
    %3069 = vrot.lane.b32.xlu0 %v3043, 64
    %v3070 = vpop.permute.xlu0 %3069
    %3072 = vst.msk [vmem:[%s1508] sm:$0x3] %vm437, %v3070
    %3074 = vrot.lane.b32.xlu0 %v3067, 64
    %v3075 = vpop.permute.xlu0 %3074
    %3077 = vst.msk [vmem:[#allocation4] sm:$0x3] %vm437, %v3075
    %v3078 = vld [vmem:[#allocation3] sm:$0x3]
    %v3079 = vld [vmem:[#allocation3 + $0x2] sm:$0x3]
    %v3080 = vld [vmem:[#allocation3 + $0x4] sm:$0x3]
    %v3081 = vld [vmem:[#allocation3 + $0x6] sm:$0x3]
    %v3082 = vld [vmem:[#allocation3 + $0x8] sm:$0x3]
    %v3083 = vld [vmem:[#allocation3 + $0xa] sm:$0x3]
    %v3084 = vld [vmem:[#allocation3 + $0xc] sm:$0x3]
    %v3085 = vld [vmem:[#allocation3 + $0xe] sm:$0x3]
    %v3086 = vld [vmem:[#allocation4] sm:$0x3]
    %v3087 = vld [vmem:[#allocation4 + $0x2] sm:$0x3]
    %v3088 = vld [vmem:[#allocation4 + $0x4] sm:$0x3]
    %v3089 = vld [vmem:[#allocation4 + $0x6] sm:$0x3]
    %v3090 = vld [vmem:[#allocation4 + $0x8] sm:$0x3]
    %v3091 = vld [vmem:[#allocation4 + $0xa] sm:$0x3]
    %v3092 = vld [vmem:[#allocation4 + $0xc] sm:$0x3]
    %v3093 = vld [vmem:[#allocation4 + $0xe] sm:$0x3]
    %v3094 = vld [vmem:[%s8] sm:$0xff]
    %v3095 = vld [vmem:[%s8 + $0x8] sm:$0xff]
    %v3096 = vld [vmem:[%s8 + $0x10] sm:$0xff]
    %v3097 = vld [vmem:[%s8 + $0x18] sm:$0xff]
    %v3098 = vld [vmem:[%s9] sm:$0xff]
    %v3099 = vld [vmem:[%s9 + $0x8] sm:$0xff]
    %v3100 = vld [vmem:[%s9 + $0x10] sm:$0xff]
    %v3101 = vld [vmem:[%s9 + $0x18] sm:$0xff]
    %v3110 = vcombine.low %v3086, %v3087
    %v3111 = vcombine.low %v3088, %v3089
    %v3113 = vunpack.c.l.s4 1983009808
    %v3114 = vunpack.c.0.s8 %v3113
    %v3115 = vlaneseq
    %v3116 = vshrl.u32 %v3115, 7
    %v3117 = vsub.s32 %v3114, %v3116
    %v3118 = vrot.slane %v3110, %v3117
    %v3120 = vunpack.c.l.s4 1983009808
    %v3121 = vunpack.c.0.s8 %v3120
    %v3122 = vlaneseq
    %v3123 = vshrl.u32 %v3122, 7
    %v3124 = vsub.s32 %v3121, %v3123
    %v3125 = vrot.slane %v3111, %v3124
    %v3126 = vcombine.low %v3118, %v3125
    %v3127 = vcombine.low %v3090, %v3091
    %v3128 = vcombine.low %v3092, %v3093
    %v3130 = vunpack.c.l.s4 1983009808
    %v3131 = vunpack.c.0.s8 %v3130
    %v3132 = vlaneseq
    %v3133 = vshrl.u32 %v3132, 7
    %v3134 = vsub.s32 %v3131, %v3133
    %v3135 = vrot.slane %v3127, %v3134
    %v3137 = vunpack.c.l.s4 1983009808
    %v3138 = vunpack.c.0.s8 %v3137
    %v3139 = vlaneseq
    %v3140 = vshrl.u32 %v3139, 7
    %v3141 = vsub.s32 %v3138, %v3140
    %v3142 = vrot.slane %v3128, %v3141
    %v3143 = vcombine.low %v3135, %v3142
    %v3144 = vsel %vm448, %v3126, 0
    %v3146 = vsel %vm448, %v3143, 0
    %3148 = vmatprep.subr.mxu0 0.0
    %3149 = vmatpush1.msra.mxu0 %v3098
    %3150 = vmatprep.subr.mxu0 0.0
    %3151 = vmatpush1.msra.mxu0 %v3099
    %3152 = vmatprep.subr.mxu0 0.0
    %3153 = vmatpush1.msra.mxu0 %v3100
    %3154 = vmatprep.subr.mxu0 0.0
    %3155 = vmatpush1.msra.mxu0 %v3101
    %3156 = vmatprep.subr.mxu0 0.0
    %3157 = vmatpush1.msra.mxu0 0.0
    %3158 = vmatprep.subr.mxu0 0.0
    %3159 = vmatpush1.msra.mxu0 0.0
    %3160 = vmatprep.subr.mxu0 0.0
    %3161 = vmatpush1.msra.mxu0 0.0
    %3162 = vmatprep.subr.mxu0 0.0
    %3163 = vmatpush1.msra.mxu0 0.0
    %3164 = vmatprep.subr.mxu0 0.0
    %3165 = vmatpush1.msra.mxu0 0.0
    %3166 = vmatprep.subr.mxu0 0.0
    %3167 = vmatpush1.msra.mxu0 0.0
    %3168 = vmatprep.subr.mxu0 0.0
    %3169 = vmatpush1.msra.mxu0 0.0
    %3170 = vmatprep.subr.mxu0 0.0
    %3171 = vmatpush1.msra.mxu0 0.0
    %3172 = vmatprep.subr.mxu0 0.0
    %3173 = vmatpush1.msra.mxu0 0.0
    %3174 = vmatprep.subr.mxu0 0.0
    %3175 = vmatpush1.msra.mxu0 0.0
    %3176 = vmatprep.subr.mxu0 0.0
    %3177 = vmatpush1.msra.mxu0 0.0
    %3178 = vmatprep.subr.mxu0 0.0
    %3179 = vmatpush1.msra.mxu0 0.0
    %3180 = vmatprep.subr.mxu0 0.0
    %3181 = vmatpush1.msra.mxu0 0.0
    %3182 = vmatprep.subr.mxu0 0.0
    %3183 = vmatpush1.msra.mxu0 0.0
    %3184 = vmatprep.subr.mxu0 0.0
    %3185 = vmatpush1.msra.mxu0 0.0
    %3186 = vmatprep.subr.mxu0 0.0
    %3187 = vmatpush1.msra.mxu0 0.0
    %3188 = vmatprep.subr.mxu0 0.0
    %3189 = vmatpush1.msra.mxu0 0.0
    %3190 = vmatprep.subr.mxu0 0.0
    %3191 = vmatpush1.msra.mxu0 0.0
    %3192 = vmatprep.subr.mxu0 0.0
    %3193 = vmatpush1.msra.mxu0 0.0
    %3194 = vmatprep.subr.mxu0 0.0
    %3195 = vmatpush1.msra.mxu0 0.0
    %3196 = vmatprep.subr.mxu0 0.0
    %3197 = vmatpush1.msra.mxu0 0.0
    %3198 = vmatprep.subr.mxu0 0.0
    %3199 = vmatpush1.msra.mxu0 0.0
    %3200 = vmatprep.subr.mxu0 0.0
    %3201 = vmatpush1.msra.mxu0 0.0
    %3202 = vmatprep.subr.mxu0 0.0
    %3203 = vmatpush1.msra.mxu0 0.0
    %3204 = vmatprep.subr.mxu0 0.0
    %3205 = vmatpush1.msra.mxu0 0.0
    %3206 = vmatprep.subr.mxu0 0.0
    %3207 = vmatpush1.msra.mxu0 0.0
    %3208 = vmatprep.subr.mxu0 0.0
    %3209 = vmatpush1.msra.mxu0 0.0
    %3210 = vmatprep.subr.mxu0 0.0
    %3211 = vmatpush1.msra.mxu0 0.0
    %3212 = vmatprep.mubr.f32.mxu0 0.0
    %3213 = vmatmul.mubr.f32.gmra.mrb[0].mxu0 %v3144
    %v3214 = vpop.f32.mrb[0].mxu0
    %v3215 = vadd.f32 0.0, %v3214
    %v3216 = vpop.f32.mrb[0].mxu0
    %3217 = vmatprep.mubr.f32.mxu0 0.0
    %3218 = vmatmul.mubr.f32.gmra.mrb[0].mxu0 %v3146
    %v3219 = vpop.f32.mrb[0].mxu0
    %v3220 = vadd.f32 0.0, %v3219
    %v3221 = vpop.f32.mrb[0].mxu0
    %3222 = vdwg.mxu0
    %v3231 = vcombine.low %v3078, %v3079
    %v3232 = vcombine.low %v3080, %v3081
    %v3234 = vunpack.c.l.s4 1983009808
    %v3235 = vunpack.c.0.s8 %v3234
    %v3236 = vlaneseq
    %v3237 = vshrl.u32 %v3236, 7
    %v3238 = vsub.s32 %v3235, %v3237
    %v3239 = vrot.slane %v3231, %v3238
    %v3241 = vunpack.c.l.s4 1983009808
    %v3242 = vunpack.c.0.s8 %v3241
    %v3243 = vlaneseq
    %v3244 = vshrl.u32 %v3243, 7
    %v3245 = vsub.s32 %v3242, %v3244
    %v3246 = vrot.slane %v3232, %v3245
    %v3247 = vcombine.low %v3239, %v3246
    %v3248 = vcombine.low %v3082, %v3083
    %v3249 = vcombine.low %v3084, %v3085
    %v3251 = vunpack.c.l.s4 1983009808
    %v3252 = vunpack.c.0.s8 %v3251
    %v3253 = vlaneseq
    %v3254 = vshrl.u32 %v3253, 7
    %v3255 = vsub.s32 %v3252, %v3254
    %v3256 = vrot.slane %v3248, %v3255
    %v3258 = vunpack.c.l.s4 1983009808
    %v3259 = vunpack.c.0.s8 %v3258
    %v3260 = vlaneseq
    %v3261 = vshrl.u32 %v3260, 7
    %v3262 = vsub.s32 %v3259, %v3261
    %v3263 = vrot.slane %v3249, %v3262
    %v3264 = vcombine.low %v3256, %v3263
    %v3265 = vsel %vm448, %v3247, 0
    %v3267 = vsel %vm448, %v3264, 0
    %3269 = vmatprep.subr.mxu0 0.0
    %3270 = vmatpush1.msra.mxu0 %v3094
    %3271 = vmatprep.subr.mxu0 0.0
    %3272 = vmatpush1.msra.mxu0 %v3095
    %3273 = vmatprep.subr.mxu0 0.0
    %3274 = vmatpush1.msra.mxu0 %v3096
    %3275 = vmatprep.subr.mxu0 0.0
    %3276 = vmatpush1.msra.mxu0 %v3097
    %3277 = vmatprep.subr.mxu0 0.0
    %3278 = vmatpush1.msra.mxu0 0.0
    %3279 = vmatprep.subr.mxu0 0.0
    %3280 = vmatpush1.msra.mxu0 0.0
    %3281 = vmatprep.subr.mxu0 0.0
    %3282 = vmatpush1.msra.mxu0 0.0
    %3283 = vmatprep.subr.mxu0 0.0
    %3284 = vmatpush1.msra.mxu0 0.0
    %3285 = vmatprep.subr.mxu0 0.0
    %3286 = vmatpush1.msra.mxu0 0.0
    %3287 = vmatprep.subr.mxu0 0.0
    %3288 = vmatpush1.msra.mxu0 0.0
    %3289 = vmatprep.subr.mxu0 0.0
    %3290 = vmatpush1.msra.mxu0 0.0
    %3291 = vmatprep.subr.mxu0 0.0
    %3292 = vmatpush1.msra.mxu0 0.0
    %3293 = vmatprep.subr.mxu0 0.0
    %3294 = vmatpush1.msra.mxu0 0.0
    %3295 = vmatprep.subr.mxu0 0.0
    %3296 = vmatpush1.msra.mxu0 0.0
    %3297 = vmatprep.subr.mxu0 0.0
    %3298 = vmatpush1.msra.mxu0 0.0
    %3299 = vmatprep.subr.mxu0 0.0
    %3300 = vmatpush1.msra.mxu0 0.0
    %3301 = vmatprep.subr.mxu0 0.0
    %3302 = vmatpush1.msra.mxu0 0.0
    %3303 = vmatprep.subr.mxu0 0.0
    %3304 = vmatpush1.msra.mxu0 0.0
    %3305 = vmatprep.subr.mxu0 0.0
    %3306 = vmatpush1.msra.mxu0 0.0
    %3307 = vmatprep.subr.mxu0 0.0
    %3308 = vmatpush1.msra.mxu0 0.0
    %3309 = vmatprep.subr.mxu0 0.0
    %3310 = vmatpush1.msra.mxu0 0.0
    %3311 = vmatprep.subr.mxu0 0.0
    %3312 = vmatpush1.msra.mxu0 0.0
    %3313 = vmatprep.subr.mxu0 0.0
    %3314 = vmatpush1.msra.mxu0 0.0
    %3315 = vmatprep.subr.mxu0 0.0
    %3316 = vmatpush1.msra.mxu0 0.0
    %3317 = vmatprep.subr.mxu0 0.0
    %3318 = vmatpush1.msra.mxu0 0.0
    %3319 = vmatprep.subr.mxu0 0.0
    %3320 = vmatpush1.msra.mxu0 0.0
    %3321 = vmatprep.subr.mxu0 0.0
    %3322 = vmatpush1.msra.mxu0 0.0
    %3323 = vmatprep.subr.mxu0 0.0
    %3324 = vmatpush1.msra.mxu0 0.0
    %3325 = vmatprep.subr.mxu0 0.0
    %3326 = vmatpush1.msra.mxu0 0.0
    %3327 = vmatprep.subr.mxu0 0.0
    %3328 = vmatpush1.msra.mxu0 0.0
    %3329 = vmatprep.subr.mxu0 0.0
    %3330 = vmatpush1.msra.mxu0 0.0
    %3331 = vmatprep.subr.mxu0 0.0
    %3332 = vmatpush1.msra.mxu0 0.0
    %3333 = vmatprep.mubr.f32.mxu0 0.0
    %3334 = vmatmul.mubr.f32.gmra.mrb[0].mxu0 %v3265
    %v3335 = vpop.f32.mrb[0].mxu0
    %v3336 = vadd.f32 %v3215, %v3335
    %v3337 = vpop.f32.mrb[0].mxu0
    %3338 = vmatprep.mubr.f32.mxu0 0.0
    %3339 = vmatmul.mubr.f32.gmra.mrb[0].mxu0 %v3267
    %v3340 = vpop.f32.mrb[0].mxu0
    %v3341 = vadd.f32 %v3220, %v3340
    %v3342 = vpop.f32.mrb[0].mxu0
    %3343 = vdwg.mxu0
    %v3344 = vld [vmem:[#allocation14] sm:$0x1]
    %v3346 = vlaneseq
    %v3347 = vshrl.u32 %v3346, 7
    %v3348 = vsub.s32 0, %v3347
    %v3349 = vrot.slane %v3344, %v3348
    %v3351 = vadd.f32 %v3336, %v3349
    %v3352 = vadd.f32 %v3341, %v3349
    %vm3353 = vcmask 80896
    %3354 = vst.msk [vmem:[#allocation16] sm:$0xff] %vm3353, %v3351
    %3355 = vst.msk [vmem:[#allocation16 + $0x8] sm:$0xff] %vm3353, %v3352
    // Predicated region
    $region70: #{birnn_pallas.1} parent=1 // pred_check
      _
    $region71: #{birnn_pallas.1} parent=1 // pred_check_branch
      %3357 = sbr.rel (0) target = $region73
    $region72: #{birnn_pallas.1} parent=1 // pred_region
      %s3359 = ssub.s32 256, 256
      %3360 = vsyncadd [#allocation7], %s3359
      %s3361 = sshll.u32 [#allocation16], 4
      %s3362 = int_to_ptr.vmem [resolvable:$true] %s3361
      %3367 = dma.vmem_to_hbm [thread:$0]  %s3362, 256, %s11, [#allocation7], 128, 128, 8
    $region73: #{birnn_pallas.1} parent=1 // pred_fallthru
      _
    // Predicated region
    $region74: #{birnn_pallas.1} parent=1 // pred_check
      _
    $region75: #{birnn_pallas.1} parent=1 // pred_check_branch
      %3369 = sbr.rel (0) target = $region77
    $region76: #{birnn_pallas.1} parent=1 // pred_region
      %3370 = dma.done [#allocation7], 256
    $region77: #{birnn_pallas.1} parent=1 // pred_fallthru
      _
    %3371 = vsyncpa [#allocation6], 1
    %3372 = vsyncpa [#allocation9], 1
    %3373 = vsyncpa [#allocation12], 1
    %3374 = vsyncpa [#allocation15], 1
    %3375 = vsyncpa [#allocation7], 1

</llo_original>
